<compile_context>
chip_gen: v7x
topology: tpu7x:2x2x1
jax: 0.10.0
libtpu: 0.0.40
codegen_flags: <defaults>
</compile_context>

<pallas_src>
import jax
import jax.numpy as jnp
from jax.experimental import pallas as pl
from jax.experimental.pallas import tpu as pltpu

# Synthetic (small) sizes consistent with the module structure
# (original: vec_size=40535, hidden=768, bottleneck=64, topic_num=100).
VEC_SIZE = 1024     # vec_size (tiled over a grid, as required at real sizes)
V_TILE = 512        # vec_size tile streamed per grid step (w1 rows / w6 cols)
H1 = 256            # 768 in the original
H2 = 64             # 64
TOPIC_NUM = 32      # topic_num (100 in the original)
T_PAD = 128         # topic head padded to one full lane tile
BATCH = 128         # fills the MXU M dimension (raise to 256 on v6e/v7x)

BN_EPS = 1e-5
PACK_W = 3 * T_PAD  # lane-dense, lane-aligned [mean | log_var | z]

assert VEC_SIZE % V_TILE == 0 and V_TILE % 128 == 0
assert TOPIC_NUM <= T_PAD
# TODO(synk): at the real vec_size=40535 the last VEC tile is ragged -- zero-pad
# x columns / mask the final fc6 column tile to a multiple of 128 lanes.


def _pick_h1_split():
    """Split fc1 output columns across the two TensorCores only on v7x.

    Single-TC generations keep split=1 (a split would re-stream x); the CPU
    interpreter also falls back to 1.
    """
    try:
        kind = jax.devices()[0].device_kind.lower()
    except Exception:
        return 1
    return 2 if ("tpu" in kind and "7" in kind) else 1


H1_SPLIT = _pick_h1_split()
assert H1 % (128 * H1_SPLIT) == 0


# ---------------------------------------------------------------------------
# Kernel A1: fc1 = x @ w1  (the dominant HBM weight stream).
# grid = (H1_SPLIT, n_v):  leading "parallel" axis over fc1 output-column
# halves (v7x dual-TC), trailing "arbitrary" reduction over vec_size tiles.
# The f32 output block doubles as the accumulator (resident across k).
# ---------------------------------------------------------------------------
def fc1_kernel(x_ref, w1_ref, h1_ref):
    k = pl.program_id(1)

    @pl.when(k == 0)
    def _init():
        h1_ref[...] = jnp.zeros_like(h1_ref)

    h1_ref[...] += jnp.dot(x_ref[...].astype(jnp.bfloat16), w1_ref[...],
                           preferred_element_type=jnp.float32)


def _fc1_call(x, w1):
    n_v = VEC_SIZE // V_TILE
    h1_tile = H1 // H1_SPLIT

    grid_spec = pltpu.PrefetchScalarGridSpec(
        num_scalar_prefetch=0,
        grid=(H1_SPLIT, n_v),
        in_specs=[
            pl.BlockSpec((BATCH, V_TILE), lambda j, k: (0, k)),   # x (f32)
            pl.BlockSpec((V_TILE, h1_tile), lambda j, k: (k, j)), # w1 (bf16)
        ],
        out_specs=pl.BlockSpec((BATCH, h1_tile), lambda j, k: (0, j)),
    )

    flops = 2 * BATCH * VEC_SIZE * H1
    bytes_accessed = (BATCH * VEC_SIZE * 4 * H1_SPLIT   # x (re-read per split)
                      + VEC_SIZE * H1 * 2               # w1 bf16
                      + BATCH * H1 * 4)                 # h1 writeback

    return pl.pallas_call(
        fc1_kernel,
        out_shape=jax.ShapeDtypeStruct((BATCH, H1), jnp.float32),
        grid_spec=grid_spec,
        compiler_params=pltpu.CompilerParams(
            dimension_semantics=("parallel", "arbitrary"),
            vmem_limit_bytes=16 << 20,
        ),
        cost_estimate=pl.CostEstimate(
            flops=int(flops), transcendentals=0,
            bytes_accessed=int(bytes_accessed)),
    )(x, w1)


# ---------------------------------------------------------------------------
# Kernel A2: the tiny middle network, one grid step.
# BN(+b1)+relu -> fc2+BN+relu -> fused [mean|log_var] head (lane-padded) ->
# reparameterize (eps passed in) -> fc4+relu -> fc5+BN+relu.
# Outputs: bf16 decoder hidden `d` and one lane-aligned packed stats slab.
# ---------------------------------------------------------------------------
def mid_kernel(h1_ref, b1_ref, g1_ref, be1_ref,
               w2_ref, b2_ref, g2_ref, be2_ref,
               wh_ref, bh_ref, eps_ref,
               w4_ref, b4_ref,
               w5_ref, b5_ref, g5_ref, be5_ref,
               d_ref, packed_ref):
    inv_b = 1.0 / BATCH
    ones_row = jnp.ones((1, BATCH), jnp.float32)   # hoisted, built once

    def bn_relu(h, gamma, beta):
        # Batch mean and E[h^2] from ONE ones-row MXU matmul (no XLU reduce).
        n = h.shape[1]
        stats = jnp.dot(ones_row, jnp.concatenate([h, h * h], axis=1),
                        preferred_element_type=jnp.float32)
        mu = stats[:, :n] * inv_b
        var = jnp.maximum(stats[:, n:] * inv_b - mu * mu, 0.0)
        scale = gamma * jax.lax.rsqrt(var + BN_EPS)
        shift = beta - mu * scale
        return jnp.maximum(h * scale + shift, 0.0)

    # fc1 epilogue (bias + BN + relu), then fc2 + BN + relu.
    h = bn_relu(h1_ref[...] + b1_ref[...], g1_ref[...], be1_ref[...])
    h = jnp.dot(h, w2_ref[...], preferred_element_type=jnp.float32) + b2_ref[...]
    h = bn_relu(h, g2_ref[...], be2_ref[...])

    # Fused, lane-padded mean / log-var head: one (H2, 2*T_PAD) matmul.
    hv = jnp.dot(h, wh_ref[...], preferred_element_type=jnp.float32) + bh_ref[...]
    mu_p = hv[:, :T_PAD]          # 128-lane aligned static slices
    lv_p = hv[:, T_PAD:]

    # Reparameterize: z = mu + eps * exp(log_var / 2).  Padded columns carry
    # eps only (mu=log_var=0 there) and hit zero rows of w4, so fc4 is exact.
    z_p = mu_p + eps_ref[...] * jnp.exp(0.5 * lv_p)

    d = jnp.maximum(
        jnp.dot(z_p, w4_ref[...], preferred_element_type=jnp.float32) + b4_ref[...],
        0.0)
    d = jnp.dot(d, w5_ref[...], preferred_element_type=jnp.float32) + b5_ref[...]
    d = bn_relu(d, g5_ref[...], be5_ref[...])

    d_ref[...] = d.astype(jnp.bfloat16)

    # Lane-aligned packed stats slab: [mean | log_var | z], 128 lanes each.
    packed_ref[:, :2 * T_PAD] = hv
    packed_ref[:, 2 * T_PAD:] = z_p


def _mid_call(h1, eps, mid_params):
    (b1, g1, be1, w2, b2, g2, be2, wh, bh,
     w4, b4, w5, b5, g5, be5) = mid_params
    args = (h1, b1, g1, be1, w2, b2, g2, be2, wh, bh, eps,
            w4, b4, w5, b5, g5, be5)

    def _const(i):
        return (0, 0)

    in_specs = [pl.BlockSpec(a.shape, _const) for a in args]

    flops = (2 * BATCH * (H1 * H2 + H2 * 2 * T_PAD + T_PAD * H2 + H2 * H1)
             + 2 * BATCH * (2 * 2 * H1 + 2 * H2))       # fused BN-stat matmuls
    transcendentals = BATCH * T_PAD + 2 * H1 + H2
    bytes_accessed = (BATCH * (H1 * 4 + T_PAD * 4 + H1 * 2 + PACK_W * 4)
                      + 4 * (H1 * H2 + H2 * 2 * T_PAD + T_PAD * H2 + H2 * H1))

    return pl.pallas_call(
        mid_kernel,
        out_shape=(
            jax.ShapeDtypeStruct((BATCH, H1), jnp.bfloat16),     # d
            jax.ShapeDtypeStruct((BATCH, PACK_W), jnp.float32),  # packed stats
        ),
        grid_spec=pltpu.PrefetchScalarGridSpec(
            num_scalar_prefetch=0,
            grid=(1,),
            in_specs=in_specs,
            out_specs=(pl.BlockSpec((BATCH, H1), _const),
                       pl.BlockSpec((BATCH, PACK_W), _const)),
        ),
        compiler_params=pltpu.CompilerParams(
            dimension_semantics=("arbitrary",),
            vmem_limit_bytes=16 << 20,
        ),
        cost_estimate=pl.CostEstimate(
            flops=int(flops), transcendentals=int(transcendentals),
            bytes_accessed=int(bytes_accessed)),
    )(*args)


# ---------------------------------------------------------------------------
# Kernel B: fc6 + sigmoid, streaming w6 column tiles ("parallel" so v7x's two
# TensorCores split the columns).  bf16 weights, f32 accumulate, bf16 output.
# ---------------------------------------------------------------------------
def fc6_kernel(d_ref, w6_ref, b6_ref, out_ref):
    logits = jnp.dot(d_ref[...], w6_ref[...],
                     preferred_element_type=jnp.float32) + b6_ref[...]
    out_ref[...] = jax.nn.sigmoid(logits).astype(out_ref.dtype)


def _fc6_call(d, w6, b6):
    n_v = VEC_SIZE // V_TILE

    flops = 2 * BATCH * H1 * VEC_SIZE
    transcendentals = BATCH * VEC_SIZE
    bytes_accessed = (H1 * VEC_SIZE * 2 + VEC_SIZE * 4
                      + BATCH * H1 * 2 + BATCH * VEC_SIZE * 2)

    grid_spec = pltpu.PrefetchScalarGridSpec(
        num_scalar_prefetch=0,
        grid=(n_v,),
        in_specs=[
            pl.BlockSpec((BATCH, H1), lambda j: (0, 0)),       # d (bf16, resident)
            pl.BlockSpec((H1, V_TILE), lambda j: (0, j)),      # w6 (bf16, streamed)
            pl.BlockSpec((1, V_TILE), lambda j: (0, j)),       # b6
        ],
        out_specs=pl.BlockSpec((BATCH, V_TILE), lambda j: (0, j)),
    )

    return pl.pallas_call(
        fc6_kernel,
        out_shape=jax.ShapeDtypeStruct((BATCH, VEC_SIZE), jnp.bfloat16),
        grid_spec=grid_spec,
        compiler_params=pltpu.CompilerParams(
            dimension_semantics=("parallel",),
            vmem_limit_bytes=16 << 20,
        ),
        cost_estimate=pl.CostEstimate(
            flops=int(flops), transcendentals=int(transcendentals),
            bytes_accessed=int(bytes_accessed)),
    )(d, w6, b6)


# ---------------------------------------------------------------------------
# Parameters & wrapper
# ---------------------------------------------------------------------------
def init_params(key):
    """PyTorch-Linear-like init.  Weights stored as (in, out).  Big weights
    (w1, w6) stored bf16; the mean/log-var heads and fc4 are lane-padded."""
    def linear(k, fan_in, fan_out):
        k1, k2 = jax.random.split(k)
        bound = 1.0 / (fan_in ** 0.5)
        w = jax.random.uniform(k1, (fan_in, fan_out), jnp.float32, -bound, bound)
        b = jax.random.uniform(k2, (1, fan_out), jnp.float32, -bound, bound)
        return w, b

    keys = jax.random.split(key, 7)
    w1, b1 = linear(keys[0], VEC_SIZE, H1)
    w2, b2 = linear(keys[1], H1, H2)
    wm, bm = linear(keys[2], H2, TOPIC_NUM)
    wv, bv = linear(keys[3], H2, TOPIC_NUM)
    w4, b4 = linear(keys[4], TOPIC_NUM, H2)
    w5, b5 = linear(keys[5], H2, H1)
    w6, b6 = linear(keys[6], H1, VEC_SIZE)

    # Fused, lane-padded mean/log-var head: (H2, 2*T_PAD), zero pad columns.
    wh = jnp.zeros((H2, 2 * T_PAD), jnp.float32)
    wh = wh.at[:, :TOPIC_NUM].set(wm).at[:, T_PAD:T_PAD + TOPIC_NUM].set(wv)
    bh = jnp.zeros((1, 2 * T_PAD), jnp.float32)
    bh = bh.at[:, :TOPIC_NUM].set(bm).at[:, T_PAD:T_PAD + TOPIC_NUM].set(bv)
    # fc4 with zero-padded input rows so padded z lanes contribute nothing.
    w4p = jnp.zeros((T_PAD, H2), jnp.float32).at[:TOPIC_NUM, :].set(w4)

    # BatchNorm affine params (gamma=1, beta=0 defaults).
    g1, be1 = jnp.ones((1, H1), jnp.float32), jnp.zeros((1, H1), jnp.float32)
    g2, be2 = jnp.ones((1, H2), jnp.float32), jnp.zeros((1, H2), jnp.float32)
    g5, be5 = jnp.ones((1, H1), jnp.float32), jnp.zeros((1, H1), jnp.float32)

    return (w1.astype(jnp.bfloat16), b1, g1, be1,
            w2, b2, g2, be2,
            wh, bh,
            w4p, b4,
            w5, b5, g5, be5,
            w6.astype(jnp.bfloat16), b6)


@jax.jit
def vae_forward(x, eps, params):
    (w1, b1, g1, be1,
     w2, b2, g2, be2,
     wh, bh,
     w4, b4,
     w5, b5, g5, be5,
     w6, b6) = params

    h1 = _fc1_call(x, w1)                                   # kernel A1
    d, packed = _mid_call(h1, eps,                          # kernel A2
                          (b1, g1, be1, w2, b2, g2, be2, wh, bh,
                           w4, b4, w5, b5, g5, be5))
    x_hat = _fc6_call(d, w6, b6)                            # kernel B

    mean = packed[:, :TOPIC_NUM]
    log_var = packed[:, T_PAD:T_PAD + TOPIC_NUM]
    z = packed[:, 2 * T_PAD:2 * T_PAD + TOPIC_NUM]
    return x_hat, mean, log_var, z


if __name__ == "__main__":
    key = jax.random.PRNGKey(0)
    k_x, k_eps, k_params = jax.random.split(key, 3)

    # Document-term-vector-like input (non-negative), shape (batch, vec_size).
    x = jax.random.uniform(k_x, (BATCH, VEC_SIZE), jnp.float32)
    # Reparameterization noise (torch.randn_like equivalent, drawn per call).
    eps = jax.random.normal(k_eps, (BATCH, T_PAD), jnp.float32)

    params = init_params(k_params)

    x_hat, mean, log_var, z = vae_forward(x, eps, params)
    jax.block_until_ready((x_hat, mean, log_var, z))

    assert x_hat.shape == (BATCH, VEC_SIZE)
    assert mean.shape == (BATCH, TOPIC_NUM)
    assert log_var.shape == (BATCH, TOPIC_NUM)
    assert z.shape == (BATCH, TOPIC_NUM)
    assert bool(jnp.all(jnp.isfinite(x_hat.astype(jnp.float32))))
    assert bool(jnp.all(jnp.isfinite(mean)))
    assert bool(jnp.all(jnp.isfinite(log_var)))
    assert bool(jnp.all(jnp.isfinite(z)))
    assert bool(jnp.all((x_hat >= 0.0) & (x_hat <= 1.0)))

    print("KERNEL_OK")
</pallas_src>

<mosaic_0001>
module attributes {stable_mosaic.version = 11 : i64} {
  func.func @fc1_kernel(%arg0: i32, %arg1: i32, %arg2: memref<128x512xf32, #tpu.memory_space<vmem>>, %arg3: memref<512x256xbf16, #tpu.memory_space<vmem>>, %arg4: memref<128x256xf32, #tpu.memory_space<vmem>>) attributes {dimension_semantics = [#tpu.dimension_semantics<parallel>, #tpu.dimension_semantics<arbitrary>], iteration_bounds = array<i64: 1, 2>, scalar_prefetch = 0 : i64, scratch_operands = 0 : i64, tpu.core_type = #tpu.core_type<tc>, window_params = [{transform_indices = @transform_0, window_bounds = array<i64: 128, 512>}, {transform_indices = @transform_1, window_bounds = array<i64: 512, 256>}, {transform_indices = @transform_2, window_bounds = array<i64: 128, 256>}]} {
    %c0_i32 = arith.constant 0 : i32
    %0 = arith.cmpi eq, %arg1, %c0_i32 : i32
    %1 = arith.extui %0 : i1 to i32
    %c0_i32_0 = arith.constant 0 : i32
    %2 = arith.cmpi ne, %1, %c0_i32_0 : i32
    scf.if %2 {
      %cst_8 = arith.constant 0.000000e+00 : f32
      %10 = vector.broadcast %cst_8 : f32 to vector<128x256xf32>
      %c0_9 = arith.constant 0 : index
      %c0_10 = arith.constant 0 : index
      %11 = vector.load %arg4[%c0_9, %c0_10] : memref<128x256xf32, #tpu.memory_space<vmem>>, vector<128x256xf32>
      tpu.vector_store %arg4[%c0_9, %c0_10], %10 {strides = array<i32>} : memref<128x256xf32, #tpu.memory_space<vmem>>, vector<128x256xf32>,
    } else {
    }
    %c0 = arith.constant 0 : index
    %c0_1 = arith.constant 0 : index
    %3 = vector.load %arg4[%c0, %c0_1] : memref<128x256xf32, #tpu.memory_space<vmem>>, vector<128x256xf32>
    %c0_2 = arith.constant 0 : index
    %c0_3 = arith.constant 0 : index
    %4 = vector.load %arg2[%c0_2, %c0_3] : memref<128x512xf32, #tpu.memory_space<vmem>>, vector<128x512xf32>
    %5 = arith.truncf %4 : vector<128x512xf32> to vector<128x512xbf16>
    %c0_4 = arith.constant 0 : index
    %c0_5 = arith.constant 0 : index
    %6 = vector.load %arg3[%c0_4, %c0_5] : memref<512x256xbf16, #tpu.memory_space<vmem>>, vector<512x256xbf16>
    %cst = arith.constant dense<0.000000e+00> : vector<128x256xf32>
    %7 = tpu.matmul %5, %6, %cst {dimension_numbers = #tpu.dot_dimension_numbers<[1], [0], [0], [1], [0, 0, 1, 1], [], []>} : vector<128x512xbf16>, vector<512x256xbf16>, vector<128x256xf32> -> vector<128x256xf32>
    %8 = arith.addf %3, %7 : vector<128x256xf32>
    %c0_6 = arith.constant 0 : index
    %c0_7 = arith.constant 0 : index
    %9 = vector.load %arg4[%c0_6, %c0_7] : memref<128x256xf32, #tpu.memory_space<vmem>>, vector<128x256xf32>
    tpu.vector_store %arg4[%c0_6, %c0_7], %8 {strides = array<i32>} : memref<128x256xf32, #tpu.memory_space<vmem>>, vector<128x256xf32>,
    return
  }
  func.func @transform_0(%arg0: i32, %arg1: i32) -> (i32, i32) {
    %c0_i32 = arith.constant 0 : i32
    %c0_i32_0 = arith.constant 0 : i32
    return %c0_i32, %arg1 : i32, i32
  }
  func.func @transform_1(%arg0: i32, %arg1: i32) -> (i32, i32) {
    %c0_i32 = arith.constant 0 : i32
    return %arg1, %arg0 : i32, i32
  }
  func.func @transform_2(%arg0: i32, %arg1: i32) -> (i32, i32) {
    %c0_i32 = arith.constant 0 : i32
    %c0_i32_0 = arith.constant 0 : i32
    return %c0_i32, %arg0 : i32, i32
  }
}

module attributes {stable_mosaic.version = 11 : i64} {
  func.func @mid_kernel(%arg0: i32, %arg1: memref<128x256xf32, #tpu.memory_space<vmem>>, %arg2: memref<1x256xf32, #tpu.memory_space<vmem>>, %arg3: memref<1x256xf32, #tpu.memory_space<vmem>>, %arg4: memref<1x256xf32, #tpu.memory_space<vmem>>, %arg5: memref<256x64xf32, #tpu.memory_space<vmem>>, %arg6: memref<1x64xf32, #tpu.memory_space<vmem>>, %arg7: memref<1x64xf32, #tpu.memory_space<vmem>>, %arg8: memref<1x64xf32, #tpu.memory_space<vmem>>, %arg9: memref<64x256xf32, #tpu.memory_space<vmem>>, %arg10: memref<1x256xf32, #tpu.memory_space<vmem>>, %arg11: memref<128x128xf32, #tpu.memory_space<vmem>>, %arg12: memref<128x64xf32, #tpu.memory_space<vmem>>, %arg13: memref<1x64xf32, #tpu.memory_space<vmem>>, %arg14: memref<64x256xf32, #tpu.memory_space<vmem>>, %arg15: memref<1x256xf32, #tpu.memory_space<vmem>>, %arg16: memref<1x256xf32, #tpu.memory_space<vmem>>, %arg17: memref<1x256xf32, #tpu.memory_space<vmem>>, %arg18: memref<128x256xbf16, #tpu.memory_space<vmem>>, %arg19: memref<128x384xf32, #tpu.memory_space<vmem>>) attributes {dimension_semantics = [#tpu.dimension_semantics<arbitrary>], iteration_bounds = array<i64: 1>, scalar_prefetch = 0 : i64, scratch_operands = 0 : i64, tpu.core_type = #tpu.core_type<tc>, window_params = [{pipeline_mode = #tpu.pipeline_mode<synchronous>, transform_indices = @transform_0, window_bounds = array<i64: 128, 256>}, {pipeline_mode = #tpu.pipeline_mode<synchronous>, transform_indices = @transform_1, window_bounds = array<i64: 1, 256>}, {pipeline_mode = #tpu.pipeline_mode<synchronous>, transform_indices = @transform_2, window_bounds = array<i64: 1, 256>}, {pipeline_mode = #tpu.pipeline_mode<synchronous>, transform_indices = @transform_3, window_bounds = array<i64: 1, 256>}, {pipeline_mode = #tpu.pipeline_mode<synchronous>, transform_indices = @transform_4, window_bounds = array<i64: 256, 64>}, {pipeline_mode = #tpu.pipeline_mode<synchronous>, transform_indices = @transform_5, window_bounds = array<i64: 1, 64>}, {pipeline_mode = #tpu.pipeline_mode<synchronous>, transform_indices = @transform_6, window_bounds = array<i64: 1, 64>}, {pipeline_mode = #tpu.pipeline_mode<synchronous>, transform_indices = @transform_7, window_bounds = array<i64: 1, 64>}, {pipeline_mode = #tpu.pipeline_mode<synchronous>, transform_indices = @transform_8, window_bounds = array<i64: 64, 256>}, {pipeline_mode = #tpu.pipeline_mode<synchronous>, transform_indices = @transform_9, window_bounds = array<i64: 1, 256>}, {pipeline_mode = #tpu.pipeline_mode<synchronous>, transform_indices = @transform_10, window_bounds = array<i64: 128, 128>}, {pipeline_mode = #tpu.pipeline_mode<synchronous>, transform_indices = @transform_11, window_bounds = array<i64: 128, 64>}, {pipeline_mode = #tpu.pipeline_mode<synchronous>, transform_indices = @transform_12, window_bounds = array<i64: 1, 64>}, {pipeline_mode = #tpu.pipeline_mode<synchronous>, transform_indices = @transform_13, window_bounds = array<i64: 64, 256>}, {pipeline_mode = #tpu.pipeline_mode<synchronous>, transform_indices = @transform_14, window_bounds = array<i64: 1, 256>}, {pipeline_mode = #tpu.pipeline_mode<synchronous>, transform_indices = @transform_15, window_bounds = array<i64: 1, 256>}, {pipeline_mode = #tpu.pipeline_mode<synchronous>, transform_indices = @transform_16, window_bounds = array<i64: 1, 256>}, {pipeline_mode = #tpu.pipeline_mode<synchronous>, transform_indices = @transform_17, window_bounds = array<i64: 128, 256>}, {pipeline_mode = #tpu.pipeline_mode<synchronous>, transform_indices = @transform_18, window_bounds = array<i64: 128, 384>}]} {
    %cst = arith.constant 1.000000e+00 : f32
    %0 = vector.broadcast %cst : f32 to vector<1x128xf32>
    %c0 = arith.constant 0 : index
    %c0_0 = arith.constant 0 : index
    %1 = vector.load %arg1[%c0, %c0_0] : memref<128x256xf32, #tpu.memory_space<vmem>>, vector<128x256xf32>
    %c0_1 = arith.constant 0 : index
    %c0_2 = arith.constant 0 : index
    %2 = vector.load %arg2[%c0_1, %c0_2] : memref<1x256xf32, #tpu.memory_space<vmem>>, vector<1x256xf32>
    %3 = vector.broadcast %2 : vector<1x256xf32> to vector<128x256xf32>
    %4 = arith.addf %1, %3 : vector<128x256xf32>
    %c0_3 = arith.constant 0 : index
    %c0_4 = arith.constant 0 : index
    %5 = vector.load %arg3[%c0_3, %c0_4] : memref<1x256xf32, #tpu.memory_space<vmem>>, vector<1x256xf32>
    %c0_5 = arith.constant 0 : index
    %c0_6 = arith.constant 0 : index
    %6 = vector.load %arg4[%c0_5, %c0_6] : memref<1x256xf32, #tpu.memory_space<vmem>>, vector<1x256xf32>
    %7 = arith.mulf %4, %4 : vector<128x256xf32>
    %8 = tpu.concatenate %4, %7 in 1 : vector<128x256xf32>, vector<128x256xf32> -> vector<128x512xf32>
    %cst_7 = arith.constant dense<0.000000e+00> : vector<1x512xf32>
    %9 = tpu.matmul %0, %8, %cst_7 {dimension_numbers = #tpu.dot_dimension_numbers<[1], [0], [0], [1], [0, 0, 1, 1], [], []>} : vector<1x128xf32>, vector<128x512xf32>, vector<1x512xf32> -> vector<1x512xf32>
    %10 = vector.extract_strided_slice %9 {offsets = [0, 0], sizes = [1, 256], strides = [1, 1]} : vector<1x512xf32> to vector<1x256xf32>
    %cst_8 = arith.constant 7.812500e-03 : f32
    %11 = vector.broadcast %cst_8 : f32 to vector<1x256xf32>
    %12 = arith.mulf %10, %11 : vector<1x256xf32>
    %13 = vector.extract_strided_slice %9 {offsets = [0, 256], sizes = [1, 256], strides = [1, 1]} : vector<1x512xf32> to vector<1x256xf32>
    %cst_9 = arith.constant 7.812500e-03 : f32
    %14 = vector.broadcast %cst_9 : f32 to vector<1x256xf32>
    %15 = arith.mulf %13, %14 : vector<1x256xf32>
    %16 = arith.mulf %12, %12 : vector<1x256xf32>
    %17 = arith.subf %15, %16 : vector<1x256xf32>
    %cst_10 = arith.constant 0.000000e+00 : f32
    %18 = vector.broadcast %cst_10 : f32 to vector<1x256xf32>
    %19 = arith.maximumf %17, %18 : vector<1x256xf32>
    %cst_11 = arith.constant 9.99999974E-6 : f32
    %20 = vector.broadcast %cst_11 : f32 to vector<1x256xf32>
    %21 = arith.addf %19, %20 : vector<1x256xf32>
    %22 = math.rsqrt %21 : vector<1x256xf32>
    %23 = arith.mulf %5, %22 : vector<1x256xf32>
    %24 = arith.mulf %12, %23 : vector<1x256xf32>
    %25 = arith.subf %6, %24 : vector<1x256xf32>
    %26 = vector.broadcast %23 : vector<1x256xf32> to vector<128x256xf32>
    %27 = arith.mulf %4, %26 : vector<128x256xf32>
    %28 = vector.broadcast %25 : vector<1x256xf32> to vector<128x256xf32>
    %29 = arith.addf %27, %28 : vector<128x256xf32>
    %cst_12 = arith.constant 0.000000e+00 : f32
    %30 = vector.broadcast %cst_12 : f32 to vector<128x256xf32>
    %31 = arith.maximumf %29, %30 : vector<128x256xf32>
    %c0_13 = arith.constant 0 : index
    %c0_14 = arith.constant 0 : index
    %32 = vector.load %arg5[%c0_13, %c0_14] : memref<256x64xf32, #tpu.memory_space<vmem>>, vector<256x64xf32>
    %cst_15 = arith.constant dense<0.000000e+00> : vector<128x64xf32>
    %33 = tpu.matmul %31, %32, %cst_15 {dimension_numbers = #tpu.dot_dimension_numbers<[1], [0], [0], [1], [0, 0, 1, 1], [], []>} : vector<128x256xf32>, vector<256x64xf32>, vector<128x64xf32> -> vector<128x64xf32>
    %c0_16 = arith.constant 0 : index
    %c0_17 = arith.constant 0 : index
    %34 = vector.load %arg6[%c0_16, %c0_17] : memref<1x64xf32, #tpu.memory_space<vmem>>, vector<1x64xf32>
    %35 = vector.broadcast %34 : vector<1x64xf32> to vector<128x64xf32>
    %36 = arith.addf %33, %35 : vector<128x64xf32>
    %c0_18 = arith.constant 0 : index
    %c0_19 = arith.constant 0 : index
    %37 = vector.load %arg7[%c0_18, %c0_19] : memref<1x64xf32, #tpu.memory_space<vmem>>, vector<1x64xf32>
    %c0_20 = arith.constant 0 : index
    %c0_21 = arith.constant 0 : index
    %38 = vector.load %arg8[%c0_20, %c0_21] : memref<1x64xf32, #tpu.memory_space<vmem>>, vector<1x64xf32>
    %39 = arith.mulf %36, %36 : vector<128x64xf32>
    %40 = tpu.concatenate %36, %39 in 1 : vector<128x64xf32>, vector<128x64xf32> -> vector<128x128xf32>
    %cst_22 = arith.constant dense<0.000000e+00> : vector<1x128xf32>
    %41 = tpu.matmul %0, %40, %cst_22 {dimension_numbers = #tpu.dot_dimension_numbers<[1], [0], [0], [1], [0, 0, 1, 1], [], []>} : vector<1x128xf32>, vector<128x128xf32>, vector<1x128xf32> -> vector<1x128xf32>
    %42 = vector.extract_strided_slice %41 {offsets = [0, 0], sizes = [1, 64], strides = [1, 1]} : vector<1x128xf32> to vector<1x64xf32>
    %cst_23 = arith.constant 7.812500e-03 : f32
    %43 = vector.broadcast %cst_23 : f32 to vector<1x64xf32>
    %44 = arith.mulf %42, %43 : vector<1x64xf32>
    %45 = vector.extract_strided_slice %41 {offsets = [0, 64], sizes = [1, 64], strides = [1, 1]} : vector<1x128xf32> to vector<1x64xf32>
    %cst_24 = arith.constant 7.812500e-03 : f32
    %46 = vector.broadcast %cst_24 : f32 to vector<1x64xf32>
    %47 = arith.mulf %45, %46 : vector<1x64xf32>
    %48 = arith.mulf %44, %44 : vector<1x64xf32>
    %49 = arith.subf %47, %48 : vector<1x64xf32>
    %cst_25 = arith.constant 0.000000e+00 : f32
    %50 = vector.broadcast %cst_25 : f32 to vector<1x64xf32>
    %51 = arith.maximumf %49, %50 : vector<1x64xf32>
    %cst_26 = arith.constant 9.99999974E-6 : f32
    %52 = vector.broadcast %cst_26 : f32 to vector<1x64xf32>
    %53 = arith.addf %51, %52 : vector<1x64xf32>
    %54 = math.rsqrt %53 : vector<1x64xf32>
    %55 = arith.mulf %37, %54 : vector<1x64xf32>
    %56 = arith.mulf %44, %55 : vector<1x64xf32>
    %57 = arith.subf %38, %56 : vector<1x64xf32>
    %58 = vector.broadcast %55 : vector<1x64xf32> to vector<128x64xf32>
    %59 = arith.mulf %36, %58 : vector<128x64xf32>
    %60 = vector.broadcast %57 : vector<1x64xf32> to vector<128x64xf32>
    %61 = arith.addf %59, %60 : vector<128x64xf32>
    %cst_27 = arith.constant 0.000000e+00 : f32
    %62 = vector.broadcast %cst_27 : f32 to vector<128x64xf32>
    %63 = arith.maximumf %61, %62 : vector<128x64xf32>
    %c0_28 = arith.constant 0 : index
    %c0_29 = arith.constant 0 : index
    %64 = vector.load %arg9[%c0_28, %c0_29] : memref<64x256xf32, #tpu.memory_space<vmem>>, vector<64x256xf32>
    %cst_30 = arith.constant dense<0.000000e+00> : vector<128x256xf32>
    %65 = tpu.matmul %63, %64, %cst_30 {dimension_numbers = #tpu.dot_dimension_numbers<[1], [0], [0], [1], [0, 0, 1, 1], [], []>} : vector<128x64xf32>, vector<64x256xf32>, vector<128x256xf32> -> vector<128x256xf32>
    %c0_31 = arith.constant 0 : index
    %c0_32 = arith.constant 0 : index
    %66 = vector.load %arg10[%c0_31, %c0_32] : memref<1x256xf32, #tpu.memory_space<vmem>>, vector<1x256xf32>
    %67 = vector.broadcast %66 : vector<1x256xf32> to vector<128x256xf32>
    %68 = arith.addf %65, %67 : vector<128x256xf32>
    %69 = vector.extract_strided_slice %68 {offsets = [0, 0], sizes = [128, 128], strides = [1, 1]} : vector<128x256xf32> to vector<128x128xf32>
    %70 = vector.extract_strided_slice %68 {offsets = [0, 128], sizes = [128, 128], strides = [1, 1]} : vector<128x256xf32> to vector<128x128xf32>
    %c0_33 = arith.constant 0 : index
    %c0_34 = arith.constant 0 : index
    %71 = vector.load %arg11[%c0_33, %c0_34] : memref<128x128xf32, #tpu.memory_space<vmem>>, vector<128x128xf32>
    %cst_35 = arith.constant 5.000000e-01 : f32
    %72 = vector.broadcast %cst_35 : f32 to vector<128x128xf32>
    %73 = arith.mulf %72, %70 : vector<128x128xf32>
    %74 = math.exp %73 : vector<128x128xf32>
    %75 = arith.mulf %71, %74 : vector<128x128xf32>
    %76 = arith.addf %69, %75 : vector<128x128xf32>
    %c0_36 = arith.constant 0 : index
    %c0_37 = arith.constant 0 : index
    %77 = vector.load %arg12[%c0_36, %c0_37] : memref<128x64xf32, #tpu.memory_space<vmem>>, vector<128x64xf32>
    %cst_38 = arith.constant dense<0.000000e+00> : vector<128x64xf32>
    %78 = tpu.matmul %76, %77, %cst_38 {dimension_numbers = #tpu.dot_dimension_numbers<[1], [0], [0], [1], [0, 0, 1, 1], [], []>} : vector<128x128xf32>, vector<128x64xf32>, vector<128x64xf32> -> vector<128x64xf32>
    %c0_39 = arith.constant 0 : index
    %c0_40 = arith.constant 0 : index
    %79 = vector.load %arg13[%c0_39, %c0_40] : memref<1x64xf32, #tpu.memory_space<vmem>>, vector<1x64xf32>
    %80 = vector.broadcast %79 : vector<1x64xf32> to vector<128x64xf32>
    %81 = arith.addf %78, %80 : vector<128x64xf32>
    %cst_41 = arith.constant 0.000000e+00 : f32
    %82 = vector.broadcast %cst_41 : f32 to vector<128x64xf32>
    %83 = arith.maximumf %81, %82 : vector<128x64xf32>
    %c0_42 = arith.constant 0 : index
    %c0_43 = arith.constant 0 : index
    %84 = vector.load %arg14[%c0_42, %c0_43] : memref<64x256xf32, #tpu.memory_space<vmem>>, vector<64x256xf32>
    %cst_44 = arith.constant dense<0.000000e+00> : vector<128x256xf32>
    %85 = tpu.matmul %83, %84, %cst_44 {dimension_numbers = #tpu.dot_dimension_numbers<[1], [0], [0], [1], [0, 0, 1, 1], [], []>} : vector<128x64xf32>, vector<64x256xf32>, vector<128x256xf32> -> vector<128x256xf32>
    %c0_45 = arith.constant 0 : index
    %c0_46 = arith.constant 0 : index
    %86 = vector.load %arg15[%c0_45, %c0_46] : memref<1x256xf32, #tpu.memory_space<vmem>>, vector<1x256xf32>
    %87 = vector.broadcast %86 : vector<1x256xf32> to vector<128x256xf32>
    %88 = arith.addf %85, %87 : vector<128x256xf32>
    %c0_47 = arith.constant 0 : index
    %c0_48 = arith.constant 0 : index
    %89 = vector.load %arg16[%c0_47, %c0_48] : memref<1x256xf32, #tpu.memory_space<vmem>>, vector<1x256xf32>
    %c0_49 = arith.constant 0 : index
    %c0_50 = arith.constant 0 : index
    %90 = vector.load %arg17[%c0_49, %c0_50] : memref<1x256xf32, #tpu.memory_space<vmem>>, vector<1x256xf32>
    %91 = arith.mulf %88, %88 : vector<128x256xf32>
    %92 = tpu.concatenate %88, %91 in 1 : vector<128x256xf32>, vector<128x256xf32> -> vector<128x512xf32>
    %cst_51 = arith.constant dense<0.000000e+00> : vector<1x512xf32>
    %93 = tpu.matmul %0, %92, %cst_51 {dimension_numbers = #tpu.dot_dimension_numbers<[1], [0], [0], [1], [0, 0, 1, 1], [], []>} : vector<1x128xf32>, vector<128x512xf32>, vector<1x512xf32> -> vector<1x512xf32>
    %94 = vector.extract_strided_slice %93 {offsets = [0, 0], sizes = [1, 256], strides = [1, 1]} : vector<1x512xf32> to vector<1x256xf32>
    %cst_52 = arith.constant 7.812500e-03 : f32
    %95 = vector.broadcast %cst_52 : f32 to vector<1x256xf32>
    %96 = arith.mulf %94, %95 : vector<1x256xf32>
    %97 = vector.extract_strided_slice %93 {offsets = [0, 256], sizes = [1, 256], strides = [1, 1]} : vector<1x512xf32> to vector<1x256xf32>
    %cst_53 = arith.constant 7.812500e-03 : f32
    %98 = vector.broadcast %cst_53 : f32 to vector<1x256xf32>
    %99 = arith.mulf %97, %98 : vector<1x256xf32>
    %100 = arith.mulf %96, %96 : vector<1x256xf32>
    %101 = arith.subf %99, %100 : vector<1x256xf32>
    %cst_54 = arith.constant 0.000000e+00 : f32
    %102 = vector.broadcast %cst_54 : f32 to vector<1x256xf32>
    %103 = arith.maximumf %101, %102 : vector<1x256xf32>
    %cst_55 = arith.constant 9.99999974E-6 : f32
    %104 = vector.broadcast %cst_55 : f32 to vector<1x256xf32>
    %105 = arith.addf %103, %104 : vector<1x256xf32>
    %106 = math.rsqrt %105 : vector<1x256xf32>
    %107 = arith.mulf %89, %106 : vector<1x256xf32>
    %108 = arith.mulf %96, %107 : vector<1x256xf32>
    %109 = arith.subf %90, %108 : vector<1x256xf32>
    %110 = vector.broadcast %107 : vector<1x256xf32> to vector<128x256xf32>
    %111 = arith.mulf %88, %110 : vector<128x256xf32>
    %112 = vector.broadcast %109 : vector<1x256xf32> to vector<128x256xf32>
    %113 = arith.addf %111, %112 : vector<128x256xf32>
    %cst_56 = arith.constant 0.000000e+00 : f32
    %114 = vector.broadcast %cst_56 : f32 to vector<128x256xf32>
    %115 = arith.maximumf %113, %114 : vector<128x256xf32>
    %116 = arith.truncf %115 : vector<128x256xf32> to vector<128x256xbf16>
    %c0_57 = arith.constant 0 : index
    %c0_58 = arith.constant 0 : index
    %117 = vector.load %arg18[%c0_57, %c0_58] : memref<128x256xbf16, #tpu.memory_space<vmem>>, vector<128x256xbf16>
    tpu.vector_store %arg18[%c0_57, %c0_58], %116 {strides = array<i32>} : memref<128x256xbf16, #tpu.memory_space<vmem>>, vector<128x256xbf16>,
    %c0_59 = arith.constant 0 : index
    %c0_60 = arith.constant 0 : index
    %118 = vector.load %arg19[%c0_59, %c0_60] : memref<128x384xf32, #tpu.memory_space<vmem>>, vector<128x256xf32>
    tpu.vector_store %arg19[%c0_59, %c0_60], %68 {strides = array<i32>} : memref<128x384xf32, #tpu.memory_space<vmem>>, vector<128x256xf32>,
    %c0_61 = arith.constant 0 : index
    %c256 = arith.constant 256 : index
    %119 = vector.load %arg19[%c0_61, %c256] : memref<128x384xf32, #tpu.memory_space<vmem>>, vector<128x128xf32>
    tpu.vector_store %arg19[%c0_61, %c256], %76 {strides = array<i32>} : memref<128x384xf32, #tpu.memory_space<vmem>>, vector<128x128xf32>,
    return
  }
  func.func @transform_0(%arg0: i32) -> (i32, i32) {
    %c0_i32 = arith.constant 0 : i32
    %c0_i32_0 = arith.constant 0 : i32
    %c0_i32_1 = arith.constant 0 : i32
    return %c0_i32, %c0_i32_0 : i32, i32
  }
  func.func @transform_1(%arg0: i32) -> (i32, i32) {
    %c0_i32 = arith.constant 0 : i32
    %c0_i32_0 = arith.constant 0 : i32
    %c0_i32_1 = arith.constant 0 : i32
    return %c0_i32, %c0_i32_0 : i32, i32
  }
  func.func @transform_2(%arg0: i32) -> (i32, i32) {
    %c0_i32 = arith.constant 0 : i32
    %c0_i32_0 = arith.constant 0 : i32
    %c0_i32_1 = arith.constant 0 : i32
    return %c0_i32, %c0_i32_0 : i32, i32
  }
  func.func @transform_3(%arg0: i32) -> (i32, i32) {
    %c0_i32 = arith.constant 0 : i32
    %c0_i32_0 = arith.constant 0 : i32
    %c0_i32_1 = arith.constant 0 : i32
    return %c0_i32, %c0_i32_0 : i32, i32
  }
  func.func @transform_4(%arg0: i32) -> (i32, i32) {
    %c0_i32 = arith.constant 0 : i32
    %c0_i32_0 = arith.constant 0 : i32
    %c0_i32_1 = arith.constant 0 : i32
    return %c0_i32, %c0_i32_0 : i32, i32
  }
  func.func @transform_5(%arg0: i32) -> (i32, i32) {
    %c0_i32 = arith.constant 0 : i32
    %c0_i32_0 = arith.constant 0 : i32
    %c0_i32_1 = arith.constant 0 : i32
    return %c0_i32, %c0_i32_0 : i32, i32
  }
  func.func @transform_6(%arg0: i32) -> (i32, i32) {
    %c0_i32 = arith.constant 0 : i32
    %c0_i32_0 = arith.constant 0 : i32
    %c0_i32_1 = arith.constant 0 : i32
    return %c0_i32, %c0_i32_0 : i32, i32
  }
  func.func @transform_7(%arg0: i32) -> (i32, i32) {
    %c0_i32 = arith.constant 0 : i32
    %c0_i32_0 = arith.constant 0 : i32
    %c0_i32_1 = arith.constant 0 : i32
    return %c0_i32, %c0_i32_0 : i32, i32
  }
  func.func @transform_8(%arg0: i32) -> (i32, i32) {
    %c0_i32 = arith.constant 0 : i32
    %c0_i32_0 = arith.constant 0 : i32
    %c0_i32_1 = arith.constant 0 : i32
    return %c0_i32, %c0_i32_0 : i32, i32
  }
  func.func @transform_9(%arg0: i32) -> (i32, i32) {
    %c0_i32 = arith.constant 0 : i32
    %c0_i32_0 = arith.constant 0 : i32
    %c0_i32_1 = arith.constant 0 : i32
    return %c0_i32, %c0_i32_0 : i32, i32
  }
  func.func @transform_10(%arg0: i32) -> (i32, i32) {
    %c0_i32 = arith.constant 0 : i32
    %c0_i32_0 = arith.constant 0 : i32
    %c0_i32_1 = arith.constant 0 : i32
    return %c0_i32, %c0_i32_0 : i32, i32
  }
  func.func @transform_11(%arg0: i32) -> (i32, i32) {
    %c0_i32 = arith.constant 0 : i32
    %c0_i32_0 = arith.constant 0 : i32
    %c0_i32_1 = arith.constant 0 : i32
    return %c0_i32, %c0_i32_0 : i32, i32
  }
  func.func @transform_12(%arg0: i32) -> (i32, i32) {
    %c0_i32 = arith.constant 0 : i32
    %c0_i32_0 = arith.constant 0 : i32
    %c0_i32_1 = arith.constant 0 : i32
    return %c0_i32, %c0_i32_0 : i32, i32
  }
  func.func @transform_13(%arg0: i32) -> (i32, i32) {
    %c0_i32 = arith.constant 0 : i32
    %c0_i32_0 = arith.constant 0 : i32
    %c0_i32_1 = arith.constant 0 : i32
    return %c0_i32, %c0_i32_0 : i32, i32
  }
  func.func @transform_14(%arg0: i32) -> (i32, i32) {
    %c0_i32 = arith.constant 0 : i32
    %c0_i32_0 = arith.constant 0 : i32
    %c0_i32_1 = arith.constant 0 : i32
    return %c0_i32, %c0_i32_0 : i32, i32
  }
  func.func @transform_15(%arg0: i32) -> (i32, i32) {
    %c0_i32 = arith.constant 0 : i32
    %c0_i32_0 = arith.constant 0 : i32
    %c0_i32_1 = arith.constant 0 : i32
    return %c0_i32, %c0_i32_0 : i32, i32
  }
  func.func @transform_16(%arg0: i32) -> (i32, i32) {
    %c0_i32 = arith.constant 0 : i32
    %c0_i32_0 = arith.constant 0 : i32
    %c0_i32_1 = arith.constant 0 : i32
    return %c0_i32, %c0_i32_0 : i32, i32
  }
  func.func @transform_17(%arg0: i32) -> (i32, i32) {
    %c0_i32 = arith.constant 0 : i32
    %c0_i32_0 = arith.constant 0 : i32
    %c0_i32_1 = arith.constant 0 : i32
    return %c0_i32, %c0_i32_0 : i32, i32
  }
  func.func @transform_18(%arg0: i32) -> (i32, i32) {
    %c0_i32 = arith.constant 0 : i32
    %c0_i32_0 = arith.constant 0 : i32
    %c0_i32_1 = arith.constant 0 : i32
    return %c0_i32, %c0_i32_0 : i32, i32
  }
}

module attributes {stable_mosaic.version = 11 : i64} {
  func.func @fc6_kernel(%arg0: i32, %arg1: memref<128x256xbf16, #tpu.memory_space<vmem>>, %arg2: memref<256x512xbf16, #tpu.memory_space<vmem>>, %arg3: memref<1x512xf32, #tpu.memory_space<vmem>>, %arg4: memref<128x512xbf16, #tpu.memory_space<vmem>>) attributes {dimension_semantics = [#tpu.dimension_semantics<parallel>], iteration_bounds = array<i64: 2>, scalar_prefetch = 0 : i64, scratch_operands = 0 : i64, tpu.core_type = #tpu.core_type<tc>, window_params = [{pipeline_mode = #tpu.pipeline_mode<synchronous>, transform_indices = @transform_0, window_bounds = array<i64: 128, 256>}, {transform_indices = @transform_1, window_bounds = array<i64: 256, 512>}, {transform_indices = @transform_2, window_bounds = array<i64: 1, 512>}, {transform_indices = @transform_3, window_bounds = array<i64: 128, 512>}]} {
    %c0 = arith.constant 0 : index
    %c0_0 = arith.constant 0 : index
    %0 = vector.load %arg1[%c0, %c0_0] : memref<128x256xbf16, #tpu.memory_space<vmem>>, vector<128x256xbf16>
    %c0_1 = arith.constant 0 : index
    %c0_2 = arith.constant 0 : index
    %1 = vector.load %arg2[%c0_1, %c0_2] : memref<256x512xbf16, #tpu.memory_space<vmem>>, vector<256x512xbf16>
    %cst = arith.constant dense<0.000000e+00> : vector<128x512xf32>
    %2 = tpu.matmul %0, %1, %cst {dimension_numbers = #tpu.dot_dimension_numbers<[1], [0], [0], [1], [0, 0, 1, 1], [], []>} : vector<128x256xbf16>, vector<256x512xbf16>, vector<128x512xf32> -> vector<128x512xf32>
    %c0_3 = arith.constant 0 : index
    %c0_4 = arith.constant 0 : index
    %3 = vector.load %arg3[%c0_3, %c0_4] : memref<1x512xf32, #tpu.memory_space<vmem>>, vector<1x512xf32>
    %4 = vector.broadcast %3 : vector<1x512xf32> to vector<128x512xf32>
    %5 = arith.addf %2, %4 : vector<128x512xf32>
    %6 = arith.negf %5 : vector<128x512xf32>
    %7 = math.exp %6 : vector<128x512xf32>
    %cst_5 = arith.constant 1.000000e+00 : f32
    %8 = vector.broadcast %cst_5 : f32 to vector<128x512xf32>
    %9 = arith.addf %8, %7 : vector<128x512xf32>
    %10 = arith.divf %8, %9 : vector<128x512xf32>
    %11 = arith.truncf %10 : vector<128x512xf32> to vector<128x512xbf16>
    %c0_6 = arith.constant 0 : index
    %c0_7 = arith.constant 0 : index
    %12 = vector.load %arg4[%c0_6, %c0_7] : memref<128x512xbf16, #tpu.memory_space<vmem>>, vector<128x512xbf16>
    tpu.vector_store %arg4[%c0_6, %c0_7], %11 {strides = array<i32>} : memref<128x512xbf16, #tpu.memory_space<vmem>>, vector<128x512xbf16>,
    return
  }
  func.func @transform_0(%arg0: i32) -> (i32, i32) {
    %c0_i32 = arith.constant 0 : i32
    %c0_i32_0 = arith.constant 0 : i32
    %c0_i32_1 = arith.constant 0 : i32
    return %c0_i32, %c0_i32_0 : i32, i32
  }
  func.func @transform_1(%arg0: i32) -> (i32, i32) {
    %c0_i32 = arith.constant 0 : i32
    %c0_i32_0 = arith.constant 0 : i32
    return %c0_i32, %arg0 : i32, i32
  }
  func.func @transform_2(%arg0: i32) -> (i32, i32) {
    %c0_i32 = arith.constant 0 : i32
    %c0_i32_0 = arith.constant 0 : i32
    return %c0_i32, %arg0 : i32, i32
  }
  func.func @transform_3(%arg0: i32) -> (i32, i32) {
    %c0_i32 = arith.constant 0 : i32
    %c0_i32_0 = arith.constant 0 : i32
    return %c0_i32, %arg0 : i32, i32
  }
}

</mosaic_0001>

<llo_original>
// kernel: vae_forward.3
$region0: #{vae_forward.3}
  #allocation0 [shape = 'u32[]', space=smem, size = 0x4, offset = 0x4, fixed_abs, tag = 'smem constant byte address 0x4 - core index']
  #allocation1 [shape = 'u32[144,128]{1,0:T(1,128)}', space=vmem, size = 0x12000, scoped, tag = 'internal scratch']
  %s0 = inlined_call_operand.hbm [shape: f32[128,1024], index: 0, kind: input, shape index: {}]
  %s1 = inlined_call_operand.hbm [shape: bf16[1024,256], index: 1, kind: input, shape index: {}]
  %s2 = inlined_call_operand.vmem [shape: f32[128,256], index: 2, kind: output, shape index: {}]
  %s3 = sld [smem:[#allocation0]]
  $region53: #{vae_forward.3} parent=0
    _
  %s5 = ssub.s32 1, %s3
  %s6 = scalar_select 0, %s5, %s3
  $region1: #{vae_forward.3} parent=0
    #allocation2 [shape = 'u8[524288]{0}', space=vmem, size = 0x80000, scoped, tag = 'input window, operand 0']
    #allocation3 [shape = 's32[2]{0}', space=sflag, size = 0x8, scoped, tag = 'scoped memory for vae_forward.3']
    #allocation4 [shape = 'u8[524288]{0}', space=vmem, size = 0x80000, scoped, tag = 'input window, operand 1']
    #allocation5 [shape = 's32[2]{0}', space=sflag, size = 0x8, scoped, tag = 'scoped memory for vae_forward.3']
    %7 = vsyncpa [#allocation3], 0
    %s8 = scalar_lea.sflag [#allocation3], 1
    %9 = vsyncpa %s8, 0
    %10 = vsyncpa [#allocation5], 0
    %s11 = scalar_lea.sflag [#allocation5], 1
    %12 = vsyncpa %s11, 0
    loop: start=0, step=1, limit=4
    $region2: #{vae_forward.3} parent=1 // loop_pre_header
      _
    $region3: #{vae_forward.3} parent=1 // loop_header
      %s14 = sphi 0, %s18
      %p15 = scmp.ge.s32.totalorder %s14, 4
      %s21 = sphi 0, %s33
      %s22 = sphi 0, %s29
      %s23 = sphi 0, %s21
      %s24 = sphi 0, %s22
      %s25 = sphi 0, %s23
      %s26 = sphi 0, %s24
      %s36 = sphi 0, %s38
      %s39 = sphi 0, %s36
      %s40 = sphi 0, %s39
      %s56 = sphi 0, %s40
      %s64 = sphi 0, %s66
      %s67 = sphi 0, %s64
      %s68 = sphi 0, %s67
      %s84 = sphi 0, %s68
      %s90 = sphi 0, %s92
      %s93 = sphi 0, %s90
      %s94 = sphi 0, %s93
      %s110 = sphi 0, %s94
    $region4: #{vae_forward.3} parent=1 // loop_header_branch
      %17 = sbr.rel (%p15) target = $region8
    $region5: #{vae_forward.3} parent=1 // loop_body
      %s19 = ssub.s32 %s14, 1
      %s20 = ssub.s32 %s14, 2
      %s27 = sadd.s32 1, %s22
      %p28 = scmp.ge.s32.totalorder %s27, 2
      %s29 = scalar_select %p28, 0, %s27
      %s30 = sadd.s32 1, %s21
      %s31 = scalar_select %p28, %s30, %s21
      %p32 = scmp.ge.s32.totalorder %s31, 1
      %s33 = scalar_select %p32, 0, %s31
      %s34 = ssub.s32 %s22, %s29
      %p35 = scmp.eq.s32.totalorder %s34, 0
      %s37 = sadd.s32 %s36, 1
      %s38 = scalar_select %p35, %s36, %s37
      %p41 = pneg %p35
      %p42 = scmp.eq.s32.totalorder %s14, 1
      %p43 = por %p41, %p42
      %p44 = scmp.ne.s32.totalorder %s36, %s39
      %p45 = scmp.eq.s32.totalorder %s14, 0
      %p46 = por %p44, %p45
      %p47 = scmp.ne.s32.totalorder %s36, %s39
      %p48 = scmp.eq.s32.totalorder %s19, 1
      %p49 = por %p47, %p48
      %p50 = scmp.ne.s32.totalorder %s39, %s40
      %p51 = scmp.eq.s32.totalorder %s19, 0
      %p52 = por %p50, %p51
      %p53 = scmp.ne.s32.totalorder %s39, %s40
      %p54 = scmp.eq.s32.totalorder %s20, 1
      %p55 = por %p53, %p54
      %p57 = scmp.ne.s32.totalorder %s40, %s56
      %p58 = scmp.eq.s32.totalorder %s20, 0
      %p59 = por %p57, %p58
      %s60 = ssub.s32 %s22, %s29
      %s61 = ssub.s32 %s21, %s33
      %s62 = sor.u32 %s60, %s61
      %p63 = scmp.eq.s32.totalorder %s62, 0
      %s65 = sadd.s32 %s64, 1
      %s66 = scalar_select %p63, %s64, %s65
      %p69 = pneg %p63
      %p70 = scmp.eq.s32.totalorder %s14, 1
      %p71 = por %p69, %p70
      %p72 = scmp.ne.s32.totalorder %s64, %s67
      %p73 = scmp.eq.s32.totalorder %s14, 0
      %p74 = por %p72, %p73
      %p75 = scmp.ne.s32.totalorder %s64, %s67
      %p76 = scmp.eq.s32.totalorder %s19, 1
      %p77 = por %p75, %p76
      %p78 = scmp.ne.s32.totalorder %s67, %s68
      %p79 = scmp.eq.s32.totalorder %s19, 0
      %p80 = por %p78, %p79
      %p81 = scmp.ne.s32.totalorder %s67, %s68
      %p82 = scmp.eq.s32.totalorder %s20, 1
      %p83 = por %p81, %p82
      %p85 = scmp.ne.s32.totalorder %s68, %s84
      %p86 = scmp.eq.s32.totalorder %s20, 0
      %p87 = por %p85, %p86
      %s88 = ssub.s32 %s21, %s33
      %p89 = scmp.eq.s32.totalorder %s88, 0
      %s91 = sadd.s32 %s90, 1
      %s92 = scalar_select %p89, %s90, %s91
      %p95 = pneg %p89
      %p96 = scmp.eq.s32.totalorder %s14, 1
      %p97 = por %p95, %p96
      %p98 = scmp.ne.s32.totalorder %s90, %s93
      %p99 = scmp.eq.s32.totalorder %s14, 0
      %p100 = por %p98, %p99
      %p101 = scmp.ne.s32.totalorder %s90, %s93
      %p102 = scmp.eq.s32.totalorder %s19, 1
      %p103 = por %p101, %p102
      %p104 = scmp.ne.s32.totalorder %s93, %s94
      %p105 = scmp.eq.s32.totalorder %s19, 0
      %p106 = por %p104, %p105
      %p107 = scmp.ne.s32.totalorder %s93, %s94
      %p108 = scmp.eq.s32.totalorder %s20, 1
      %p109 = por %p107, %p108
      %p111 = scmp.ne.s32.totalorder %s94, %s110
      %p112 = scmp.eq.s32.totalorder %s20, 0
      %p113 = por %p111, %p112
      %p114 = scmp.le.s32.totalorder 1, %s14
      %p115 = scmp.lt.s32.totalorder %s14, 3
      %p116 = pnand %p114, %p115
      %p117 = pneg %p116
      // Predicated region
      $region9: #{vae_forward.3} parent=5 // pred_check
        _
      $region10: #{vae_forward.3} parent=5 // pred_check_branch
        %119 = sbr.rel (%p116) target = $region12
      $region11: #{vae_forward.3} parent=5 // pred_region
        %s120 = ssub.s32 %s14, 1
      $region12: #{vae_forward.3} parent=5 // pred_fallthru
        _
      %p121 = scmp.lt.s32.totalorder %s14, 2
      // Predicated region
      $region13: #{vae_forward.3} parent=5 // pred_check
        %p122 = pneg %p121
      $region14: #{vae_forward.3} parent=5 // pred_check_branch
        %124 = sbr.rel (%p122) target = $region16
      $region15: #{vae_forward.3} parent=5 // pred_region
        // Predicated region
        $region17: #{vae_forward.3} parent=15 // pred_check
          %p125 = pneg %p46
        $region18: #{vae_forward.3} parent=15 // pred_check_branch
          %127 = sbr.rel (%p125) target = $region20
        $region19: #{vae_forward.3} parent=15 // pred_region
          %s128 = sand.u32 %s36, 1
          %s129 = scalar_lea.sflag [#allocation3], %s128
          %s130 = sand.u32 %s36, 1
          %s131 = smul.addr %s130, 512
          %s132 = scalar_lea.vmem [#allocation2], %s131
          %s133 = smul.u32 4, %s22
          %s135 = ssub.s32 8192, 8192
          %136 = vsyncadd %s129, %s135
          %s137 = smul.addr %s133, 128
          %s138 = scalar_lea.hbm %s0, %s137
          %s139 = sshll.u32 %s132, 4
          %s140 = int_to_ptr.vmem [resolvable:$true] %s139
          %145 = dma.hbm_to_vmem [thread:$0]  %s138, 8192, %s140, %s129, 1024, 512, 32
        $region20: #{vae_forward.3} parent=15 // pred_fallthru
          _
        // Predicated region
        $region21: #{vae_forward.3} parent=15 // pred_check
          %p146 = pneg %p74
        $region22: #{vae_forward.3} parent=15 // pred_check_branch
          %148 = sbr.rel (%p146) target = $region24
        $region23: #{vae_forward.3} parent=15 // pred_region
          %s149 = sand.u32 %s64, 1
          %s150 = scalar_lea.sflag [#allocation5], %s149
          %s151 = sand.u32 %s64, 1
          %s152 = smul.addr %s151, 512
          %s153 = scalar_lea.vmem [#allocation4], %s152
          %s154 = smul.u32 64, %s22
          %s155 = smul.u32 2, %s21
          %s157 = ssub.s32 8192, 8192
          %158 = vsyncadd %s150, %s157
          %s159 = smul.addr %s154, 2
          %s160 = sadd.s32 %s155, %s159
          %s161 = smul.addr %s160, 64
          %s162 = scalar_lea.hbm %s1, %s161
          %s163 = sshll.u32 %s153, 4
          %s164 = int_to_ptr.vmem [resolvable:$true] %s163
          %169 = dma.hbm_to_vmem [thread:$0]  %s162, 8192, %s164, %s150, 128, 128, 8
        $region24: #{vae_forward.3} parent=15 // pred_fallthru
          _
      $region16: #{vae_forward.3} parent=5 // pred_fallthru
        _
      %p170 = scmp.le.s32.totalorder 1, %s14
      %p171 = scmp.lt.s32.totalorder %s14, 3
      %p172 = pnand %p170, %p171
      %p173 = pneg %p172
      // Predicated region
      $region25: #{vae_forward.3} parent=5 // pred_check
        _
      $region26: #{vae_forward.3} parent=5 // pred_check_branch
        %175 = sbr.rel (%p172) target = $region28
      $region27: #{vae_forward.3} parent=5 // pred_region
        %s176 = ssub.s32 %s14, 1
        %s177 = sand.u32 %s39, 1
        %s178 = scalar_lea.sflag [#allocation3], %s177
        %s179 = sand.u32 %s39, 1
        %s180 = smul.addr %s179, 512
        %s181 = scalar_lea.vmem [#allocation2], %s180
        // Predicated region
        $region29: #{vae_forward.3} parent=27 // pred_check
          %p182 = pneg %p52
        $region30: #{vae_forward.3} parent=27 // pred_check_branch
          %184 = sbr.rel (%p182) target = $region32
        $region31: #{vae_forward.3} parent=27 // pred_region
          %185 = dma.done %s178, 8192
        $region32: #{vae_forward.3} parent=27 // pred_fallthru
          _
        %s186 = sand.u32 %s67, 1
        %s187 = scalar_lea.sflag [#allocation5], %s186
        %s188 = sand.u32 %s67, 1
        %s189 = smul.addr %s188, 512
        %s190 = scalar_lea.vmem [#allocation4], %s189
        // Predicated region
        $region33: #{vae_forward.3} parent=27 // pred_check
          %p191 = pneg %p80
        $region34: #{vae_forward.3} parent=27 // pred_check_branch
          %193 = sbr.rel (%p191) target = $region36
        $region35: #{vae_forward.3} parent=27 // pred_region
          %194 = dma.done %s187, 8192
        $region36: #{vae_forward.3} parent=27 // pred_fallthru
          _
        %s195 = sand.u32 %s39, 1
        %s196 = scalar_lea.sflag [#allocation3], %s195
        %s197 = sand.u32 %s39, 1
        %s198 = smul.addr %s197, 512
        %s199 = scalar_lea.vmem [#allocation2], %s198
        %p200 = pneg %p52
        %p201 = pneg %p49
        %s202 = sand.u32 %s67, 1
        %s203 = scalar_lea.sflag [#allocation5], %s202
        %s204 = sand.u32 %s67, 1
        %s205 = smul.addr %s204, 512
        %s206 = scalar_lea.vmem [#allocation4], %s205
        %p207 = pneg %p80
        %p208 = pneg %p77
        %p209 = pneg %p106
        %p210 = pneg %p103
        %s211 = smul.u32 2, %s23
        %p212 = scmp.lt.s32.totalorder %s211, 1
        %s213 = scalar_select %p212, %s211, 1
        %s214 = smul.addr %s213, 8
        %s215 = scalar_lea.vmem %s2, %s214
        %s216 = smul.u32 4, %s24
        %s217 = smul.u32 64, %s24
        %s218 = smul.u32 2, %s23
        %s219 = smul.u32 2, %s23
        %p220 = scmp.lt.s32.totalorder %s219, 1
        %s221 = scalar_select %p220, %s219, 1
        %s222 = smul.addr %s221, 8
        %s223 = scalar_lea.vmem %s2, %s222
        %s224 = smul.u32 2, %s23
        %p225 = scmp.eq.s32.totalorder %s24, 0
        // Predicated region
        $region37: #{vae_forward.3} parent=27 // pred_check
          %p226 = pneg %p225
        $region38: #{vae_forward.3} parent=27 // pred_check_branch
          %228 = sbr.rel (%p226) target = $region40
        $region39: #{vae_forward.3} parent=27 // pred_region
          %229 = vst [vmem:[%s223] sm:$0xff] 0.0
          %230 = vst [vmem:[%s223 + $0x8] sm:$0xff] 0.0
          %231 = vst [vmem:[%s223 + $0x10] sm:$0xff] 0.0
          %232 = vst [vmem:[%s223 + $0x18] sm:$0xff] 0.0
          %233 = vst [vmem:[%s223 + $0x20] sm:$0xff] 0.0
          %234 = vst [vmem:[%s223 + $0x28] sm:$0xff] 0.0
          %235 = vst [vmem:[%s223 + $0x30] sm:$0xff] 0.0
          %236 = vst [vmem:[%s223 + $0x38] sm:$0xff] 0.0
          %237 = vst [vmem:[%s223 + $0x40] sm:$0xff] 0.0
          %238 = vst [vmem:[%s223 + $0x48] sm:$0xff] 0.0
          %239 = vst [vmem:[%s223 + $0x50] sm:$0xff] 0.0
          %240 = vst [vmem:[%s223 + $0x58] sm:$0xff] 0.0
          %241 = vst [vmem:[%s223 + $0x60] sm:$0xff] 0.0
          %242 = vst [vmem:[%s223 + $0x68] sm:$0xff] 0.0
          %243 = vst [vmem:[%s223 + $0x70] sm:$0xff] 0.0
          %244 = vst [vmem:[%s223 + $0x78] sm:$0xff] 0.0
          %245 = vst [vmem:[%s223 + $0x80] sm:$0xff] 0.0
          %246 = vst [vmem:[%s223 + $0x88] sm:$0xff] 0.0
          %247 = vst [vmem:[%s223 + $0x90] sm:$0xff] 0.0
          %248 = vst [vmem:[%s223 + $0x98] sm:$0xff] 0.0
          %249 = vst [vmem:[%s223 + $0xa0] sm:$0xff] 0.0
          %250 = vst [vmem:[%s223 + $0xa8] sm:$0xff] 0.0
          %251 = vst [vmem:[%s223 + $0xb0] sm:$0xff] 0.0
          %252 = vst [vmem:[%s223 + $0xb8] sm:$0xff] 0.0
          %253 = vst [vmem:[%s223 + $0xc0] sm:$0xff] 0.0
          %254 = vst [vmem:[%s223 + $0xc8] sm:$0xff] 0.0
          %255 = vst [vmem:[%s223 + $0xd0] sm:$0xff] 0.0
          %256 = vst [vmem:[%s223 + $0xd8] sm:$0xff] 0.0
          %257 = vst [vmem:[%s223 + $0xe0] sm:$0xff] 0.0
          %258 = vst [vmem:[%s223 + $0xe8] sm:$0xff] 0.0
          %259 = vst [vmem:[%s223 + $0xf0] sm:$0xff] 0.0
          %260 = vst [vmem:[%s223 + $0xf8] sm:$0xff] 0.0
        $region40: #{vae_forward.3} parent=27 // pred_fallthru
          _
        %v261 = vld [vmem:[%s223] sm:$0xff]
        %v262 = vld [vmem:[%s223 + $0x8] sm:$0xff]
        %v263 = vld [vmem:[%s223 + $0x10] sm:$0xff]
        %v264 = vld [vmem:[%s223 + $0x18] sm:$0xff]
        %v265 = vld [vmem:[%s223 + $0x20] sm:$0xff]
        %v266 = vld [vmem:[%s223 + $0x28] sm:$0xff]
        %v267 = vld [vmem:[%s223 + $0x30] sm:$0xff]
        %v268 = vld [vmem:[%s223 + $0x38] sm:$0xff]
        %v269 = vld [vmem:[%s223 + $0x40] sm:$0xff]
        %v270 = vld [vmem:[%s223 + $0x48] sm:$0xff]
        %v271 = vld [vmem:[%s223 + $0x50] sm:$0xff]
        %v272 = vld [vmem:[%s223 + $0x58] sm:$0xff]
        %v273 = vld [vmem:[%s223 + $0x60] sm:$0xff]
        %v274 = vld [vmem:[%s223 + $0x68] sm:$0xff]
        %v275 = vld [vmem:[%s223 + $0x70] sm:$0xff]
        %v276 = vld [vmem:[%s223 + $0x78] sm:$0xff]
        %v277 = vld [vmem:[%s223 + $0x80] sm:$0xff]
        %v278 = vld [vmem:[%s223 + $0x88] sm:$0xff]
        %v279 = vld [vmem:[%s223 + $0x90] sm:$0xff]
        %v280 = vld [vmem:[%s223 + $0x98] sm:$0xff]
        %v281 = vld [vmem:[%s223 + $0xa0] sm:$0xff]
        %v282 = vld [vmem:[%s223 + $0xa8] sm:$0xff]
        %v283 = vld [vmem:[%s223 + $0xb0] sm:$0xff]
        %v284 = vld [vmem:[%s223 + $0xb8] sm:$0xff]
        %v285 = vld [vmem:[%s223 + $0xc0] sm:$0xff]
        %v286 = vld [vmem:[%s223 + $0xc8] sm:$0xff]
        %v287 = vld [vmem:[%s223 + $0xd0] sm:$0xff]
        %v288 = vld [vmem:[%s223 + $0xd8] sm:$0xff]
        %v289 = vld [vmem:[%s223 + $0xe0] sm:$0xff]
        %v290 = vld [vmem:[%s223 + $0xe8] sm:$0xff]
        %v291 = vld [vmem:[%s223 + $0xf0] sm:$0xff]
        %v292 = vld [vmem:[%s223 + $0xf8] sm:$0xff]
        %v293 = vld [vmem:[%s181] sm:$0xff]
        %v294 = vld [vmem:[%s181 + $0x8] sm:$0xff]
        %v295 = vld [vmem:[%s181 + $0x10] sm:$0xff]
        %v296 = vld [vmem:[%s181 + $0x18] sm:$0xff]
        %v297 = vld [vmem:[%s181 + $0x20] sm:$0xff]
        %v298 = vld [vmem:[%s181 + $0x28] sm:$0xff]
        %v299 = vld [vmem:[%s181 + $0x30] sm:$0xff]
        %v300 = vld [vmem:[%s181 + $0x38] sm:$0xff]
        %v301 = vld [vmem:[%s181 + $0x40] sm:$0xff]
        %v302 = vld [vmem:[%s181 + $0x48] sm:$0xff]
        %v303 = vld [vmem:[%s181 + $0x50] sm:$0xff]
        %v304 = vld [vmem:[%s181 + $0x58] sm:$0xff]
        %v305 = vld [vmem:[%s181 + $0x60] sm:$0xff]
        %v306 = vld [vmem:[%s181 + $0x68] sm:$0xff]
        %v307 = vld [vmem:[%s181 + $0x70] sm:$0xff]
        %v308 = vld [vmem:[%s181 + $0x78] sm:$0xff]
        %v309 = vld [vmem:[%s181 + $0x80] sm:$0xff]
        %v310 = vld [vmem:[%s181 + $0x88] sm:$0xff]
        %v311 = vld [vmem:[%s181 + $0x90] sm:$0xff]
        %v312 = vld [vmem:[%s181 + $0x98] sm:$0xff]
        %v313 = vld [vmem:[%s181 + $0xa0] sm:$0xff]
        %v314 = vld [vmem:[%s181 + $0xa8] sm:$0xff]
        %v315 = vld [vmem:[%s181 + $0xb0] sm:$0xff]
        %v316 = vld [vmem:[%s181 + $0xb8] sm:$0xff]
        %v317 = vld [vmem:[%s181 + $0xc0] sm:$0xff]
        %v318 = vld [vmem:[%s181 + $0xc8] sm:$0xff]
        %v319 = vld [vmem:[%s181 + $0xd0] sm:$0xff]
        %v320 = vld [vmem:[%s181 + $0xd8] sm:$0xff]
        %v321 = vld [vmem:[%s181 + $0xe0] sm:$0xff]
        %v322 = vld [vmem:[%s181 + $0xe8] sm:$0xff]
        %v323 = vld [vmem:[%s181 + $0xf0] sm:$0xff]
        %v324 = vld [vmem:[%s181 + $0xf8] sm:$0xff]
        %v325 = vld [vmem:[%s181 + $0x100] sm:$0xff]
        %v326 = vld [vmem:[%s181 + $0x108] sm:$0xff]
        %v327 = vld [vmem:[%s181 + $0x110] sm:$0xff]
        %v328 = vld [vmem:[%s181 + $0x118] sm:$0xff]
        %v329 = vld [vmem:[%s181 + $0x120] sm:$0xff]
        %v330 = vld [vmem:[%s181 + $0x128] sm:$0xff]
        %v331 = vld [vmem:[%s181 + $0x130] sm:$0xff]
        %v332 = vld [vmem:[%s181 + $0x138] sm:$0xff]
        %v333 = vld [vmem:[%s181 + $0x140] sm:$0xff]
        %v334 = vld [vmem:[%s181 + $0x148] sm:$0xff]
        %v335 = vld [vmem:[%s181 + $0x150] sm:$0xff]
        %v336 = vld [vmem:[%s181 + $0x158] sm:$0xff]
        %v337 = vld [vmem:[%s181 + $0x160] sm:$0xff]
        %v338 = vld [vmem:[%s181 + $0x168] sm:$0xff]
        %v339 = vld [vmem:[%s181 + $0x170] sm:$0xff]
        %v340 = vld [vmem:[%s181 + $0x178] sm:$0xff]
        %v341 = vld [vmem:[%s181 + $0x180] sm:$0xff]
        %v342 = vld [vmem:[%s181 + $0x188] sm:$0xff]
        %v343 = vld [vmem:[%s181 + $0x190] sm:$0xff]
        %v344 = vld [vmem:[%s181 + $0x198] sm:$0xff]
        %v345 = vld [vmem:[%s181 + $0x1a0] sm:$0xff]
        %v346 = vld [vmem:[%s181 + $0x1a8] sm:$0xff]
        %v347 = vld [vmem:[%s181 + $0x1b0] sm:$0xff]
        %v348 = vld [vmem:[%s181 + $0x1b8] sm:$0xff]
        %v349 = vld [vmem:[%s181 + $0x1c0] sm:$0xff]
        %v350 = vld [vmem:[%s181 + $0x1c8] sm:$0xff]
        %v351 = vld [vmem:[%s181 + $0x1d0] sm:$0xff]
        %v352 = vld [vmem:[%s181 + $0x1d8] sm:$0xff]
        %v353 = vld [vmem:[%s181 + $0x1e0] sm:$0xff]
        %v354 = vld [vmem:[%s181 + $0x1e8] sm:$0xff]
        %v355 = vld [vmem:[%s181 + $0x1f0] sm:$0xff]
        %v356 = vld [vmem:[%s181 + $0x1f8] sm:$0xff]
        %v357 = vpack.c.bf16 %v297, %v293
        %v358 = vpack.c.bf16 %v298, %v294
        %v359 = vpack.c.bf16 %v299, %v295
        %v360 = vpack.c.bf16 %v300, %v296
        %v361 = vpack.c.bf16 %v305, %v301
        %v362 = vpack.c.bf16 %v306, %v302
        %v363 = vpack.c.bf16 %v307, %v303
        %v364 = vpack.c.bf16 %v308, %v304
        %v365 = vpack.c.bf16 %v313, %v309
        %v366 = vpack.c.bf16 %v314, %v310
        %v367 = vpack.c.bf16 %v315, %v311
        %v368 = vpack.c.bf16 %v316, %v312
        %v369 = vpack.c.bf16 %v321, %v317
        %v370 = vpack.c.bf16 %v322, %v318
        %v371 = vpack.c.bf16 %v323, %v319
        %v372 = vpack.c.bf16 %v324, %v320
        %v373 = vpack.c.bf16 %v329, %v325
        %v374 = vpack.c.bf16 %v330, %v326
        %v375 = vpack.c.bf16 %v331, %v327
        %v376 = vpack.c.bf16 %v332, %v328
        %v377 = vpack.c.bf16 %v337, %v333
        %v378 = vpack.c.bf16 %v338, %v334
        %v379 = vpack.c.bf16 %v339, %v335
        %v380 = vpack.c.bf16 %v340, %v336
        %v381 = vpack.c.bf16 %v345, %v341
        %v382 = vpack.c.bf16 %v346, %v342
        %v383 = vpack.c.bf16 %v347, %v343
        %v384 = vpack.c.bf16 %v348, %v344
        %v385 = vpack.c.bf16 %v353, %v349
        %v386 = vpack.c.bf16 %v354, %v350
        %v387 = vpack.c.bf16 %v355, %v351
        %v388 = vpack.c.bf16 %v356, %v352
        %v389 = vld [vmem:[%s190] sm:$0xff]
        %v390 = vld [vmem:[%s190 + $0x8] sm:$0xff]
        %v391 = vld [vmem:[%s190 + $0x10] sm:$0xff]
        %v392 = vld [vmem:[%s190 + $0x18] sm:$0xff]
        %v393 = vld [vmem:[%s190 + $0x20] sm:$0xff]
        %v394 = vld [vmem:[%s190 + $0x28] sm:$0xff]
        %v395 = vld [vmem:[%s190 + $0x30] sm:$0xff]
        %v396 = vld [vmem:[%s190 + $0x38] sm:$0xff]
        %v397 = vld [vmem:[%s190 + $0x40] sm:$0xff]
        %v398 = vld [vmem:[%s190 + $0x48] sm:$0xff]
        %v399 = vld [vmem:[%s190 + $0x50] sm:$0xff]
        %v400 = vld [vmem:[%s190 + $0x58] sm:$0xff]
        %v401 = vld [vmem:[%s190 + $0x60] sm:$0xff]
        %v402 = vld [vmem:[%s190 + $0x68] sm:$0xff]
        %v403 = vld [vmem:[%s190 + $0x70] sm:$0xff]
        %v404 = vld [vmem:[%s190 + $0x78] sm:$0xff]
        %v405 = vld [vmem:[%s190 + $0x80] sm:$0xff]
        %v406 = vld [vmem:[%s190 + $0x88] sm:$0xff]
        %v407 = vld [vmem:[%s190 + $0x90] sm:$0xff]
        %v408 = vld [vmem:[%s190 + $0x98] sm:$0xff]
        %v409 = vld [vmem:[%s190 + $0xa0] sm:$0xff]
        %v410 = vld [vmem:[%s190 + $0xa8] sm:$0xff]
        %v411 = vld [vmem:[%s190 + $0xb0] sm:$0xff]
        %v412 = vld [vmem:[%s190 + $0xb8] sm:$0xff]
        %v413 = vld [vmem:[%s190 + $0xc0] sm:$0xff]
        %v414 = vld [vmem:[%s190 + $0xc8] sm:$0xff]
        %v415 = vld [vmem:[%s190 + $0xd0] sm:$0xff]
        %v416 = vld [vmem:[%s190 + $0xd8] sm:$0xff]
        %v417 = vld [vmem:[%s190 + $0xe0] sm:$0xff]
        %v418 = vld [vmem:[%s190 + $0xe8] sm:$0xff]
        %v419 = vld [vmem:[%s190 + $0xf0] sm:$0xff]
        %v420 = vld [vmem:[%s190 + $0xf8] sm:$0xff]
        %v421 = vld [vmem:[%s190 + $0x100] sm:$0xff]
        %v422 = vld [vmem:[%s190 + $0x108] sm:$0xff]
        %v423 = vld [vmem:[%s190 + $0x110] sm:$0xff]
        %v424 = vld [vmem:[%s190 + $0x118] sm:$0xff]
        %v425 = vld [vmem:[%s190 + $0x120] sm:$0xff]
        %v426 = vld [vmem:[%s190 + $0x128] sm:$0xff]
        %v427 = vld [vmem:[%s190 + $0x130] sm:$0xff]
        %v428 = vld [vmem:[%s190 + $0x138] sm:$0xff]
        %v429 = vld [vmem:[%s190 + $0x140] sm:$0xff]
        %v430 = vld [vmem:[%s190 + $0x148] sm:$0xff]
        %v431 = vld [vmem:[%s190 + $0x150] sm:$0xff]
        %v432 = vld [vmem:[%s190 + $0x158] sm:$0xff]
        %v433 = vld [vmem:[%s190 + $0x160] sm:$0xff]
        %v434 = vld [vmem:[%s190 + $0x168] sm:$0xff]
        %v435 = vld [vmem:[%s190 + $0x170] sm:$0xff]
        %v436 = vld [vmem:[%s190 + $0x178] sm:$0xff]
        %v437 = vld [vmem:[%s190 + $0x180] sm:$0xff]
        %v438 = vld [vmem:[%s190 + $0x188] sm:$0xff]
        %v439 = vld [vmem:[%s190 + $0x190] sm:$0xff]
        %v440 = vld [vmem:[%s190 + $0x198] sm:$0xff]
        %v441 = vld [vmem:[%s190 + $0x1a0] sm:$0xff]
        %v442 = vld [vmem:[%s190 + $0x1a8] sm:$0xff]
        %v443 = vld [vmem:[%s190 + $0x1b0] sm:$0xff]
        %v444 = vld [vmem:[%s190 + $0x1b8] sm:$0xff]
        %v445 = vld [vmem:[%s190 + $0x1c0] sm:$0xff]
        %v446 = vld [vmem:[%s190 + $0x1c8] sm:$0xff]
        %v447 = vld [vmem:[%s190 + $0x1d0] sm:$0xff]
        %v448 = vld [vmem:[%s190 + $0x1d8] sm:$0xff]
        %v449 = vld [vmem:[%s190 + $0x1e0] sm:$0xff]
        %v450 = vld [vmem:[%s190 + $0x1e8] sm:$0xff]
        %v451 = vld [vmem:[%s190 + $0x1f0] sm:$0xff]
        %v452 = vld [vmem:[%s190 + $0x1f8] sm:$0xff]
        %v517 = vunpack.c.l.b16 %v389
        %v518 = vunpack.c.h.b16 %v389
        %v519 = vunpack.c.l.b16 %v390
        %v520 = vunpack.c.h.b16 %v390
        %v521 = vunpack.c.l.b16 %v391
        %v522 = vunpack.c.h.b16 %v391
        %v523 = vunpack.c.l.b16 %v392
        %v524 = vunpack.c.h.b16 %v392
        %v525 = vunpack.c.l.b16 %v393
        %v526 = vunpack.c.h.b16 %v393
        %v527 = vunpack.c.l.b16 %v394
        %v528 = vunpack.c.h.b16 %v394
        %v529 = vunpack.c.l.b16 %v395
        %v530 = vunpack.c.h.b16 %v395
        %v531 = vunpack.c.l.b16 %v396
        %v532 = vunpack.c.h.b16 %v396
        %v533 = vunpack.c.l.b16 %v397
        %v534 = vunpack.c.h.b16 %v397
        %v535 = vunpack.c.l.b16 %v398
        %v536 = vunpack.c.h.b16 %v398
        %v537 = vunpack.c.l.b16 %v399
        %v538 = vunpack.c.h.b16 %v399
        %v539 = vunpack.c.l.b16 %v400
        %v540 = vunpack.c.h.b16 %v400
        %v541 = vunpack.c.l.b16 %v401
        %v542 = vunpack.c.h.b16 %v401
        %v543 = vunpack.c.l.b16 %v402
        %v544 = vunpack.c.h.b16 %v402
        %v545 = vunpack.c.l.b16 %v403
        %v546 = vunpack.c.h.b16 %v403
        %v547 = vunpack.c.l.b16 %v404
        %v548 = vunpack.c.h.b16 %v404
        %v549 = vunpack.c.l.b16 %v405
        %v550 = vunpack.c.h.b16 %v405
        %v551 = vunpack.c.l.b16 %v406
        %v552 = vunpack.c.h.b16 %v406
        %v553 = vunpack.c.l.b16 %v407
        %v554 = vunpack.c.h.b16 %v407
        %v555 = vunpack.c.l.b16 %v408
        %v556 = vunpack.c.h.b16 %v408
        %v557 = vunpack.c.l.b16 %v409
        %v558 = vunpack.c.h.b16 %v409
        %v559 = vunpack.c.l.b16 %v410
        %v560 = vunpack.c.h.b16 %v410
        %v561 = vunpack.c.l.b16 %v411
        %v562 = vunpack.c.h.b16 %v411
        %v563 = vunpack.c.l.b16 %v412
        %v564 = vunpack.c.h.b16 %v412
        %v565 = vunpack.c.l.b16 %v413
        %v566 = vunpack.c.h.b16 %v413
        %v567 = vunpack.c.l.b16 %v414
        %v568 = vunpack.c.h.b16 %v414
        %v569 = vunpack.c.l.b16 %v415
        %v570 = vunpack.c.h.b16 %v415
        %v571 = vunpack.c.l.b16 %v416
        %v572 = vunpack.c.h.b16 %v416
        %v573 = vunpack.c.l.b16 %v417
        %v574 = vunpack.c.h.b16 %v417
        %v575 = vunpack.c.l.b16 %v418
        %v576 = vunpack.c.h.b16 %v418
        %v577 = vunpack.c.l.b16 %v419
        %v578 = vunpack.c.h.b16 %v419
        %v579 = vunpack.c.l.b16 %v420
        %v580 = vunpack.c.h.b16 %v420
        %v581 = vunpack.c.l.b16 %v421
        %v582 = vunpack.c.h.b16 %v421
        %v583 = vunpack.c.l.b16 %v422
        %v584 = vunpack.c.h.b16 %v422
        %v585 = vunpack.c.l.b16 %v423
        %v586 = vunpack.c.h.b16 %v423
        %v587 = vunpack.c.l.b16 %v424
        %v588 = vunpack.c.h.b16 %v424
        %v589 = vunpack.c.l.b16 %v425
        %v590 = vunpack.c.h.b16 %v425
        %v591 = vunpack.c.l.b16 %v426
        %v592 = vunpack.c.h.b16 %v426
        %v593 = vunpack.c.l.b16 %v427
        %v594 = vunpack.c.h.b16 %v427
        %v595 = vunpack.c.l.b16 %v428
        %v596 = vunpack.c.h.b16 %v428
        %v597 = vunpack.c.l.b16 %v429
        %v598 = vunpack.c.h.b16 %v429
        %v599 = vunpack.c.l.b16 %v430
        %v600 = vunpack.c.h.b16 %v430
        %v601 = vunpack.c.l.b16 %v431
        %v602 = vunpack.c.h.b16 %v431
        %v603 = vunpack.c.l.b16 %v432
        %v604 = vunpack.c.h.b16 %v432
        %v605 = vunpack.c.l.b16 %v433
        %v606 = vunpack.c.h.b16 %v433
        %v607 = vunpack.c.l.b16 %v434
        %v608 = vunpack.c.h.b16 %v434
        %v609 = vunpack.c.l.b16 %v435
        %v610 = vunpack.c.h.b16 %v435
        %v611 = vunpack.c.l.b16 %v436
        %v612 = vunpack.c.h.b16 %v436
        %v613 = vunpack.c.l.b16 %v437
        %v614 = vunpack.c.h.b16 %v437
        %v615 = vunpack.c.l.b16 %v438
        %v616 = vunpack.c.h.b16 %v438
        %v617 = vunpack.c.l.b16 %v439
        %v618 = vunpack.c.h.b16 %v439
        %v619 = vunpack.c.l.b16 %v440
        %v620 = vunpack.c.h.b16 %v440
        %v621 = vunpack.c.l.b16 %v441
        %v622 = vunpack.c.h.b16 %v441
        %v623 = vunpack.c.l.b16 %v442
        %v624 = vunpack.c.h.b16 %v442
        %v625 = vunpack.c.l.b16 %v443
        %v626 = vunpack.c.h.b16 %v443
        %v627 = vunpack.c.l.b16 %v444
        %v628 = vunpack.c.h.b16 %v444
        %v629 = vunpack.c.l.b16 %v445
        %v630 = vunpack.c.h.b16 %v445
        %v631 = vunpack.c.l.b16 %v446
        %v632 = vunpack.c.h.b16 %v446
        %v633 = vunpack.c.l.b16 %v447
        %v634 = vunpack.c.h.b16 %v447
        %v635 = vunpack.c.l.b16 %v448
        %v636 = vunpack.c.h.b16 %v448
        %v637 = vunpack.c.l.b16 %v449
        %v638 = vunpack.c.h.b16 %v449
        %v639 = vunpack.c.l.b16 %v450
        %v640 = vunpack.c.h.b16 %v450
        %v641 = vunpack.c.l.b16 %v451
        %v642 = vunpack.c.h.b16 %v451
        %v643 = vunpack.c.l.b16 %v452
        %v644 = vunpack.c.h.b16 %v452
        %v645 = vpack.c.b16 %v519, %v517
        %v646 = vpack.c.b16 %v520, %v518
        %v647 = vpack.c.b16 %v523, %v521
        %v648 = vpack.c.b16 %v524, %v522
        %v649 = vpack.c.b16 %v527, %v525
        %v650 = vpack.c.b16 %v528, %v526
        %v651 = vpack.c.b16 %v531, %v529
        %v652 = vpack.c.b16 %v532, %v530
        %v653 = vpack.c.b16 %v535, %v533
        %v654 = vpack.c.b16 %v536, %v534
        %v655 = vpack.c.b16 %v539, %v537
        %v656 = vpack.c.b16 %v540, %v538
        %v657 = vpack.c.b16 %v543, %v541
        %v658 = vpack.c.b16 %v544, %v542
        %v659 = vpack.c.b16 %v547, %v545
        %v660 = vpack.c.b16 %v548, %v546
        %v661 = vpack.c.b16 %v551, %v549
        %v662 = vpack.c.b16 %v552, %v550
        %v663 = vpack.c.b16 %v555, %v553
        %v664 = vpack.c.b16 %v556, %v554
        %v665 = vpack.c.b16 %v559, %v557
        %v666 = vpack.c.b16 %v560, %v558
        %v667 = vpack.c.b16 %v563, %v561
        %v668 = vpack.c.b16 %v564, %v562
        %v669 = vpack.c.b16 %v567, %v565
        %v670 = vpack.c.b16 %v568, %v566
        %v671 = vpack.c.b16 %v571, %v569
        %v672 = vpack.c.b16 %v572, %v570
        %v673 = vpack.c.b16 %v575, %v573
        %v674 = vpack.c.b16 %v576, %v574
        %v675 = vpack.c.b16 %v579, %v577
        %v676 = vpack.c.b16 %v580, %v578
        %v677 = vpack.c.b16 %v583, %v581
        %v678 = vpack.c.b16 %v584, %v582
        %v679 = vpack.c.b16 %v587, %v585
        %v680 = vpack.c.b16 %v588, %v586
        %v681 = vpack.c.b16 %v591, %v589
        %v682 = vpack.c.b16 %v592, %v590
        %v683 = vpack.c.b16 %v595, %v593
        %v684 = vpack.c.b16 %v596, %v594
        %v685 = vpack.c.b16 %v599, %v597
        %v686 = vpack.c.b16 %v600, %v598
        %v687 = vpack.c.b16 %v603, %v601
        %v688 = vpack.c.b16 %v604, %v602
        %v689 = vpack.c.b16 %v607, %v605
        %v690 = vpack.c.b16 %v608, %v606
        %v691 = vpack.c.b16 %v611, %v609
        %v692 = vpack.c.b16 %v612, %v610
        %v693 = vpack.c.b16 %v615, %v613
        %v694 = vpack.c.b16 %v616, %v614
        %v695 = vpack.c.b16 %v619, %v617
        %v696 = vpack.c.b16 %v620, %v618
        %v697 = vpack.c.b16 %v623, %v621
        %v698 = vpack.c.b16 %v624, %v622
        %v699 = vpack.c.b16 %v627, %v625
        %v700 = vpack.c.b16 %v628, %v626
        %v701 = vpack.c.b16 %v631, %v629
        %v702 = vpack.c.b16 %v632, %v630
        %v703 = vpack.c.b16 %v635, %v633
        %v704 = vpack.c.b16 %v636, %v634
        %v705 = vpack.c.b16 %v639, %v637
        %v706 = vpack.c.b16 %v640, %v638
        %v707 = vpack.c.b16 %v643, %v641
        %v708 = vpack.c.b16 %v644, %v642
        %773 = vmatprep.subr.bf16.mxu0 %v646
        %774 = vmatpush1.bf16.msra.mxu0 %v645
        %775 = vmatprep.subr.bf16.mxu0 %v648
        %776 = vmatpush1.bf16.msra.mxu0 %v647
        %777 = vmatprep.subr.bf16.mxu0 %v650
        %778 = vmatpush1.bf16.msra.mxu0 %v649
        %779 = vmatprep.subr.bf16.mxu0 %v652
        %780 = vmatpush1.bf16.msra.mxu0 %v651
        %781 = vmatprep.subr.bf16.mxu0 %v654
        %782 = vmatpush1.bf16.msra.mxu0 %v653
        %783 = vmatprep.subr.bf16.mxu0 %v656
        %784 = vmatpush1.bf16.msra.mxu0 %v655
        %785 = vmatprep.subr.bf16.mxu0 %v658
        %786 = vmatpush1.bf16.msra.mxu0 %v657
        %787 = vmatprep.subr.bf16.mxu0 %v660
        %788 = vmatpush1.bf16.msra.mxu0 %v659
        %789 = vmatprep.subr.bf16.mxu0 %v662
        %790 = vmatpush1.bf16.msra.mxu0 %v661
        %791 = vmatprep.subr.bf16.mxu0 %v664
        %792 = vmatpush1.bf16.msra.mxu0 %v663
        %793 = vmatprep.subr.bf16.mxu0 %v666
        %794 = vmatpush1.bf16.msra.mxu0 %v665
        %795 = vmatprep.subr.bf16.mxu0 %v668
        %796 = vmatpush1.bf16.msra.mxu0 %v667
        %797 = vmatprep.subr.bf16.mxu0 %v670
        %798 = vmatpush1.bf16.msra.mxu0 %v669
        %799 = vmatprep.subr.bf16.mxu0 %v672
        %800 = vmatpush1.bf16.msra.mxu0 %v671
        %801 = vmatprep.subr.bf16.mxu0 %v674
        %802 = vmatpush1.bf16.msra.mxu0 %v673
        %803 = vmatprep.subr.bf16.mxu0 %v676
        %804 = vmatpush1.bf16.msra.mxu0 %v675
        %805 = vmatprep.mubr.bf16.mxu0 %v358
        %806 = vmatmul.mubr.bf16.gmra.mrb[0].mxu0 %v357
        %v807 = vpop.f32.mrb[0].mxu0
        %v808 = vadd.f32 0.0, %v807
        %v809 = vpop.f32.mrb[0].mxu0
        %v810 = vadd.f32 0.0, %v809
        %v811 = vpop.f32.mrb[0].mxu0
        %v812 = vadd.f32 0.0, %v811
        %v813 = vpop.f32.mrb[0].mxu0
        %v814 = vadd.f32 0.0, %v813
        %815 = vmatprep.mubr.bf16.mxu0 %v362
        %816 = vmatmul.mubr.bf16.gmra.mrb[0].mxu0 %v361
        %v817 = vpop.f32.mrb[0].mxu0
        %v818 = vadd.f32 0.0, %v817
        %v819 = vpop.f32.mrb[0].mxu0
        %v820 = vadd.f32 0.0, %v819
        %v821 = vpop.f32.mrb[0].mxu0
        %v822 = vadd.f32 0.0, %v821
        %v823 = vpop.f32.mrb[0].mxu0
        %v824 = vadd.f32 0.0, %v823
        %825 = vmatprep.mubr.bf16.mxu0 %v366
        %826 = vmatmul.mubr.bf16.gmra.mrb[0].mxu0 %v365
        %v827 = vpop.f32.mrb[0].mxu0
        %v828 = vadd.f32 0.0, %v827
        %v829 = vpop.f32.mrb[0].mxu0
        %v830 = vadd.f32 0.0, %v829
        %v831 = vpop.f32.mrb[0].mxu0
        %v832 = vadd.f32 0.0, %v831
        %v833 = vpop.f32.mrb[0].mxu0
        %v834 = vadd.f32 0.0, %v833
        %835 = vmatprep.mubr.bf16.mxu0 %v370
        %836 = vmatmul.mubr.bf16.gmra.mrb[0].mxu0 %v369
        %v837 = vpop.f32.mrb[0].mxu0
        %v838 = vadd.f32 0.0, %v837
        %v839 = vpop.f32.mrb[0].mxu0
        %v840 = vadd.f32 0.0, %v839
        %v841 = vpop.f32.mrb[0].mxu0
        %v842 = vadd.f32 0.0, %v841
        %v843 = vpop.f32.mrb[0].mxu0
        %v844 = vadd.f32 0.0, %v843
        %845 = vmatprep.mubr.bf16.mxu0 %v374
        %846 = vmatmul.mubr.bf16.gmra.mrb[0].mxu0 %v373
        %v847 = vpop.f32.mrb[0].mxu0
        %v848 = vadd.f32 0.0, %v847
        %v849 = vpop.f32.mrb[0].mxu0
        %v850 = vadd.f32 0.0, %v849
        %v851 = vpop.f32.mrb[0].mxu0
        %v852 = vadd.f32 0.0, %v851
        %v853 = vpop.f32.mrb[0].mxu0
        %v854 = vadd.f32 0.0, %v853
        %855 = vmatprep.mubr.bf16.mxu0 %v378
        %856 = vmatmul.mubr.bf16.gmra.mrb[0].mxu0 %v377
        %v857 = vpop.f32.mrb[0].mxu0
        %v858 = vadd.f32 0.0, %v857
        %v859 = vpop.f32.mrb[0].mxu0
        %v860 = vadd.f32 0.0, %v859
        %v861 = vpop.f32.mrb[0].mxu0
        %v862 = vadd.f32 0.0, %v861
        %v863 = vpop.f32.mrb[0].mxu0
        %v864 = vadd.f32 0.0, %v863
        %865 = vmatprep.mubr.bf16.mxu0 %v382
        %866 = vmatmul.mubr.bf16.gmra.mrb[0].mxu0 %v381
        %v867 = vpop.f32.mrb[0].mxu0
        %v868 = vadd.f32 0.0, %v867
        %v869 = vpop.f32.mrb[0].mxu0
        %v870 = vadd.f32 0.0, %v869
        %v871 = vpop.f32.mrb[0].mxu0
        %v872 = vadd.f32 0.0, %v871
        %v873 = vpop.f32.mrb[0].mxu0
        %v874 = vadd.f32 0.0, %v873
        %875 = vmatprep.mubr.bf16.mxu0 %v386
        %876 = vmatmul.mubr.bf16.gmra.mrb[0].mxu0 %v385
        %v877 = vpop.f32.mrb[0].mxu0
        %v878 = vadd.f32 0.0, %v877
        %v879 = vpop.f32.mrb[0].mxu0
        %v880 = vadd.f32 0.0, %v879
        %v881 = vpop.f32.mrb[0].mxu0
        %v882 = vadd.f32 0.0, %v881
        %v883 = vpop.f32.mrb[0].mxu0
        %v884 = vadd.f32 0.0, %v883
        %885 = vdwg.mxu0
        %886 = vmatprep.subr.bf16.mxu0 %v678
        %887 = vmatpush1.bf16.msra.mxu0 %v677
        %888 = vmatprep.subr.bf16.mxu0 %v680
        %889 = vmatpush1.bf16.msra.mxu0 %v679
        %890 = vmatprep.subr.bf16.mxu0 %v682
        %891 = vmatpush1.bf16.msra.mxu0 %v681
        %892 = vmatprep.subr.bf16.mxu0 %v684
        %893 = vmatpush1.bf16.msra.mxu0 %v683
        %894 = vmatprep.subr.bf16.mxu0 %v686
        %895 = vmatpush1.bf16.msra.mxu0 %v685
        %896 = vmatprep.subr.bf16.mxu0 %v688
        %897 = vmatpush1.bf16.msra.mxu0 %v687
        %898 = vmatprep.subr.bf16.mxu0 %v690
        %899 = vmatpush1.bf16.msra.mxu0 %v689
        %900 = vmatprep.subr.bf16.mxu0 %v692
        %901 = vmatpush1.bf16.msra.mxu0 %v691
        %902 = vmatprep.subr.bf16.mxu0 %v694
        %903 = vmatpush1.bf16.msra.mxu0 %v693
        %904 = vmatprep.subr.bf16.mxu0 %v696
        %905 = vmatpush1.bf16.msra.mxu0 %v695
        %906 = vmatprep.subr.bf16.mxu0 %v698
        %907 = vmatpush1.bf16.msra.mxu0 %v697
        %908 = vmatprep.subr.bf16.mxu0 %v700
        %909 = vmatpush1.bf16.msra.mxu0 %v699
        %910 = vmatprep.subr.bf16.mxu0 %v702
        %911 = vmatpush1.bf16.msra.mxu0 %v701
        %912 = vmatprep.subr.bf16.mxu0 %v704
        %913 = vmatpush1.bf16.msra.mxu0 %v703
        %914 = vmatprep.subr.bf16.mxu0 %v706
        %915 = vmatpush1.bf16.msra.mxu0 %v705
        %916 = vmatprep.subr.bf16.mxu0 %v708
        %917 = vmatpush1.bf16.msra.mxu0 %v707
        %918 = vmatprep.mubr.bf16.mxu0 %v360
        %919 = vmatmul.mubr.bf16.gmra.mrb[0].mxu0 %v359
        %v920 = vpop.f32.mrb[0].mxu0
        %v921 = vadd.f32 %v808, %v920
        %v922 = vpop.f32.mrb[0].mxu0
        %v923 = vadd.f32 %v810, %v922
        %v924 = vpop.f32.mrb[0].mxu0
        %v925 = vadd.f32 %v812, %v924
        %v926 = vpop.f32.mrb[0].mxu0
        %v927 = vadd.f32 %v814, %v926
        %928 = vmatprep.mubr.bf16.mxu0 %v364
        %929 = vmatmul.mubr.bf16.gmra.mrb[0].mxu0 %v363
        %v930 = vpop.f32.mrb[0].mxu0
        %v931 = vadd.f32 %v818, %v930
        %v932 = vpop.f32.mrb[0].mxu0
        %v933 = vadd.f32 %v820, %v932
        %v934 = vpop.f32.mrb[0].mxu0
        %v935 = vadd.f32 %v822, %v934
        %v936 = vpop.f32.mrb[0].mxu0
        %v937 = vadd.f32 %v824, %v936
        %938 = vmatprep.mubr.bf16.mxu0 %v368
        %939 = vmatmul.mubr.bf16.gmra.mrb[0].mxu0 %v367
        %v940 = vpop.f32.mrb[0].mxu0
        %v941 = vadd.f32 %v828, %v940
        %v942 = vpop.f32.mrb[0].mxu0
        %v943 = vadd.f32 %v830, %v942
        %v944 = vpop.f32.mrb[0].mxu0
        %v945 = vadd.f32 %v832, %v944
        %v946 = vpop.f32.mrb[0].mxu0
        %v947 = vadd.f32 %v834, %v946
        %948 = vmatprep.mubr.bf16.mxu0 %v372
        %949 = vmatmul.mubr.bf16.gmra.mrb[0].mxu0 %v371
        %v950 = vpop.f32.mrb[0].mxu0
        %v951 = vadd.f32 %v838, %v950
        %v952 = vpop.f32.mrb[0].mxu0
        %v953 = vadd.f32 %v840, %v952
        %v954 = vpop.f32.mrb[0].mxu0
        %v955 = vadd.f32 %v842, %v954
        %v956 = vpop.f32.mrb[0].mxu0
        %v957 = vadd.f32 %v844, %v956
        %958 = vmatprep.mubr.bf16.mxu0 %v376
        %959 = vmatmul.mubr.bf16.gmra.mrb[0].mxu0 %v375
        %v960 = vpop.f32.mrb[0].mxu0
        %v961 = vadd.f32 %v848, %v960
        %v962 = vpop.f32.mrb[0].mxu0
        %v963 = vadd.f32 %v850, %v962
        %v964 = vpop.f32.mrb[0].mxu0
        %v965 = vadd.f32 %v852, %v964
        %v966 = vpop.f32.mrb[0].mxu0
        %v967 = vadd.f32 %v854, %v966
        %968 = vmatprep.mubr.bf16.mxu0 %v380
        %969 = vmatmul.mubr.bf16.gmra.mrb[0].mxu0 %v379
        %v970 = vpop.f32.mrb[0].mxu0
        %v971 = vadd.f32 %v858, %v970
        %v972 = vpop.f32.mrb[0].mxu0
        %v973 = vadd.f32 %v860, %v972
        %v974 = vpop.f32.mrb[0].mxu0
        %v975 = vadd.f32 %v862, %v974
        %v976 = vpop.f32.mrb[0].mxu0
        %v977 = vadd.f32 %v864, %v976
        %978 = vmatprep.mubr.bf16.mxu0 %v384
        %979 = vmatmul.mubr.bf16.gmra.mrb[0].mxu0 %v383
        %v980 = vpop.f32.mrb[0].mxu0
        %v981 = vadd.f32 %v868, %v980
        %v982 = vpop.f32.mrb[0].mxu0
        %v983 = vadd.f32 %v870, %v982
        %v984 = vpop.f32.mrb[0].mxu0
        %v985 = vadd.f32 %v872, %v984
        %v986 = vpop.f32.mrb[0].mxu0
        %v987 = vadd.f32 %v874, %v986
        %988 = vmatprep.mubr.bf16.mxu0 %v388
        %989 = vmatmul.mubr.bf16.gmra.mrb[0].mxu0 %v387
        %v990 = vpop.f32.mrb[0].mxu0
        %v991 = vadd.f32 %v878, %v990
        %v992 = vpop.f32.mrb[0].mxu0
        %v993 = vadd.f32 %v880, %v992
        %v994 = vpop.f32.mrb[0].mxu0
        %v995 = vadd.f32 %v882, %v994
        %v996 = vpop.f32.mrb[0].mxu0
        %v997 = vadd.f32 %v884, %v996
        %998 = vdwg.mxu0
        %v999 = vadd.f32 %v261, %v921
        %v1000 = vadd.f32 %v262, %v923
        %v1001 = vadd.f32 %v263, %v925
        %v1002 = vadd.f32 %v264, %v927
        %v1003 = vadd.f32 %v265, %v931
        %v1004 = vadd.f32 %v266, %v933
        %v1005 = vadd.f32 %v267, %v935
        %v1006 = vadd.f32 %v268, %v937
        %v1007 = vadd.f32 %v269, %v941
        %v1008 = vadd.f32 %v270, %v943
        %v1009 = vadd.f32 %v271, %v945
        %v1010 = vadd.f32 %v272, %v947
        %v1011 = vadd.f32 %v273, %v951
        %v1012 = vadd.f32 %v274, %v953
        %v1013 = vadd.f32 %v275, %v955
        %v1014 = vadd.f32 %v276, %v957
        %v1015 = vadd.f32 %v277, %v961
        %v1016 = vadd.f32 %v278, %v963
        %v1017 = vadd.f32 %v279, %v965
        %v1018 = vadd.f32 %v280, %v967
        %v1019 = vadd.f32 %v281, %v971
        %v1020 = vadd.f32 %v282, %v973
        %v1021 = vadd.f32 %v283, %v975
        %v1022 = vadd.f32 %v284, %v977
        %v1023 = vadd.f32 %v285, %v981
        %v1024 = vadd.f32 %v286, %v983
        %v1025 = vadd.f32 %v287, %v985
        %v1026 = vadd.f32 %v288, %v987
        %v1027 = vadd.f32 %v289, %v991
        %v1028 = vadd.f32 %v290, %v993
        %v1029 = vadd.f32 %v291, %v995
        %v1030 = vadd.f32 %v292, %v997
        %1031 = vst [vmem:[%s223] sm:$0xff] %v999
        %1032 = vst [vmem:[%s223 + $0x8] sm:$0xff] %v1000
        %1033 = vst [vmem:[%s223 + $0x10] sm:$0xff] %v1001
        %1034 = vst [vmem:[%s223 + $0x18] sm:$0xff] %v1002
        %1035 = vst [vmem:[%s223 + $0x20] sm:$0xff] %v1003
        %1036 = vst [vmem:[%s223 + $0x28] sm:$0xff] %v1004
        %1037 = vst [vmem:[%s223 + $0x30] sm:$0xff] %v1005
        %1038 = vst [vmem:[%s223 + $0x38] sm:$0xff] %v1006
        %1039 = vst [vmem:[%s223 + $0x40] sm:$0xff] %v1007
        %1040 = vst [vmem:[%s223 + $0x48] sm:$0xff] %v1008
        %1041 = vst [vmem:[%s223 + $0x50] sm:$0xff] %v1009
        %1042 = vst [vmem:[%s223 + $0x58] sm:$0xff] %v1010
        %1043 = vst [vmem:[%s223 + $0x60] sm:$0xff] %v1011
        %1044 = vst [vmem:[%s223 + $0x68] sm:$0xff] %v1012
        %1045 = vst [vmem:[%s223 + $0x70] sm:$0xff] %v1013
        %1046 = vst [vmem:[%s223 + $0x78] sm:$0xff] %v1014
        %1047 = vst [vmem:[%s223 + $0x80] sm:$0xff] %v1015
        %1048 = vst [vmem:[%s223 + $0x88] sm:$0xff] %v1016
        %1049 = vst [vmem:[%s223 + $0x90] sm:$0xff] %v1017
        %1050 = vst [vmem:[%s223 + $0x98] sm:$0xff] %v1018
        %1051 = vst [vmem:[%s223 + $0xa0] sm:$0xff] %v1019
        %1052 = vst [vmem:[%s223 + $0xa8] sm:$0xff] %v1020
        %1053 = vst [vmem:[%s223 + $0xb0] sm:$0xff] %v1021
        %1054 = vst [vmem:[%s223 + $0xb8] sm:$0xff] %v1022
        %1055 = vst [vmem:[%s223 + $0xc0] sm:$0xff] %v1023
        %1056 = vst [vmem:[%s223 + $0xc8] sm:$0xff] %v1024
        %1057 = vst [vmem:[%s223 + $0xd0] sm:$0xff] %v1025
        %1058 = vst [vmem:[%s223 + $0xd8] sm:$0xff] %v1026
        %1059 = vst [vmem:[%s223 + $0xe0] sm:$0xff] %v1027
        %1060 = vst [vmem:[%s223 + $0xe8] sm:$0xff] %v1028
        %1061 = vst [vmem:[%s223 + $0xf0] sm:$0xff] %v1029
        %1062 = vst [vmem:[%s223 + $0xf8] sm:$0xff] %v1030
        %s1063 = smul.u32 2, %s23
        %p1064 = scmp.lt.s32.totalorder %s1063, 1
        %s1065 = scalar_select %p1064, %s1063, 1
        %s1066 = smul.addr %s1065, 8
        %s1067 = scalar_lea.vmem %s2, %s1066
        // Predicated region
        $region41: #{vae_forward.3} parent=27 // pred_check
          %p1068 = pneg %p103
        $region42: #{vae_forward.3} parent=27 // pred_check_branch
          %1070 = sbr.rel (%p1068) target = $region44
        $region43: #{vae_forward.3} parent=27 // pred_region
          %s1071 = smul.u32 2, %s23
        $region44: #{vae_forward.3} parent=27 // pred_fallthru
          _
        // Predicated region
        $region45: #{vae_forward.3} parent=27 // pred_check
          %p1072 = pneg %p103
        $region46: #{vae_forward.3} parent=27 // pred_check_branch
          %1074 = sbr.rel (%p1072) target = $region48
        $region47: #{vae_forward.3} parent=27 // pred_region
          %s1075 = smul.u32 2, %s23
          %p1076 = scmp.lt.s32.totalorder %s1075, 1
          %s1077 = scalar_select %p1076, %s1075, 1
          %s1078 = smul.addr %s1077, 8
          %s1079 = scalar_lea.vmem %s2, %s1078
        $region48: #{vae_forward.3} parent=27 // pred_fallthru
          _
      $region28: #{vae_forward.3} parent=5 // pred_fallthru
        _
      %p1080 = scmp.le.s32.totalorder 2, %s14
      // Predicated region
      $region49: #{vae_forward.3} parent=5 // pred_check
        %p1081 = pneg %p1080
      $region50: #{vae_forward.3} parent=5 // pred_check_branch
        %1083 = sbr.rel (%p1081) target = $region52
      $region51: #{vae_forward.3} parent=5 // pred_region
        %s1084 = ssub.s32 %s14, 2
      $region52: #{vae_forward.3} parent=5 // pred_fallthru
        _
    $region6: #{vae_forward.3} parent=1 // loop_footer
      %s18 = sadd.s32 1, %s14
    $region7: #{vae_forward.3} parent=1 // loop_footer_branch
      %13 = sbr.rel target = $region3
    $region8: #{vae_forward.3} parent=1 // loop_exit
      _
    %1085 = vsyncpa [#allocation3], 1
    %s1086 = scalar_lea.sflag [#allocation3], 1
    %1087 = vsyncpa %s1086, 1
    %1088 = vsyncpa [#allocation5], 1
    %s1089 = scalar_lea.sflag [#allocation5], 1
    %1090 = vsyncpa %s1089, 1

// kernel: vae_forward.5
$region0: #{vae_forward.5}
  #allocation0 [shape = 'u32[]', space=smem, size = 0x4, offset = 0x4, fixed_abs, tag = 'smem constant byte address 0x4 - core index']
  #allocation1 [shape = 'u32[144,128]{1,0:T(1,128)}', space=vmem, size = 0x12000, scoped, tag = 'internal scratch']
  %s0 = inlined_call_operand.vmem [shape: bf16[128,256], index: 0, kind: input, shape index: {}]
  %s1 = inlined_call_operand.vmem [shape: bf16[256,1024], index: 1, kind: input, shape index: {}]
  %s2 = inlined_call_operand.vmem [shape: f32[1,1024], index: 2, kind: input, shape index: {}]
  %s3 = inlined_call_operand.hbm [shape: bf16[128,1024], index: 3, kind: output, shape index: {}]
  %s4 = sld [smem:[#allocation0]]
  $region68: #{vae_forward.5} parent=0
    _
  %s6 = ssub.s32 1, %s4
  %s7 = scalar_select 0, %s6, %s4
  $region1: #{vae_forward.5} parent=0
    #allocation2 [shape = 'u8[524288]{0}', space=vmem, size = 0x80000, scoped, tag = 'input window, operand 1']
    #allocation3 [shape = 'u8[262144]{0}', space=vmem, size = 0x40000, scoped, tag = 'output window, operand 0']
    #allocation4 [shape = 's32[2]{0}', space=sflag, size = 0x8, scoped, tag = 'scoped memory for vae_forward.5']
    %8 = vsyncpa [#allocation4], 0
    %s9 = scalar_lea.sflag [#allocation4], 1
    %10 = vsyncpa %s9, 0
    loop: start=0, step=1, limit=4
    $region2: #{vae_forward.5} parent=1 // loop_pre_header
      _
    $region3: #{vae_forward.5} parent=1 // loop_header
      %s12 = sphi 0, %s16
      %p13 = scmp.ge.s32.totalorder %s12, 4
      %s20 = sphi 0, %s20
      %s22 = sphi 0, %s20
      %s23 = sphi 0, %s22
      %s37 = sphi 0, %s23
      %s43 = sphi 0, %s45
      %s46 = sphi 0, %s43
      %s47 = sphi 0, %s46
      %s63 = sphi 0, %s47
      %s69 = sphi 0, %s71
      %s72 = sphi 0, %s69
      %s73 = sphi 0, %s72
      %s89 = sphi 0, %s73
      %s95 = sphi 0, %s97
      %s98 = sphi 0, %s95
      %s99 = sphi 0, %s98
      %s115 = sphi 0, %s99
    $region4: #{vae_forward.5} parent=1 // loop_header_branch
      %15 = sbr.rel (%p13) target = $region8
    $region5: #{vae_forward.5} parent=1 // loop_body
      %s17 = ssub.s32 %s12, 1
      %s18 = ssub.s32 %s12, 2
      %s19 = sadd.s32 %s12, 1
      %s21 = sadd.s32 %s20, 1
      %p24 = scmp.eq.s32.totalorder %s12, 1
      %p25 = scmp.ne.s32.totalorder %s20, %s22
      %p26 = scmp.eq.s32.totalorder %s12, 0
      %p27 = por %p25, %p26
      %p28 = scmp.ne.s32.totalorder %s20, %s22
      %p29 = scmp.eq.s32.totalorder %s17, 1
      %p30 = por %p28, %p29
      %p31 = scmp.ne.s32.totalorder %s22, %s23
      %p32 = scmp.eq.s32.totalorder %s17, 0
      %p33 = por %p31, %p32
      %p34 = scmp.ne.s32.totalorder %s22, %s23
      %p35 = scmp.eq.s32.totalorder %s18, 1
      %p36 = por %p34, %p35
      %p38 = scmp.ne.s32.totalorder %s23, %s37
      %p39 = scmp.eq.s32.totalorder %s18, 0
      %p40 = por %p38, %p39
      %s41 = ssub.s32 %s12, %s19
      %p42 = scmp.eq.s32.totalorder %s41, 0
      %s44 = sadd.s32 %s43, 1
      %s45 = scalar_select %p42, %s43, %s44
      %p48 = pneg %p42
      %p49 = scmp.eq.s32.totalorder %s12, 1
      %p50 = por %p48, %p49
      %p51 = scmp.ne.s32.totalorder %s43, %s46
      %p52 = scmp.eq.s32.totalorder %s12, 0
      %p53 = por %p51, %p52
      %p54 = scmp.ne.s32.totalorder %s43, %s46
      %p55 = scmp.eq.s32.totalorder %s17, 1
      %p56 = por %p54, %p55
      %p57 = scmp.ne.s32.totalorder %s46, %s47
      %p58 = scmp.eq.s32.totalorder %s17, 0
      %p59 = por %p57, %p58
      %p60 = scmp.ne.s32.totalorder %s46, %s47
      %p61 = scmp.eq.s32.totalorder %s18, 1
      %p62 = por %p60, %p61
      %p64 = scmp.ne.s32.totalorder %s47, %s63
      %p65 = scmp.eq.s32.totalorder %s18, 0
      %p66 = por %p64, %p65
      %s67 = ssub.s32 %s12, %s19
      %p68 = scmp.eq.s32.totalorder %s67, 0
      %s70 = sadd.s32 %s69, 1
      %s71 = scalar_select %p68, %s69, %s70
      %p74 = pneg %p68
      %p75 = scmp.eq.s32.totalorder %s12, 1
      %p76 = por %p74, %p75
      %p77 = scmp.ne.s32.totalorder %s69, %s72
      %p78 = scmp.eq.s32.totalorder %s12, 0
      %p79 = por %p77, %p78
      %p80 = scmp.ne.s32.totalorder %s69, %s72
      %p81 = scmp.eq.s32.totalorder %s17, 1
      %p82 = por %p80, %p81
      %p83 = scmp.ne.s32.totalorder %s72, %s73
      %p84 = scmp.eq.s32.totalorder %s17, 0
      %p85 = por %p83, %p84
      %p86 = scmp.ne.s32.totalorder %s72, %s73
      %p87 = scmp.eq.s32.totalorder %s18, 1
      %p88 = por %p86, %p87
      %p90 = scmp.ne.s32.totalorder %s73, %s89
      %p91 = scmp.eq.s32.totalorder %s18, 0
      %p92 = por %p90, %p91
      %s93 = ssub.s32 %s12, %s19
      %p94 = scmp.eq.s32.totalorder %s93, 0
      %s96 = sadd.s32 %s95, 1
      %s97 = scalar_select %p94, %s95, %s96
      %p100 = pneg %p94
      %p101 = scmp.eq.s32.totalorder %s12, 1
      %p102 = por %p100, %p101
      %p103 = scmp.ne.s32.totalorder %s95, %s98
      %p104 = scmp.eq.s32.totalorder %s12, 0
      %p105 = por %p103, %p104
      %p106 = scmp.ne.s32.totalorder %s95, %s98
      %p107 = scmp.eq.s32.totalorder %s17, 1
      %p108 = por %p106, %p107
      %p109 = scmp.ne.s32.totalorder %s98, %s99
      %p110 = scmp.eq.s32.totalorder %s17, 0
      %p111 = por %p109, %p110
      %p112 = scmp.ne.s32.totalorder %s98, %s99
      %p113 = scmp.eq.s32.totalorder %s18, 1
      %p114 = por %p112, %p113
      %p116 = scmp.ne.s32.totalorder %s99, %s115
      %p117 = scmp.eq.s32.totalorder %s18, 0
      %p118 = por %p116, %p117
      %p119 = scmp.le.s32.totalorder 1, %s12
      %p120 = scmp.lt.s32.totalorder %s12, 3
      %p121 = pnand %p119, %p120
      %p122 = pneg %p121
      // Predicated region
      $region9: #{vae_forward.5} parent=5 // pred_check
        _
      $region10: #{vae_forward.5} parent=5 // pred_check_branch
        %124 = sbr.rel (%p121) target = $region12
      $region11: #{vae_forward.5} parent=5 // pred_region
        %s125 = ssub.s32 %s12, 1
        // Predicated region
        $region13: #{vae_forward.5} parent=11 // pred_check
          %p126 = pneg %p33
        $region14: #{vae_forward.5} parent=11 // pred_check_branch
          %128 = sbr.rel (%p126) target = $region16
        $region15: #{vae_forward.5} parent=11 // pred_region
          _
        $region16: #{vae_forward.5} parent=11 // pred_fallthru
          _
      $region12: #{vae_forward.5} parent=5 // pred_fallthru
        _
      %p129 = scmp.lt.s32.totalorder %s12, 2
      // Predicated region
      $region17: #{vae_forward.5} parent=5 // pred_check
        %p130 = pneg %p129
      $region18: #{vae_forward.5} parent=5 // pred_check_branch
        %132 = sbr.rel (%p130) target = $region20
      $region19: #{vae_forward.5} parent=5 // pred_region
        // Predicated region
        $region21: #{vae_forward.5} parent=19 // pred_check
          %p133 = pneg %p53
        $region22: #{vae_forward.5} parent=19 // pred_check_branch
          %135 = sbr.rel (%p133) target = $region24
        $region23: #{vae_forward.5} parent=19 // pred_region
          %s136 = sand.u32 %s43, 1
          %s137 = sand.u32 %s43, 1
          %s138 = smul.addr %s137, 512
          %s139 = scalar_lea.vmem [#allocation2], %s138
          %s140 = smul.u32 4, %s12
          %s141 = smul.addr %s140, 4
          %s142 = scalar_lea.vmem %s1, %s141
          // Predicated region
          $region25: #{vae_forward.5} parent=23 // pred_check
            _
          $region26: #{vae_forward.5} parent=23 // pred_check_branch
            %144 = sbr.rel (0) target = $region28
          $region27: #{vae_forward.5} parent=23 // pred_region
            // Predicated region
            $region29: #{vae_forward.5} parent=27 // pred_check
              _
            $region30: #{vae_forward.5} parent=27 // pred_check_branch
              %146 = sbr.rel (0) target = $region32
            $region31: #{vae_forward.5} parent=27 // pred_region
              loop: start=0, step=1, limit=1
              $region33: #{vae_forward.5} parent=31 // loop_pre_header
                _
              $region34: #{vae_forward.5} parent=31 // loop_header
                %s148 = sphi 0, %s152
                %p149 = scmp.ge.s32.totalorder %s148, 1
                %s153 = sphi %s142, %s142
                %s154 = sphi %s139, %s139
              $region35: #{vae_forward.5} parent=31 // loop_header_branch
                %151 = sbr.rel (%p149) target = $region39
              $region36: #{vae_forward.5} parent=31 // loop_body
                %v155 = vld [vmem:[%s153] sm:$0xff]
                %156 = vst [vmem:[%s154] sm:$0xff] %v155
                %v157 = vld [vmem:[%s153 + $0x8] sm:$0xff]
                %158 = vst [vmem:[%s154 + $0x8] sm:$0xff] %v157
                %v159 = vld [vmem:[%s153 + $0x20] sm:$0xff]
                %160 = vst [vmem:[%s154 + $0x10] sm:$0xff] %v159
                %v161 = vld [vmem:[%s153 + $0x28] sm:$0xff]
                %162 = vst [vmem:[%s154 + $0x18] sm:$0xff] %v161
                %v163 = vld [vmem:[%s153 + $0x40] sm:$0xff]
                %164 = vst [vmem:[%s154 + $0x20] sm:$0xff] %v163
                %v165 = vld [vmem:[%s153 + $0x48] sm:$0xff]
                %166 = vst [vmem:[%s154 + $0x28] sm:$0xff] %v165
                %v167 = vld [vmem:[%s153 + $0x60] sm:$0xff]
                %168 = vst [vmem:[%s154 + $0x30] sm:$0xff] %v167
                %v169 = vld [vmem:[%s153 + $0x68] sm:$0xff]
                %170 = vst [vmem:[%s154 + $0x38] sm:$0xff] %v169
                %v171 = vld [vmem:[%s153 + $0x80] sm:$0xff]
                %172 = vst [vmem:[%s154 + $0x40] sm:$0xff] %v171
                %v173 = vld [vmem:[%s153 + $0x88] sm:$0xff]
                %174 = vst [vmem:[%s154 + $0x48] sm:$0xff] %v173
                %v175 = vld [vmem:[%s153 + $0xa0] sm:$0xff]
                %176 = vst [vmem:[%s154 + $0x50] sm:$0xff] %v175
                %v177 = vld [vmem:[%s153 + $0xa8] sm:$0xff]
                %178 = vst [vmem:[%s154 + $0x58] sm:$0xff] %v177
                %v179 = vld [vmem:[%s153 + $0xc0] sm:$0xff]
                %180 = vst [vmem:[%s154 + $0x60] sm:$0xff] %v179
                %v181 = vld [vmem:[%s153 + $0xc8] sm:$0xff]
                %182 = vst [vmem:[%s154 + $0x68] sm:$0xff] %v181
                %v183 = vld [vmem:[%s153 + $0xe0] sm:$0xff]
                %184 = vst [vmem:[%s154 + $0x70] sm:$0xff] %v183
                %v185 = vld [vmem:[%s153 + $0xe8] sm:$0xff]
                %186 = vst [vmem:[%s154 + $0x78] sm:$0xff] %v185
                %v187 = vld [vmem:[%s153 + $0x100] sm:$0xff]
                %188 = vst [vmem:[%s154 + $0x80] sm:$0xff] %v187
                %v189 = vld [vmem:[%s153 + $0x108] sm:$0xff]
                %190 = vst [vmem:[%s154 + $0x88] sm:$0xff] %v189
                %v191 = vld [vmem:[%s153 + $0x120] sm:$0xff]
                %192 = vst [vmem:[%s154 + $0x90] sm:$0xff] %v191
                %v193 = vld [vmem:[%s153 + $0x128] sm:$0xff]
                %194 = vst [vmem:[%s154 + $0x98] sm:$0xff] %v193
                %v195 = vld [vmem:[%s153 + $0x140] sm:$0xff]
                %196 = vst [vmem:[%s154 + $0xa0] sm:$0xff] %v195
                %v197 = vld [vmem:[%s153 + $0x148] sm:$0xff]
                %198 = vst [vmem:[%s154 + $0xa8] sm:$0xff] %v197
                %v199 = vld [vmem:[%s153 + $0x160] sm:$0xff]
                %200 = vst [vmem:[%s154 + $0xb0] sm:$0xff] %v199
                %v201 = vld [vmem:[%s153 + $0x168] sm:$0xff]
                %202 = vst [vmem:[%s154 + $0xb8] sm:$0xff] %v201
                %v203 = vld [vmem:[%s153 + $0x180] sm:$0xff]
                %204 = vst [vmem:[%s154 + $0xc0] sm:$0xff] %v203
                %v205 = vld [vmem:[%s153 + $0x188] sm:$0xff]
                %206 = vst [vmem:[%s154 + $0xc8] sm:$0xff] %v205
                %v207 = vld [vmem:[%s153 + $0x1a0] sm:$0xff]
                %208 = vst [vmem:[%s154 + $0xd0] sm:$0xff] %v207
                %v209 = vld [vmem:[%s153 + $0x1a8] sm:$0xff]
                %210 = vst [vmem:[%s154 + $0xd8] sm:$0xff] %v209
                %v211 = vld [vmem:[%s153 + $0x1c0] sm:$0xff]
                %212 = vst [vmem:[%s154 + $0xe0] sm:$0xff] %v211
                %v213 = vld [vmem:[%s153 + $0x1c8] sm:$0xff]
                %214 = vst [vmem:[%s154 + $0xe8] sm:$0xff] %v213
                %v215 = vld [vmem:[%s153 + $0x1e0] sm:$0xff]
                %216 = vst [vmem:[%s154 + $0xf0] sm:$0xff] %v215
                %v217 = vld [vmem:[%s153 + $0x1e8] sm:$0xff]
                %218 = vst [vmem:[%s154 + $0xf8] sm:$0xff] %v217
                %v219 = vld [vmem:[%s153 + $0x200] sm:$0xff]
                %220 = vst [vmem:[%s154 + $0x100] sm:$0xff] %v219
                %v221 = vld [vmem:[%s153 + $0x208] sm:$0xff]
                %222 = vst [vmem:[%s154 + $0x108] sm:$0xff] %v221
                %v223 = vld [vmem:[%s153 + $0x220] sm:$0xff]
                %224 = vst [vmem:[%s154 + $0x110] sm:$0xff] %v223
                %v225 = vld [vmem:[%s153 + $0x228] sm:$0xff]
                %226 = vst [vmem:[%s154 + $0x118] sm:$0xff] %v225
                %v227 = vld [vmem:[%s153 + $0x240] sm:$0xff]
                %228 = vst [vmem:[%s154 + $0x120] sm:$0xff] %v227
                %v229 = vld [vmem:[%s153 + $0x248] sm:$0xff]
                %230 = vst [vmem:[%s154 + $0x128] sm:$0xff] %v229
                %v231 = vld [vmem:[%s153 + $0x260] sm:$0xff]
                %232 = vst [vmem:[%s154 + $0x130] sm:$0xff] %v231
                %v233 = vld [vmem:[%s153 + $0x268] sm:$0xff]
                %234 = vst [vmem:[%s154 + $0x138] sm:$0xff] %v233
                %v235 = vld [vmem:[%s153 + $0x280] sm:$0xff]
                %236 = vst [vmem:[%s154 + $0x140] sm:$0xff] %v235
                %v237 = vld [vmem:[%s153 + $0x288] sm:$0xff]
                %238 = vst [vmem:[%s154 + $0x148] sm:$0xff] %v237
                %v239 = vld [vmem:[%s153 + $0x2a0] sm:$0xff]
                %240 = vst [vmem:[%s154 + $0x150] sm:$0xff] %v239
                %v241 = vld [vmem:[%s153 + $0x2a8] sm:$0xff]
                %242 = vst [vmem:[%s154 + $0x158] sm:$0xff] %v241
                %v243 = vld [vmem:[%s153 + $0x2c0] sm:$0xff]
                %244 = vst [vmem:[%s154 + $0x160] sm:$0xff] %v243
                %v245 = vld [vmem:[%s153 + $0x2c8] sm:$0xff]
                %246 = vst [vmem:[%s154 + $0x168] sm:$0xff] %v245
                %v247 = vld [vmem:[%s153 + $0x2e0] sm:$0xff]
                %248 = vst [vmem:[%s154 + $0x170] sm:$0xff] %v247
                %v249 = vld [vmem:[%s153 + $0x2e8] sm:$0xff]
                %250 = vst [vmem:[%s154 + $0x178] sm:$0xff] %v249
                %v251 = vld [vmem:[%s153 + $0x300] sm:$0xff]
                %252 = vst [vmem:[%s154 + $0x180] sm:$0xff] %v251
                %v253 = vld [vmem:[%s153 + $0x308] sm:$0xff]
                %254 = vst [vmem:[%s154 + $0x188] sm:$0xff] %v253
                %v255 = vld [vmem:[%s153 + $0x320] sm:$0xff]
                %256 = vst [vmem:[%s154 + $0x190] sm:$0xff] %v255
                %v257 = vld [vmem:[%s153 + $0x328] sm:$0xff]
                %258 = vst [vmem:[%s154 + $0x198] sm:$0xff] %v257
                %v259 = vld [vmem:[%s153 + $0x340] sm:$0xff]
                %260 = vst [vmem:[%s154 + $0x1a0] sm:$0xff] %v259
                %v261 = vld [vmem:[%s153 + $0x348] sm:$0xff]
                %262 = vst [vmem:[%s154 + $0x1a8] sm:$0xff] %v261
                %v263 = vld [vmem:[%s153 + $0x360] sm:$0xff]
                %264 = vst [vmem:[%s154 + $0x1b0] sm:$0xff] %v263
                %v265 = vld [vmem:[%s153 + $0x368] sm:$0xff]
                %266 = vst [vmem:[%s154 + $0x1b8] sm:$0xff] %v265
                %v267 = vld [vmem:[%s153 + $0x380] sm:$0xff]
                %268 = vst [vmem:[%s154 + $0x1c0] sm:$0xff] %v267
                %v269 = vld [vmem:[%s153 + $0x388] sm:$0xff]
                %270 = vst [vmem:[%s154 + $0x1c8] sm:$0xff] %v269
                %v271 = vld [vmem:[%s153 + $0x3a0] sm:$0xff]
                %272 = vst [vmem:[%s154 + $0x1d0] sm:$0xff] %v271
                %v273 = vld [vmem:[%s153 + $0x3a8] sm:$0xff]
                %274 = vst [vmem:[%s154 + $0x1d8] sm:$0xff] %v273
                %v275 = vld [vmem:[%s153 + $0x3c0] sm:$0xff]
                %276 = vst [vmem:[%s154 + $0x1e0] sm:$0xff] %v275
                %v277 = vld [vmem:[%s153 + $0x3c8] sm:$0xff]
                %278 = vst [vmem:[%s154 + $0x1e8] sm:$0xff] %v277
                %v279 = vld [vmem:[%s153 + $0x3e0] sm:$0xff]
                %280 = vst [vmem:[%s154 + $0x1f0] sm:$0xff] %v279
                %v281 = vld [vmem:[%s153 + $0x3e8] sm:$0xff]
                %282 = vst [vmem:[%s154 + $0x1f8] sm:$0xff] %v281
              $region37: #{vae_forward.5} parent=31 // loop_footer
                %s152 = sadd.s32 1, %s148
              $region38: #{vae_forward.5} parent=31 // loop_footer_branch
                %147 = sbr.rel target = $region34
              $region39: #{vae_forward.5} parent=31 // loop_exit
                _
            $region32: #{vae_forward.5} parent=27 // pred_fallthru
              _
            // Predicated region
            $region40: #{vae_forward.5} parent=27 // pred_check
              _
            $region41: #{vae_forward.5} parent=27 // pred_check_branch
              %284 = sbr.rel target = $region43
            $region42: #{vae_forward.5} parent=27 // pred_region
              _
            $region43: #{vae_forward.5} parent=27 // pred_fallthru
              _
          $region28: #{vae_forward.5} parent=23 // pred_fallthru
            _
          %285 = vnop
        $region24: #{vae_forward.5} parent=19 // pred_fallthru
          _
        // Predicated region
        $region44: #{vae_forward.5} parent=19 // pred_check
          %p286 = pneg %p79
        $region45: #{vae_forward.5} parent=19 // pred_check_branch
          %288 = sbr.rel (%p286) target = $region47
        $region46: #{vae_forward.5} parent=19 // pred_region
          %s289 = smul.u32 4, %s12
          %p290 = scmp.lt.s32.totalorder %s289, 7
          %s291 = scalar_select %p290, %s289, 7
          %s292 = scalar_lea.vmem %s2, %s291
          %s293 = smul.u32 4, %s12
        $region47: #{vae_forward.5} parent=19 // pred_fallthru
          _
      $region20: #{vae_forward.5} parent=5 // pred_fallthru
        _
      %p294 = scmp.le.s32.totalorder 1, %s12
      %p295 = scmp.lt.s32.totalorder %s12, 3
      %p296 = pnand %p294, %p295
      %p297 = pneg %p296
      // Predicated region
      $region48: #{vae_forward.5} parent=5 // pred_check
        _
      $region49: #{vae_forward.5} parent=5 // pred_check_branch
        %299 = sbr.rel (%p296) target = $region51
      $region50: #{vae_forward.5} parent=5 // pred_region
        %s300 = ssub.s32 %s12, 1
        %s301 = sand.u32 %s46, 1
        %s302 = sand.u32 %s46, 1
        %s303 = smul.addr %s302, 512
        %s304 = scalar_lea.vmem [#allocation2], %s303
        // Predicated region
        $region52: #{vae_forward.5} parent=50 // pred_check
          %p305 = pneg %p59
        $region53: #{vae_forward.5} parent=50 // pred_check_branch
          %307 = sbr.rel (%p305) target = $region55
        $region54: #{vae_forward.5} parent=50 // pred_region
          _
        $region55: #{vae_forward.5} parent=50 // pred_fallthru
          _
        %p308 = pneg %p33
        %p309 = pneg %p30
        %s310 = sand.u32 %s46, 1
        %s311 = sand.u32 %s46, 1
        %s312 = smul.addr %s311, 512
        %s313 = scalar_lea.vmem [#allocation2], %s312
        %p314 = pneg %p59
        %p315 = pneg %p56
        %s316 = smul.u32 4, %s17
        %p317 = scmp.lt.s32.totalorder %s316, 7
        %s318 = scalar_select %p317, %s316, 7
        %s319 = scalar_lea.vmem %s2, %s318
        %p320 = pneg %p85
        %p321 = pneg %p82
        %p322 = pneg %p111
        %p323 = pneg %p108
        %s324 = sand.u32 %s98, 1
        %s325 = scalar_lea.sflag [#allocation4], %s324
        %s326 = sand.u32 %s98, 1
        %s327 = smul.addr %s326, 256
        %s328 = scalar_lea.vmem [#allocation3], %s327
        %s329 = smul.u32 4, %s17
        %s330 = smul.u32 4, %s17
        %p331 = scmp.lt.s32.totalorder %s330, 7
        %s332 = scalar_select %p331, %s330, 7
        %s333 = scalar_lea.vmem %s2, %s332
        %s334 = smul.u32 4, %s17
        %s335 = smul.u32 4, %s17
        %v336 = vld [vmem:[%s0] sm:$0xff]
        %v337 = vld [vmem:[%s0 + $0x8] sm:$0xff]
        %v338 = vld [vmem:[%s0 + $0x10] sm:$0xff]
        %v339 = vld [vmem:[%s0 + $0x18] sm:$0xff]
        %v340 = vld [vmem:[%s0 + $0x20] sm:$0xff]
        %v341 = vld [vmem:[%s0 + $0x28] sm:$0xff]
        %v342 = vld [vmem:[%s0 + $0x30] sm:$0xff]
        %v343 = vld [vmem:[%s0 + $0x38] sm:$0xff]
        %v344 = vld [vmem:[%s0 + $0x40] sm:$0xff]
        %v345 = vld [vmem:[%s0 + $0x48] sm:$0xff]
        %v346 = vld [vmem:[%s0 + $0x50] sm:$0xff]
        %v347 = vld [vmem:[%s0 + $0x58] sm:$0xff]
        %v348 = vld [vmem:[%s0 + $0x60] sm:$0xff]
        %v349 = vld [vmem:[%s0 + $0x68] sm:$0xff]
        %v350 = vld [vmem:[%s0 + $0x70] sm:$0xff]
        %v351 = vld [vmem:[%s0 + $0x78] sm:$0xff]
        %v352 = vld [vmem:[%s304] sm:$0xff]
        %v353 = vld [vmem:[%s304 + $0x8] sm:$0xff]
        %v354 = vld [vmem:[%s304 + $0x10] sm:$0xff]
        %v355 = vld [vmem:[%s304 + $0x18] sm:$0xff]
        %v356 = vld [vmem:[%s304 + $0x20] sm:$0xff]
        %v357 = vld [vmem:[%s304 + $0x28] sm:$0xff]
        %v358 = vld [vmem:[%s304 + $0x30] sm:$0xff]
        %v359 = vld [vmem:[%s304 + $0x38] sm:$0xff]
        %v360 = vld [vmem:[%s304 + $0x40] sm:$0xff]
        %v361 = vld [vmem:[%s304 + $0x48] sm:$0xff]
        %v362 = vld [vmem:[%s304 + $0x50] sm:$0xff]
        %v363 = vld [vmem:[%s304 + $0x58] sm:$0xff]
        %v364 = vld [vmem:[%s304 + $0x60] sm:$0xff]
        %v365 = vld [vmem:[%s304 + $0x68] sm:$0xff]
        %v366 = vld [vmem:[%s304 + $0x70] sm:$0xff]
        %v367 = vld [vmem:[%s304 + $0x78] sm:$0xff]
        %v368 = vld [vmem:[%s304 + $0x80] sm:$0xff]
        %v369 = vld [vmem:[%s304 + $0x88] sm:$0xff]
        %v370 = vld [vmem:[%s304 + $0x90] sm:$0xff]
        %v371 = vld [vmem:[%s304 + $0x98] sm:$0xff]
        %v372 = vld [vmem:[%s304 + $0xa0] sm:$0xff]
        %v373 = vld [vmem:[%s304 + $0xa8] sm:$0xff]
        %v374 = vld [vmem:[%s304 + $0xb0] sm:$0xff]
        %v375 = vld [vmem:[%s304 + $0xb8] sm:$0xff]
        %v376 = vld [vmem:[%s304 + $0xc0] sm:$0xff]
        %v377 = vld [vmem:[%s304 + $0xc8] sm:$0xff]
        %v378 = vld [vmem:[%s304 + $0xd0] sm:$0xff]
        %v379 = vld [vmem:[%s304 + $0xd8] sm:$0xff]
        %v380 = vld [vmem:[%s304 + $0xe0] sm:$0xff]
        %v381 = vld [vmem:[%s304 + $0xe8] sm:$0xff]
        %v382 = vld [vmem:[%s304 + $0xf0] sm:$0xff]
        %v383 = vld [vmem:[%s304 + $0xf8] sm:$0xff]
        %v384 = vld [vmem:[%s304 + $0x100] sm:$0xff]
        %v385 = vld [vmem:[%s304 + $0x108] sm:$0xff]
        %v386 = vld [vmem:[%s304 + $0x110] sm:$0xff]
        %v387 = vld [vmem:[%s304 + $0x118] sm:$0xff]
        %v388 = vld [vmem:[%s304 + $0x120] sm:$0xff]
        %v389 = vld [vmem:[%s304 + $0x128] sm:$0xff]
        %v390 = vld [vmem:[%s304 + $0x130] sm:$0xff]
        %v391 = vld [vmem:[%s304 + $0x138] sm:$0xff]
        %v392 = vld [vmem:[%s304 + $0x140] sm:$0xff]
        %v393 = vld [vmem:[%s304 + $0x148] sm:$0xff]
        %v394 = vld [vmem:[%s304 + $0x150] sm:$0xff]
        %v395 = vld [vmem:[%s304 + $0x158] sm:$0xff]
        %v396 = vld [vmem:[%s304 + $0x160] sm:$0xff]
        %v397 = vld [vmem:[%s304 + $0x168] sm:$0xff]
        %v398 = vld [vmem:[%s304 + $0x170] sm:$0xff]
        %v399 = vld [vmem:[%s304 + $0x178] sm:$0xff]
        %v400 = vld [vmem:[%s304 + $0x180] sm:$0xff]
        %v401 = vld [vmem:[%s304 + $0x188] sm:$0xff]
        %v402 = vld [vmem:[%s304 + $0x190] sm:$0xff]
        %v403 = vld [vmem:[%s304 + $0x198] sm:$0xff]
        %v404 = vld [vmem:[%s304 + $0x1a0] sm:$0xff]
        %v405 = vld [vmem:[%s304 + $0x1a8] sm:$0xff]
        %v406 = vld [vmem:[%s304 + $0x1b0] sm:$0xff]
        %v407 = vld [vmem:[%s304 + $0x1b8] sm:$0xff]
        %v408 = vld [vmem:[%s304 + $0x1c0] sm:$0xff]
        %v409 = vld [vmem:[%s304 + $0x1c8] sm:$0xff]
        %v410 = vld [vmem:[%s304 + $0x1d0] sm:$0xff]
        %v411 = vld [vmem:[%s304 + $0x1d8] sm:$0xff]
        %v412 = vld [vmem:[%s304 + $0x1e0] sm:$0xff]
        %v413 = vld [vmem:[%s304 + $0x1e8] sm:$0xff]
        %v414 = vld [vmem:[%s304 + $0x1f0] sm:$0xff]
        %v415 = vld [vmem:[%s304 + $0x1f8] sm:$0xff]
        %v416 = vld [vmem:[%s333] sm:$0xf]
        %v418 = vlaneseq
        %v419 = vshrl.u32 %v418, 7
        %v420 = vsub.s32 0, %v419
        %v421 = vrot.slane %v416, %v420
        %v422 = vlaneseq
        %v423 = vshrl.u32 %v422, 7
        %v424 = vsub.s32 1, %v423
        %v425 = vrot.slane %v416, %v424
        %v426 = vlaneseq
        %v427 = vshrl.u32 %v426, 7
        %v428 = vsub.s32 2, %v427
        %v429 = vrot.slane %v416, %v428
        %v430 = vlaneseq
        %v431 = vshrl.u32 %v430, 7
        %v432 = vsub.s32 3, %v431
        %v433 = vrot.slane %v416, %v432
        %v454 = vunpack.c.l.b16 %v336
        %v455 = vunpack.c.h.b16 %v336
        %v456 = vunpack.c.l.b16 %v337
        %v457 = vunpack.c.h.b16 %v337
        %v458 = vunpack.c.l.b16 %v338
        %v459 = vunpack.c.h.b16 %v338
        %v460 = vunpack.c.l.b16 %v339
        %v461 = vunpack.c.h.b16 %v339
        %v462 = vunpack.c.l.b16 %v340
        %v463 = vunpack.c.h.b16 %v340
        %v464 = vunpack.c.l.b16 %v341
        %v465 = vunpack.c.h.b16 %v341
        %v466 = vunpack.c.l.b16 %v342
        %v467 = vunpack.c.h.b16 %v342
        %v468 = vunpack.c.l.b16 %v343
        %v469 = vunpack.c.h.b16 %v343
        %v470 = vunpack.c.l.b16 %v344
        %v471 = vunpack.c.h.b16 %v344
        %v472 = vunpack.c.l.b16 %v345
        %v473 = vunpack.c.h.b16 %v345
        %v474 = vunpack.c.l.b16 %v346
        %v475 = vunpack.c.h.b16 %v346
        %v476 = vunpack.c.l.b16 %v347
        %v477 = vunpack.c.h.b16 %v347
        %v478 = vunpack.c.l.b16 %v348
        %v479 = vunpack.c.h.b16 %v348
        %v480 = vunpack.c.l.b16 %v349
        %v481 = vunpack.c.h.b16 %v349
        %v482 = vunpack.c.l.b16 %v350
        %v483 = vunpack.c.h.b16 %v350
        %v484 = vunpack.c.l.b16 %v351
        %v485 = vunpack.c.h.b16 %v351
        %v486 = vpack.c.b16 %v456, %v454
        %v487 = vpack.c.b16 %v457, %v455
        %v488 = vpack.c.b16 %v460, %v458
        %v489 = vpack.c.b16 %v461, %v459
        %v490 = vpack.c.b16 %v464, %v462
        %v491 = vpack.c.b16 %v465, %v463
        %v492 = vpack.c.b16 %v468, %v466
        %v493 = vpack.c.b16 %v469, %v467
        %v494 = vpack.c.b16 %v472, %v470
        %v495 = vpack.c.b16 %v473, %v471
        %v496 = vpack.c.b16 %v476, %v474
        %v497 = vpack.c.b16 %v477, %v475
        %v498 = vpack.c.b16 %v480, %v478
        %v499 = vpack.c.b16 %v481, %v479
        %v500 = vpack.c.b16 %v484, %v482
        %v501 = vpack.c.b16 %v485, %v483
        %v582 = vunpack.c.l.b16 %v352
        %v583 = vunpack.c.h.b16 %v352
        %v584 = vunpack.c.l.b16 %v353
        %v585 = vunpack.c.h.b16 %v353
        %v586 = vunpack.c.l.b16 %v354
        %v587 = vunpack.c.h.b16 %v354
        %v588 = vunpack.c.l.b16 %v355
        %v589 = vunpack.c.h.b16 %v355
        %v590 = vunpack.c.l.b16 %v356
        %v591 = vunpack.c.h.b16 %v356
        %v592 = vunpack.c.l.b16 %v357
        %v593 = vunpack.c.h.b16 %v357
        %v594 = vunpack.c.l.b16 %v358
        %v595 = vunpack.c.h.b16 %v358
        %v596 = vunpack.c.l.b16 %v359
        %v597 = vunpack.c.h.b16 %v359
        %v598 = vunpack.c.l.b16 %v360
        %v599 = vunpack.c.h.b16 %v360
        %v600 = vunpack.c.l.b16 %v361
        %v601 = vunpack.c.h.b16 %v361
        %v602 = vunpack.c.l.b16 %v362
        %v603 = vunpack.c.h.b16 %v362
        %v604 = vunpack.c.l.b16 %v363
        %v605 = vunpack.c.h.b16 %v363
        %v606 = vunpack.c.l.b16 %v364
        %v607 = vunpack.c.h.b16 %v364
        %v608 = vunpack.c.l.b16 %v365
        %v609 = vunpack.c.h.b16 %v365
        %v610 = vunpack.c.l.b16 %v366
        %v611 = vunpack.c.h.b16 %v366
        %v612 = vunpack.c.l.b16 %v367
        %v613 = vunpack.c.h.b16 %v367
        %v614 = vunpack.c.l.b16 %v368
        %v615 = vunpack.c.h.b16 %v368
        %v616 = vunpack.c.l.b16 %v369
        %v617 = vunpack.c.h.b16 %v369
        %v618 = vunpack.c.l.b16 %v370
        %v619 = vunpack.c.h.b16 %v370
        %v620 = vunpack.c.l.b16 %v371
        %v621 = vunpack.c.h.b16 %v371
        %v622 = vunpack.c.l.b16 %v372
        %v623 = vunpack.c.h.b16 %v372
        %v624 = vunpack.c.l.b16 %v373
        %v625 = vunpack.c.h.b16 %v373
        %v626 = vunpack.c.l.b16 %v374
        %v627 = vunpack.c.h.b16 %v374
        %v628 = vunpack.c.l.b16 %v375
        %v629 = vunpack.c.h.b16 %v375
        %v630 = vunpack.c.l.b16 %v376
        %v631 = vunpack.c.h.b16 %v376
        %v632 = vunpack.c.l.b16 %v377
        %v633 = vunpack.c.h.b16 %v377
        %v634 = vunpack.c.l.b16 %v378
        %v635 = vunpack.c.h.b16 %v378
        %v636 = vunpack.c.l.b16 %v379
        %v637 = vunpack.c.h.b16 %v379
        %v638 = vunpack.c.l.b16 %v380
        %v639 = vunpack.c.h.b16 %v380
        %v640 = vunpack.c.l.b16 %v381
        %v641 = vunpack.c.h.b16 %v381
        %v642 = vunpack.c.l.b16 %v382
        %v643 = vunpack.c.h.b16 %v382
        %v644 = vunpack.c.l.b16 %v383
        %v645 = vunpack.c.h.b16 %v383
        %v646 = vunpack.c.l.b16 %v384
        %v647 = vunpack.c.h.b16 %v384
        %v648 = vunpack.c.l.b16 %v385
        %v649 = vunpack.c.h.b16 %v385
        %v650 = vunpack.c.l.b16 %v386
        %v651 = vunpack.c.h.b16 %v386
        %v652 = vunpack.c.l.b16 %v387
        %v653 = vunpack.c.h.b16 %v387
        %v654 = vunpack.c.l.b16 %v388
        %v655 = vunpack.c.h.b16 %v388
        %v656 = vunpack.c.l.b16 %v389
        %v657 = vunpack.c.h.b16 %v389
        %v658 = vunpack.c.l.b16 %v390
        %v659 = vunpack.c.h.b16 %v390
        %v660 = vunpack.c.l.b16 %v391
        %v661 = vunpack.c.h.b16 %v391
        %v662 = vunpack.c.l.b16 %v392
        %v663 = vunpack.c.h.b16 %v392
        %v664 = vunpack.c.l.b16 %v393
        %v665 = vunpack.c.h.b16 %v393
        %v666 = vunpack.c.l.b16 %v394
        %v667 = vunpack.c.h.b16 %v394
        %v668 = vunpack.c.l.b16 %v395
        %v669 = vunpack.c.h.b16 %v395
        %v670 = vunpack.c.l.b16 %v396
        %v671 = vunpack.c.h.b16 %v396
        %v672 = vunpack.c.l.b16 %v397
        %v673 = vunpack.c.h.b16 %v397
        %v674 = vunpack.c.l.b16 %v398
        %v675 = vunpack.c.h.b16 %v398
        %v676 = vunpack.c.l.b16 %v399
        %v677 = vunpack.c.h.b16 %v399
        %v678 = vunpack.c.l.b16 %v400
        %v679 = vunpack.c.h.b16 %v400
        %v680 = vunpack.c.l.b16 %v401
        %v681 = vunpack.c.h.b16 %v401
        %v682 = vunpack.c.l.b16 %v402
        %v683 = vunpack.c.h.b16 %v402
        %v684 = vunpack.c.l.b16 %v403
        %v685 = vunpack.c.h.b16 %v403
        %v686 = vunpack.c.l.b16 %v404
        %v687 = vunpack.c.h.b16 %v404
        %v688 = vunpack.c.l.b16 %v405
        %v689 = vunpack.c.h.b16 %v405
        %v690 = vunpack.c.l.b16 %v406
        %v691 = vunpack.c.h.b16 %v406
        %v692 = vunpack.c.l.b16 %v407
        %v693 = vunpack.c.h.b16 %v407
        %v694 = vunpack.c.l.b16 %v408
        %v695 = vunpack.c.h.b16 %v408
        %v696 = vunpack.c.l.b16 %v409
        %v697 = vunpack.c.h.b16 %v409
        %v698 = vunpack.c.l.b16 %v410
        %v699 = vunpack.c.h.b16 %v410
        %v700 = vunpack.c.l.b16 %v411
        %v701 = vunpack.c.h.b16 %v411
        %v702 = vunpack.c.l.b16 %v412
        %v703 = vunpack.c.h.b16 %v412
        %v704 = vunpack.c.l.b16 %v413
        %v705 = vunpack.c.h.b16 %v413
        %v706 = vunpack.c.l.b16 %v414
        %v707 = vunpack.c.h.b16 %v414
        %v708 = vunpack.c.l.b16 %v415
        %v709 = vunpack.c.h.b16 %v415
        %v710 = vpack.c.b16 %v586, %v582
        %v711 = vpack.c.b16 %v587, %v583
        %v712 = vpack.c.b16 %v588, %v584
        %v713 = vpack.c.b16 %v589, %v585
        %v714 = vpack.c.b16 %v594, %v590
        %v715 = vpack.c.b16 %v595, %v591
        %v716 = vpack.c.b16 %v596, %v592
        %v717 = vpack.c.b16 %v597, %v593
        %v718 = vpack.c.b16 %v602, %v598
        %v719 = vpack.c.b16 %v603, %v599
        %v720 = vpack.c.b16 %v604, %v600
        %v721 = vpack.c.b16 %v605, %v601
        %v722 = vpack.c.b16 %v610, %v606
        %v723 = vpack.c.b16 %v611, %v607
        %v724 = vpack.c.b16 %v612, %v608
        %v725 = vpack.c.b16 %v613, %v609
        %v726 = vpack.c.b16 %v618, %v614
        %v727 = vpack.c.b16 %v619, %v615
        %v728 = vpack.c.b16 %v620, %v616
        %v729 = vpack.c.b16 %v621, %v617
        %v730 = vpack.c.b16 %v626, %v622
        %v731 = vpack.c.b16 %v627, %v623
        %v732 = vpack.c.b16 %v628, %v624
        %v733 = vpack.c.b16 %v629, %v625
        %v734 = vpack.c.b16 %v634, %v630
        %v735 = vpack.c.b16 %v635, %v631
        %v736 = vpack.c.b16 %v636, %v632
        %v737 = vpack.c.b16 %v637, %v633
        %v738 = vpack.c.b16 %v642, %v638
        %v739 = vpack.c.b16 %v643, %v639
        %v740 = vpack.c.b16 %v644, %v640
        %v741 = vpack.c.b16 %v645, %v641
        %v742 = vpack.c.b16 %v650, %v646
        %v743 = vpack.c.b16 %v651, %v647
        %v744 = vpack.c.b16 %v652, %v648
        %v745 = vpack.c.b16 %v653, %v649
        %v746 = vpack.c.b16 %v658, %v654
        %v747 = vpack.c.b16 %v659, %v655
        %v748 = vpack.c.b16 %v660, %v656
        %v749 = vpack.c.b16 %v661, %v657
        %v750 = vpack.c.b16 %v666, %v662
        %v751 = vpack.c.b16 %v667, %v663
        %v752 = vpack.c.b16 %v668, %v664
        %v753 = vpack.c.b16 %v669, %v665
        %v754 = vpack.c.b16 %v674, %v670
        %v755 = vpack.c.b16 %v675, %v671
        %v756 = vpack.c.b16 %v676, %v672
        %v757 = vpack.c.b16 %v677, %v673
        %v758 = vpack.c.b16 %v682, %v678
        %v759 = vpack.c.b16 %v683, %v679
        %v760 = vpack.c.b16 %v684, %v680
        %v761 = vpack.c.b16 %v685, %v681
        %v762 = vpack.c.b16 %v690, %v686
        %v763 = vpack.c.b16 %v691, %v687
        %v764 = vpack.c.b16 %v692, %v688
        %v765 = vpack.c.b16 %v693, %v689
        %v766 = vpack.c.b16 %v698, %v694
        %v767 = vpack.c.b16 %v699, %v695
        %v768 = vpack.c.b16 %v700, %v696
        %v769 = vpack.c.b16 %v701, %v697
        %v770 = vpack.c.b16 %v706, %v702
        %v771 = vpack.c.b16 %v707, %v703
        %v772 = vpack.c.b16 %v708, %v704
        %v773 = vpack.c.b16 %v709, %v705
        %838 = vmatprep.subr.bf16.mxu0 %v711
        %839 = vmatpush1.bf16.msra.mxu0 %v710
        %840 = vmatprep.subr.bf16.mxu0 %v715
        %841 = vmatpush1.bf16.msra.mxu0 %v714
        %842 = vmatprep.subr.bf16.mxu0 %v719
        %843 = vmatpush1.bf16.msra.mxu0 %v718
        %844 = vmatprep.subr.bf16.mxu0 %v723
        %845 = vmatpush1.bf16.msra.mxu0 %v722
        %846 = vmatprep.subr.bf16.mxu0 %v727
        %847 = vmatpush1.bf16.msra.mxu0 %v726
        %848 = vmatprep.subr.bf16.mxu0 %v731
        %849 = vmatpush1.bf16.msra.mxu0 %v730
        %850 = vmatprep.subr.bf16.mxu0 %v735
        %851 = vmatpush1.bf16.msra.mxu0 %v734
        %852 = vmatprep.subr.bf16.mxu0 %v739
        %853 = vmatpush1.bf16.msra.mxu0 %v738
        %854 = vmatprep.subr.bf16.mxu0 %v743
        %855 = vmatpush1.bf16.msra.mxu0 %v742
        %856 = vmatprep.subr.bf16.mxu0 %v747
        %857 = vmatpush1.bf16.msra.mxu0 %v746
        %858 = vmatprep.subr.bf16.mxu0 %v751
        %859 = vmatpush1.bf16.msra.mxu0 %v750
        %860 = vmatprep.subr.bf16.mxu0 %v755
        %861 = vmatpush1.bf16.msra.mxu0 %v754
        %862 = vmatprep.subr.bf16.mxu0 %v759
        %863 = vmatpush1.bf16.msra.mxu0 %v758
        %864 = vmatprep.subr.bf16.mxu0 %v763
        %865 = vmatpush1.bf16.msra.mxu0 %v762
        %866 = vmatprep.subr.bf16.mxu0 %v767
        %867 = vmatpush1.bf16.msra.mxu0 %v766
        %868 = vmatprep.subr.bf16.mxu0 %v771
        %869 = vmatpush1.bf16.msra.mxu0 %v770
        %870 = vmatprep.mubr.bf16.mxu0 %v487
        %871 = vmatmul.mubr.bf16.gmra.mrb[0].mxu0 %v486
        %v872 = vpop.f32.mrb[0].mxu0
        %v873 = vadd.f32 %v421, %v872
        %v874 = vpop.f32.mrb[0].mxu0
        %v875 = vadd.f32 %v425, %v874
        %v876 = vpop.f32.mrb[0].mxu0
        %v877 = vadd.f32 %v421, %v876
        %v878 = vpop.f32.mrb[0].mxu0
        %v879 = vadd.f32 %v425, %v878
        %880 = vmatprep.mubr.bf16.mxu0 %v489
        %881 = vmatmul.mubr.bf16.gmra.mrb[0].mxu0 %v488
        %v882 = vpop.f32.mrb[0].mxu0
        %v883 = vadd.f32 %v421, %v882
        %v884 = vpop.f32.mrb[0].mxu0
        %v885 = vadd.f32 %v425, %v884
        %v886 = vpop.f32.mrb[0].mxu0
        %v887 = vadd.f32 %v421, %v886
        %v888 = vpop.f32.mrb[0].mxu0
        %v889 = vadd.f32 %v425, %v888
        %890 = vmatprep.mubr.bf16.mxu0 %v491
        %891 = vmatmul.mubr.bf16.gmra.mrb[0].mxu0 %v490
        %v892 = vpop.f32.mrb[0].mxu0
        %v893 = vadd.f32 %v421, %v892
        %v894 = vpop.f32.mrb[0].mxu0
        %v895 = vadd.f32 %v425, %v894
        %v896 = vpop.f32.mrb[0].mxu0
        %v897 = vadd.f32 %v421, %v896
        %v898 = vpop.f32.mrb[0].mxu0
        %v899 = vadd.f32 %v425, %v898
        %900 = vmatprep.mubr.bf16.mxu0 %v493
        %901 = vmatmul.mubr.bf16.gmra.mrb[0].mxu0 %v492
        %v902 = vpop.f32.mrb[0].mxu0
        %v903 = vadd.f32 %v421, %v902
        %v904 = vpop.f32.mrb[0].mxu0
        %v905 = vadd.f32 %v425, %v904
        %v906 = vpop.f32.mrb[0].mxu0
        %v907 = vadd.f32 %v421, %v906
        %v908 = vpop.f32.mrb[0].mxu0
        %v909 = vadd.f32 %v425, %v908
        %910 = vmatprep.mubr.bf16.mxu0 %v495
        %911 = vmatmul.mubr.bf16.gmra.mrb[0].mxu0 %v494
        %v912 = vpop.f32.mrb[0].mxu0
        %v913 = vadd.f32 %v421, %v912
        %v914 = vpop.f32.mrb[0].mxu0
        %v915 = vadd.f32 %v425, %v914
        %v916 = vpop.f32.mrb[0].mxu0
        %v917 = vadd.f32 %v421, %v916
        %v918 = vpop.f32.mrb[0].mxu0
        %v919 = vadd.f32 %v425, %v918
        %920 = vmatprep.mubr.bf16.mxu0 %v497
        %921 = vmatmul.mubr.bf16.gmra.mrb[0].mxu0 %v496
        %v922 = vpop.f32.mrb[0].mxu0
        %v923 = vadd.f32 %v421, %v922
        %v924 = vpop.f32.mrb[0].mxu0
        %v925 = vadd.f32 %v425, %v924
        %v926 = vpop.f32.mrb[0].mxu0
        %v927 = vadd.f32 %v421, %v926
        %v928 = vpop.f32.mrb[0].mxu0
        %v929 = vadd.f32 %v425, %v928
        %930 = vmatprep.mubr.bf16.mxu0 %v499
        %931 = vmatmul.mubr.bf16.gmra.mrb[0].mxu0 %v498
        %v932 = vpop.f32.mrb[0].mxu0
        %v933 = vadd.f32 %v421, %v932
        %v934 = vpop.f32.mrb[0].mxu0
        %v935 = vadd.f32 %v425, %v934
        %v936 = vpop.f32.mrb[0].mxu0
        %v937 = vadd.f32 %v421, %v936
        %v938 = vpop.f32.mrb[0].mxu0
        %v939 = vadd.f32 %v425, %v938
        %940 = vmatprep.mubr.bf16.mxu0 %v501
        %941 = vmatmul.mubr.bf16.gmra.mrb[0].mxu0 %v500
        %v942 = vpop.f32.mrb[0].mxu0
        %v943 = vadd.f32 %v421, %v942
        %v944 = vpop.f32.mrb[0].mxu0
        %v945 = vadd.f32 %v425, %v944
        %v946 = vpop.f32.mrb[0].mxu0
        %v947 = vadd.f32 %v421, %v946
        %v948 = vpop.f32.mrb[0].mxu0
        %v949 = vadd.f32 %v425, %v948
        %950 = vdwg.mxu0
        %951 = vmatprep.subr.bf16.mxu0 %v713
        %952 = vmatpush1.bf16.msra.mxu0 %v712
        %953 = vmatprep.subr.bf16.mxu0 %v717
        %954 = vmatpush1.bf16.msra.mxu0 %v716
        %955 = vmatprep.subr.bf16.mxu0 %v721
        %956 = vmatpush1.bf16.msra.mxu0 %v720
        %957 = vmatprep.subr.bf16.mxu0 %v725
        %958 = vmatpush1.bf16.msra.mxu0 %v724
        %959 = vmatprep.subr.bf16.mxu0 %v729
        %960 = vmatpush1.bf16.msra.mxu0 %v728
        %961 = vmatprep.subr.bf16.mxu0 %v733
        %962 = vmatpush1.bf16.msra.mxu0 %v732
        %963 = vmatprep.subr.bf16.mxu0 %v737
        %964 = vmatpush1.bf16.msra.mxu0 %v736
        %965 = vmatprep.subr.bf16.mxu0 %v741
        %966 = vmatpush1.bf16.msra.mxu0 %v740
        %967 = vmatprep.subr.bf16.mxu0 %v745
        %968 = vmatpush1.bf16.msra.mxu0 %v744
        %969 = vmatprep.subr.bf16.mxu0 %v749
        %970 = vmatpush1.bf16.msra.mxu0 %v748
        %971 = vmatprep.subr.bf16.mxu0 %v753
        %972 = vmatpush1.bf16.msra.mxu0 %v752
        %973 = vmatprep.subr.bf16.mxu0 %v757
        %974 = vmatpush1.bf16.msra.mxu0 %v756
        %975 = vmatprep.subr.bf16.mxu0 %v761
        %976 = vmatpush1.bf16.msra.mxu0 %v760
        %977 = vmatprep.subr.bf16.mxu0 %v765
        %978 = vmatpush1.bf16.msra.mxu0 %v764
        %979 = vmatprep.subr.bf16.mxu0 %v769
        %980 = vmatpush1.bf16.msra.mxu0 %v768
        %981 = vmatprep.subr.bf16.mxu0 %v773
        %982 = vmatpush1.bf16.msra.mxu0 %v772
        %983 = vmatprep.mubr.bf16.mxu0 %v487
        %984 = vmatmul.mubr.bf16.gmra.mrb[0].mxu0 %v486
        %v985 = vpop.f32.mrb[0].mxu0
        %v986 = vadd.f32 %v429, %v985
        %v987 = vpop.f32.mrb[0].mxu0
        %v988 = vadd.f32 %v433, %v987
        %v989 = vpop.f32.mrb[0].mxu0
        %v990 = vadd.f32 %v429, %v989
        %v991 = vpop.f32.mrb[0].mxu0
        %v992 = vadd.f32 %v433, %v991
        %993 = vmatprep.mubr.bf16.mxu0 %v489
        %994 = vmatmul.mubr.bf16.gmra.mrb[0].mxu0 %v488
        %v995 = vpop.f32.mrb[0].mxu0
        %v996 = vadd.f32 %v429, %v995
        %v997 = vpop.f32.mrb[0].mxu0
        %v998 = vadd.f32 %v433, %v997
        %v999 = vpop.f32.mrb[0].mxu0
        %v1000 = vadd.f32 %v429, %v999
        %v1001 = vpop.f32.mrb[0].mxu0
        %v1002 = vadd.f32 %v433, %v1001
        %1003 = vmatprep.mubr.bf16.mxu0 %v491
        %1004 = vmatmul.mubr.bf16.gmra.mrb[0].mxu0 %v490
        %v1005 = vpop.f32.mrb[0].mxu0
        %v1006 = vadd.f32 %v429, %v1005
        %v1007 = vpop.f32.mrb[0].mxu0
        %v1008 = vadd.f32 %v433, %v1007
        %v1009 = vpop.f32.mrb[0].mxu0
        %v1010 = vadd.f32 %v429, %v1009
        %v1011 = vpop.f32.mrb[0].mxu0
        %v1012 = vadd.f32 %v433, %v1011
        %1013 = vmatprep.mubr.bf16.mxu0 %v493
        %1014 = vmatmul.mubr.bf16.gmra.mrb[0].mxu0 %v492
        %v1015 = vpop.f32.mrb[0].mxu0
        %v1016 = vadd.f32 %v429, %v1015
        %v1017 = vpop.f32.mrb[0].mxu0
        %v1018 = vadd.f32 %v433, %v1017
        %v1019 = vpop.f32.mrb[0].mxu0
        %v1020 = vadd.f32 %v429, %v1019
        %v1021 = vpop.f32.mrb[0].mxu0
        %v1022 = vadd.f32 %v433, %v1021
        %1023 = vmatprep.mubr.bf16.mxu0 %v495
        %1024 = vmatmul.mubr.bf16.gmra.mrb[0].mxu0 %v494
        %v1025 = vpop.f32.mrb[0].mxu0
        %v1026 = vadd.f32 %v429, %v1025
        %v1027 = vpop.f32.mrb[0].mxu0
        %v1028 = vadd.f32 %v433, %v1027
        %v1029 = vpop.f32.mrb[0].mxu0
        %v1030 = vadd.f32 %v429, %v1029
        %v1031 = vpop.f32.mrb[0].mxu0
        %v1032 = vadd.f32 %v433, %v1031
        %1033 = vmatprep.mubr.bf16.mxu0 %v497
        %1034 = vmatmul.mubr.bf16.gmra.mrb[0].mxu0 %v496
        %v1035 = vpop.f32.mrb[0].mxu0
        %v1036 = vadd.f32 %v429, %v1035
        %v1037 = vpop.f32.mrb[0].mxu0
        %v1038 = vadd.f32 %v433, %v1037
        %v1039 = vpop.f32.mrb[0].mxu0
        %v1040 = vadd.f32 %v429, %v1039
        %v1041 = vpop.f32.mrb[0].mxu0
        %v1042 = vadd.f32 %v433, %v1041
        %1043 = vmatprep.mubr.bf16.mxu0 %v499
        %1044 = vmatmul.mubr.bf16.gmra.mrb[0].mxu0 %v498
        %v1045 = vpop.f32.mrb[0].mxu0
        %v1046 = vadd.f32 %v429, %v1045
        %v1047 = vpop.f32.mrb[0].mxu0
        %v1048 = vadd.f32 %v433, %v1047
        %v1049 = vpop.f32.mrb[0].mxu0
        %v1050 = vadd.f32 %v429, %v1049
        %v1051 = vpop.f32.mrb[0].mxu0
        %v1052 = vadd.f32 %v433, %v1051
        %1053 = vmatprep.mubr.bf16.mxu0 %v501
        %1054 = vmatmul.mubr.bf16.gmra.mrb[0].mxu0 %v500
        %v1055 = vpop.f32.mrb[0].mxu0
        %v1056 = vadd.f32 %v429, %v1055
        %v1057 = vpop.f32.mrb[0].mxu0
        %v1058 = vadd.f32 %v433, %v1057
        %v1059 = vpop.f32.mrb[0].mxu0
        %v1060 = vadd.f32 %v429, %v1059
        %v1061 = vpop.f32.mrb[0].mxu0
        %v1062 = vadd.f32 %v433, %v1061
        %1063 = vdwg.mxu0
        %v1064 = vxor.u32 %v873, 2147483648
        %v1065 = vxor.u32 %v875, 2147483648
        %v1066 = vxor.u32 %v986, 2147483648
        %v1067 = vxor.u32 %v988, 2147483648
        %v1068 = vxor.u32 %v877, 2147483648
        %v1069 = vxor.u32 %v879, 2147483648
        %v1070 = vxor.u32 %v990, 2147483648
        %v1071 = vxor.u32 %v992, 2147483648
        %v1072 = vxor.u32 %v883, 2147483648
        %v1073 = vxor.u32 %v885, 2147483648
        %v1074 = vxor.u32 %v996, 2147483648
        %v1075 = vxor.u32 %v998, 2147483648
        %v1076 = vxor.u32 %v887, 2147483648
        %v1077 = vxor.u32 %v889, 2147483648
        %v1078 = vxor.u32 %v1000, 2147483648
        %v1079 = vxor.u32 %v1002, 2147483648
        %v1080 = vxor.u32 %v893, 2147483648
        %v1081 = vxor.u32 %v895, 2147483648
        %v1082 = vxor.u32 %v1006, 2147483648
        %v1083 = vxor.u32 %v1008, 2147483648
        %v1084 = vxor.u32 %v897, 2147483648
        %v1085 = vxor.u32 %v899, 2147483648
        %v1086 = vxor.u32 %v1010, 2147483648
        %v1087 = vxor.u32 %v1012, 2147483648
        %v1088 = vxor.u32 %v903, 2147483648
        %v1089 = vxor.u32 %v905, 2147483648
        %v1090 = vxor.u32 %v1016, 2147483648
        %v1091 = vxor.u32 %v1018, 2147483648
        %v1092 = vxor.u32 %v907, 2147483648
        %v1093 = vxor.u32 %v909, 2147483648
        %v1094 = vxor.u32 %v1020, 2147483648
        %v1095 = vxor.u32 %v1022, 2147483648
        %v1096 = vxor.u32 %v913, 2147483648
        %v1097 = vxor.u32 %v915, 2147483648
        %v1098 = vxor.u32 %v1026, 2147483648
        %v1099 = vxor.u32 %v1028, 2147483648
        %v1100 = vxor.u32 %v917, 2147483648
        %v1101 = vxor.u32 %v919, 2147483648
        %v1102 = vxor.u32 %v1030, 2147483648
        %v1103 = vxor.u32 %v1032, 2147483648
        %v1104 = vxor.u32 %v923, 2147483648
        %v1105 = vxor.u32 %v925, 2147483648
        %v1106 = vxor.u32 %v1036, 2147483648
        %v1107 = vxor.u32 %v1038, 2147483648
        %v1108 = vxor.u32 %v927, 2147483648
        %v1109 = vxor.u32 %v929, 2147483648
        %v1110 = vxor.u32 %v1040, 2147483648
        %v1111 = vxor.u32 %v1042, 2147483648
        %v1112 = vxor.u32 %v933, 2147483648
        %v1113 = vxor.u32 %v935, 2147483648
        %v1114 = vxor.u32 %v1046, 2147483648
        %v1115 = vxor.u32 %v1048, 2147483648
        %v1116 = vxor.u32 %v937, 2147483648
        %v1117 = vxor.u32 %v939, 2147483648
        %v1118 = vxor.u32 %v1050, 2147483648
        %v1119 = vxor.u32 %v1052, 2147483648
        %v1120 = vxor.u32 %v943, 2147483648
        %v1121 = vxor.u32 %v945, 2147483648
        %v1122 = vxor.u32 %v1056, 2147483648
        %v1123 = vxor.u32 %v1058, 2147483648
        %v1124 = vxor.u32 %v947, 2147483648
        %v1125 = vxor.u32 %v949, 2147483648
        %v1126 = vxor.u32 %v1060, 2147483648
        %v1127 = vxor.u32 %v1062, 2147483648
        %v1128 = vmul.f32 %v1064, 1.442695
        %v1129 = vpow.pop %v1128
        %v1130 = vmul.f32 %v1065, 1.442695
        %v1131 = vpow.pop %v1130
        %v1132 = vmul.f32 %v1066, 1.442695
        %v1133 = vpow.pop %v1132
        %v1134 = vmul.f32 %v1067, 1.442695
        %v1135 = vpow.pop %v1134
        %v1136 = vmul.f32 %v1068, 1.442695
        %v1137 = vpow.pop %v1136
        %v1138 = vmul.f32 %v1069, 1.442695
        %v1139 = vpow.pop %v1138
        %v1140 = vmul.f32 %v1070, 1.442695
        %v1141 = vpow.pop %v1140
        %v1142 = vmul.f32 %v1071, 1.442695
        %v1143 = vpow.pop %v1142
        %v1144 = vmul.f32 %v1072, 1.442695
        %v1145 = vpow.pop %v1144
        %v1146 = vmul.f32 %v1073, 1.442695
        %v1147 = vpow.pop %v1146
        %v1148 = vmul.f32 %v1074, 1.442695
        %v1149 = vpow.pop %v1148
        %v1150 = vmul.f32 %v1075, 1.442695
        %v1151 = vpow.pop %v1150
        %v1152 = vmul.f32 %v1076, 1.442695
        %v1153 = vpow.pop %v1152
        %v1154 = vmul.f32 %v1077, 1.442695
        %v1155 = vpow.pop %v1154
        %v1156 = vmul.f32 %v1078, 1.442695
        %v1157 = vpow.pop %v1156
        %v1158 = vmul.f32 %v1079, 1.442695
        %v1159 = vpow.pop %v1158
        %v1160 = vmul.f32 %v1080, 1.442695
        %v1161 = vpow.pop %v1160
        %v1162 = vmul.f32 %v1081, 1.442695
        %v1163 = vpow.pop %v1162
        %v1164 = vmul.f32 %v1082, 1.442695
        %v1165 = vpow.pop %v1164
        %v1166 = vmul.f32 %v1083, 1.442695
        %v1167 = vpow.pop %v1166
        %v1168 = vmul.f32 %v1084, 1.442695
        %v1169 = vpow.pop %v1168
        %v1170 = vmul.f32 %v1085, 1.442695
        %v1171 = vpow.pop %v1170
        %v1172 = vmul.f32 %v1086, 1.442695
        %v1173 = vpow.pop %v1172
        %v1174 = vmul.f32 %v1087, 1.442695
        %v1175 = vpow.pop %v1174
        %v1176 = vmul.f32 %v1088, 1.442695
        %v1177 = vpow.pop %v1176
        %v1178 = vmul.f32 %v1089, 1.442695
        %v1179 = vpow.pop %v1178
        %v1180 = vmul.f32 %v1090, 1.442695
        %v1181 = vpow.pop %v1180
        %v1182 = vmul.f32 %v1091, 1.442695
        %v1183 = vpow.pop %v1182
        %v1184 = vmul.f32 %v1092, 1.442695
        %v1185 = vpow.pop %v1184
        %v1186 = vmul.f32 %v1093, 1.442695
        %v1187 = vpow.pop %v1186
        %v1188 = vmul.f32 %v1094, 1.442695
        %v1189 = vpow.pop %v1188
        %v1190 = vmul.f32 %v1095, 1.442695
        %v1191 = vpow.pop %v1190
        %v1192 = vmul.f32 %v1096, 1.442695
        %v1193 = vpow.pop %v1192
        %v1194 = vmul.f32 %v1097, 1.442695
        %v1195 = vpow.pop %v1194
        %v1196 = vmul.f32 %v1098, 1.442695
        %v1197 = vpow.pop %v1196
        %v1198 = vmul.f32 %v1099, 1.442695
        %v1199 = vpow.pop %v1198
        %v1200 = vmul.f32 %v1100, 1.442695
        %v1201 = vpow.pop %v1200
        %v1202 = vmul.f32 %v1101, 1.442695
        %v1203 = vpow.pop %v1202
        %v1204 = vmul.f32 %v1102, 1.442695
        %v1205 = vpow.pop %v1204
        %v1206 = vmul.f32 %v1103, 1.442695
        %v1207 = vpow.pop %v1206
        %v1208 = vmul.f32 %v1104, 1.442695
        %v1209 = vpow.pop %v1208
        %v1210 = vmul.f32 %v1105, 1.442695
        %v1211 = vpow.pop %v1210
        %v1212 = vmul.f32 %v1106, 1.442695
        %v1213 = vpow.pop %v1212
        %v1214 = vmul.f32 %v1107, 1.442695
        %v1215 = vpow.pop %v1214
        %v1216 = vmul.f32 %v1108, 1.442695
        %v1217 = vpow.pop %v1216
        %v1218 = vmul.f32 %v1109, 1.442695
        %v1219 = vpow.pop %v1218
        %v1220 = vmul.f32 %v1110, 1.442695
        %v1221 = vpow.pop %v1220
        %v1222 = vmul.f32 %v1111, 1.442695
        %v1223 = vpow.pop %v1222
        %v1224 = vmul.f32 %v1112, 1.442695
        %v1225 = vpow.pop %v1224
        %v1226 = vmul.f32 %v1113, 1.442695
        %v1227 = vpow.pop %v1226
        %v1228 = vmul.f32 %v1114, 1.442695
        %v1229 = vpow.pop %v1228
        %v1230 = vmul.f32 %v1115, 1.442695
        %v1231 = vpow.pop %v1230
        %v1232 = vmul.f32 %v1116, 1.442695
        %v1233 = vpow.pop %v1232
        %v1234 = vmul.f32 %v1117, 1.442695
        %v1235 = vpow.pop %v1234
        %v1236 = vmul.f32 %v1118, 1.442695
        %v1237 = vpow.pop %v1236
        %v1238 = vmul.f32 %v1119, 1.442695
        %v1239 = vpow.pop %v1238
        %v1240 = vmul.f32 %v1120, 1.442695
        %v1241 = vpow.pop %v1240
        %v1242 = vmul.f32 %v1121, 1.442695
        %v1243 = vpow.pop %v1242
        %v1244 = vmul.f32 %v1122, 1.442695
        %v1245 = vpow.pop %v1244
        %v1246 = vmul.f32 %v1123, 1.442695
        %v1247 = vpow.pop %v1246
        %v1248 = vmul.f32 %v1124, 1.442695
        %v1249 = vpow.pop %v1248
        %v1250 = vmul.f32 %v1125, 1.442695
        %v1251 = vpow.pop %v1250
        %v1252 = vmul.f32 %v1126, 1.442695
        %v1253 = vpow.pop %v1252
        %v1254 = vmul.f32 %v1127, 1.442695
        %v1255 = vpow.pop %v1254
        %v1256 = vadd.f32 %v1129, 1.0
        %v1257 = vadd.f32 %v1131, 1.0
        %v1258 = vadd.f32 %v1133, 1.0
        %v1259 = vadd.f32 %v1135, 1.0
        %v1260 = vadd.f32 %v1137, 1.0
        %v1261 = vadd.f32 %v1139, 1.0
        %v1262 = vadd.f32 %v1141, 1.0
        %v1263 = vadd.f32 %v1143, 1.0
        %v1264 = vadd.f32 %v1145, 1.0
        %v1265 = vadd.f32 %v1147, 1.0
        %v1266 = vadd.f32 %v1149, 1.0
        %v1267 = vadd.f32 %v1151, 1.0
        %v1268 = vadd.f32 %v1153, 1.0
        %v1269 = vadd.f32 %v1155, 1.0
        %v1270 = vadd.f32 %v1157, 1.0
        %v1271 = vadd.f32 %v1159, 1.0
        %v1272 = vadd.f32 %v1161, 1.0
        %v1273 = vadd.f32 %v1163, 1.0
        %v1274 = vadd.f32 %v1165, 1.0
        %v1275 = vadd.f32 %v1167, 1.0
        %v1276 = vadd.f32 %v1169, 1.0
        %v1277 = vadd.f32 %v1171, 1.0
        %v1278 = vadd.f32 %v1173, 1.0
        %v1279 = vadd.f32 %v1175, 1.0
        %v1280 = vadd.f32 %v1177, 1.0
        %v1281 = vadd.f32 %v1179, 1.0
        %v1282 = vadd.f32 %v1181, 1.0
        %v1283 = vadd.f32 %v1183, 1.0
        %v1284 = vadd.f32 %v1185, 1.0
        %v1285 = vadd.f32 %v1187, 1.0
        %v1286 = vadd.f32 %v1189, 1.0
        %v1287 = vadd.f32 %v1191, 1.0
        %v1288 = vadd.f32 %v1193, 1.0
        %v1289 = vadd.f32 %v1195, 1.0
        %v1290 = vadd.f32 %v1197, 1.0
        %v1291 = vadd.f32 %v1199, 1.0
        %v1292 = vadd.f32 %v1201, 1.0
        %v1293 = vadd.f32 %v1203, 1.0
        %v1294 = vadd.f32 %v1205, 1.0
        %v1295 = vadd.f32 %v1207, 1.0
        %v1296 = vadd.f32 %v1209, 1.0
        %v1297 = vadd.f32 %v1211, 1.0
        %v1298 = vadd.f32 %v1213, 1.0
        %v1299 = vadd.f32 %v1215, 1.0
        %v1300 = vadd.f32 %v1217, 1.0
        %v1301 = vadd.f32 %v1219, 1.0
        %v1302 = vadd.f32 %v1221, 1.0
        %v1303 = vadd.f32 %v1223, 1.0
        %v1304 = vadd.f32 %v1225, 1.0
        %v1305 = vadd.f32 %v1227, 1.0
        %v1306 = vadd.f32 %v1229, 1.0
        %v1307 = vadd.f32 %v1231, 1.0
        %v1308 = vadd.f32 %v1233, 1.0
        %v1309 = vadd.f32 %v1235, 1.0
        %v1310 = vadd.f32 %v1237, 1.0
        %v1311 = vadd.f32 %v1239, 1.0
        %v1312 = vadd.f32 %v1241, 1.0
        %v1313 = vadd.f32 %v1243, 1.0
        %v1314 = vadd.f32 %v1245, 1.0
        %v1315 = vadd.f32 %v1247, 1.0
        %v1316 = vadd.f32 %v1249, 1.0
        %v1317 = vadd.f32 %v1251, 1.0
        %v1318 = vadd.f32 %v1253, 1.0
        %v1319 = vadd.f32 %v1255, 1.0
        %v1320 = vrcp.pop %v1256
        %v1321 = vmul.f32 1.0, %v1320
        %v1322 = vrcp.pop %v1257
        %v1323 = vmul.f32 1.0, %v1322
        %v1324 = vrcp.pop %v1258
        %v1325 = vmul.f32 1.0, %v1324
        %v1326 = vrcp.pop %v1259
        %v1327 = vmul.f32 1.0, %v1326
        %v1328 = vrcp.pop %v1260
        %v1329 = vmul.f32 1.0, %v1328
        %v1330 = vrcp.pop %v1261
        %v1331 = vmul.f32 1.0, %v1330
        %v1332 = vrcp.pop %v1262
        %v1333 = vmul.f32 1.0, %v1332
        %v1334 = vrcp.pop %v1263
        %v1335 = vmul.f32 1.0, %v1334
        %v1336 = vrcp.pop %v1264
        %v1337 = vmul.f32 1.0, %v1336
        %v1338 = vrcp.pop %v1265
        %v1339 = vmul.f32 1.0, %v1338
        %v1340 = vrcp.pop %v1266
        %v1341 = vmul.f32 1.0, %v1340
        %v1342 = vrcp.pop %v1267
        %v1343 = vmul.f32 1.0, %v1342
        %v1344 = vrcp.pop %v1268
        %v1345 = vmul.f32 1.0, %v1344
        %v1346 = vrcp.pop %v1269
        %v1347 = vmul.f32 1.0, %v1346
        %v1348 = vrcp.pop %v1270
        %v1349 = vmul.f32 1.0, %v1348
        %v1350 = vrcp.pop %v1271
        %v1351 = vmul.f32 1.0, %v1350
        %v1352 = vrcp.pop %v1272
        %v1353 = vmul.f32 1.0, %v1352
        %v1354 = vrcp.pop %v1273
        %v1355 = vmul.f32 1.0, %v1354
        %v1356 = vrcp.pop %v1274
        %v1357 = vmul.f32 1.0, %v1356
        %v1358 = vrcp.pop %v1275
        %v1359 = vmul.f32 1.0, %v1358
        %v1360 = vrcp.pop %v1276
        %v1361 = vmul.f32 1.0, %v1360
        %v1362 = vrcp.pop %v1277
        %v1363 = vmul.f32 1.0, %v1362
        %v1364 = vrcp.pop %v1278
        %v1365 = vmul.f32 1.0, %v1364
        %v1366 = vrcp.pop %v1279
        %v1367 = vmul.f32 1.0, %v1366
        %v1368 = vrcp.pop %v1280
        %v1369 = vmul.f32 1.0, %v1368
        %v1370 = vrcp.pop %v1281
        %v1371 = vmul.f32 1.0, %v1370
        %v1372 = vrcp.pop %v1282
        %v1373 = vmul.f32 1.0, %v1372
        %v1374 = vrcp.pop %v1283
        %v1375 = vmul.f32 1.0, %v1374
        %v1376 = vrcp.pop %v1284
        %v1377 = vmul.f32 1.0, %v1376
        %v1378 = vrcp.pop %v1285
        %v1379 = vmul.f32 1.0, %v1378
        %v1380 = vrcp.pop %v1286
        %v1381 = vmul.f32 1.0, %v1380
        %v1382 = vrcp.pop %v1287
        %v1383 = vmul.f32 1.0, %v1382
        %v1384 = vrcp.pop %v1288
        %v1385 = vmul.f32 1.0, %v1384
        %v1386 = vrcp.pop %v1289
        %v1387 = vmul.f32 1.0, %v1386
        %v1388 = vrcp.pop %v1290
        %v1389 = vmul.f32 1.0, %v1388
        %v1390 = vrcp.pop %v1291
        %v1391 = vmul.f32 1.0, %v1390
        %v1392 = vrcp.pop %v1292
        %v1393 = vmul.f32 1.0, %v1392
        %v1394 = vrcp.pop %v1293
        %v1395 = vmul.f32 1.0, %v1394
        %v1396 = vrcp.pop %v1294
        %v1397 = vmul.f32 1.0, %v1396
        %v1398 = vrcp.pop %v1295
        %v1399 = vmul.f32 1.0, %v1398
        %v1400 = vrcp.pop %v1296
        %v1401 = vmul.f32 1.0, %v1400
        %v1402 = vrcp.pop %v1297
        %v1403 = vmul.f32 1.0, %v1402
        %v1404 = vrcp.pop %v1298
        %v1405 = vmul.f32 1.0, %v1404
        %v1406 = vrcp.pop %v1299
        %v1407 = vmul.f32 1.0, %v1406
        %v1408 = vrcp.pop %v1300
        %v1409 = vmul.f32 1.0, %v1408
        %v1410 = vrcp.pop %v1301
        %v1411 = vmul.f32 1.0, %v1410
        %v1412 = vrcp.pop %v1302
        %v1413 = vmul.f32 1.0, %v1412
        %v1414 = vrcp.pop %v1303
        %v1415 = vmul.f32 1.0, %v1414
        %v1416 = vrcp.pop %v1304
        %v1417 = vmul.f32 1.0, %v1416
        %v1418 = vrcp.pop %v1305
        %v1419 = vmul.f32 1.0, %v1418
        %v1420 = vrcp.pop %v1306
        %v1421 = vmul.f32 1.0, %v1420
        %v1422 = vrcp.pop %v1307
        %v1423 = vmul.f32 1.0, %v1422
        %v1424 = vrcp.pop %v1308
        %v1425 = vmul.f32 1.0, %v1424
        %v1426 = vrcp.pop %v1309
        %v1427 = vmul.f32 1.0, %v1426
        %v1428 = vrcp.pop %v1310
        %v1429 = vmul.f32 1.0, %v1428
        %v1430 = vrcp.pop %v1311
        %v1431 = vmul.f32 1.0, %v1430
        %v1432 = vrcp.pop %v1312
        %v1433 = vmul.f32 1.0, %v1432
        %v1434 = vrcp.pop %v1313
        %v1435 = vmul.f32 1.0, %v1434
        %v1436 = vrcp.pop %v1314
        %v1437 = vmul.f32 1.0, %v1436
        %v1438 = vrcp.pop %v1315
        %v1439 = vmul.f32 1.0, %v1438
        %v1440 = vrcp.pop %v1316
        %v1441 = vmul.f32 1.0, %v1440
        %v1442 = vrcp.pop %v1317
        %v1443 = vmul.f32 1.0, %v1442
        %v1444 = vrcp.pop %v1318
        %v1445 = vmul.f32 1.0, %v1444
        %v1446 = vrcp.pop %v1319
        %v1447 = vmul.f32 1.0, %v1446
        %v1448 = vpack.c.bf16 %v1329, %v1321
        %v1449 = vpack.c.bf16 %v1331, %v1323
        %v1450 = vpack.c.bf16 %v1333, %v1325
        %v1451 = vpack.c.bf16 %v1335, %v1327
        %v1452 = vpack.c.bf16 %v1345, %v1337
        %v1453 = vpack.c.bf16 %v1347, %v1339
        %v1454 = vpack.c.bf16 %v1349, %v1341
        %v1455 = vpack.c.bf16 %v1351, %v1343
        %v1456 = vpack.c.bf16 %v1361, %v1353
        %v1457 = vpack.c.bf16 %v1363, %v1355
        %v1458 = vpack.c.bf16 %v1365, %v1357
        %v1459 = vpack.c.bf16 %v1367, %v1359
        %v1460 = vpack.c.bf16 %v1377, %v1369
        %v1461 = vpack.c.bf16 %v1379, %v1371
        %v1462 = vpack.c.bf16 %v1381, %v1373
        %v1463 = vpack.c.bf16 %v1383, %v1375
        %v1464 = vpack.c.bf16 %v1393, %v1385
        %v1465 = vpack.c.bf16 %v1395, %v1387
        %v1466 = vpack.c.bf16 %v1397, %v1389
        %v1467 = vpack.c.bf16 %v1399, %v1391
        %v1468 = vpack.c.bf16 %v1409, %v1401
        %v1469 = vpack.c.bf16 %v1411, %v1403
        %v1470 = vpack.c.bf16 %v1413, %v1405
        %v1471 = vpack.c.bf16 %v1415, %v1407
        %v1472 = vpack.c.bf16 %v1425, %v1417
        %v1473 = vpack.c.bf16 %v1427, %v1419
        %v1474 = vpack.c.bf16 %v1429, %v1421
        %v1475 = vpack.c.bf16 %v1431, %v1423
        %v1476 = vpack.c.bf16 %v1441, %v1433
        %v1477 = vpack.c.bf16 %v1443, %v1435
        %v1478 = vpack.c.bf16 %v1445, %v1437
        %v1479 = vpack.c.bf16 %v1447, %v1439
        %v1512 = vunpack.c.l.b16 %v1448
        %v1513 = vunpack.c.l.b16 %v1449
        %v1514 = vunpack.c.l.b16 %v1450
        %v1515 = vunpack.c.l.b16 %v1451
        %v1516 = vunpack.c.h.b16 %v1448
        %v1517 = vunpack.c.h.b16 %v1449
        %v1518 = vunpack.c.h.b16 %v1450
        %v1519 = vunpack.c.h.b16 %v1451
        %v1520 = vunpack.c.l.b16 %v1452
        %v1521 = vunpack.c.l.b16 %v1453
        %v1522 = vunpack.c.l.b16 %v1454
        %v1523 = vunpack.c.l.b16 %v1455
        %v1524 = vunpack.c.h.b16 %v1452
        %v1525 = vunpack.c.h.b16 %v1453
        %v1526 = vunpack.c.h.b16 %v1454
        %v1527 = vunpack.c.h.b16 %v1455
        %v1528 = vunpack.c.l.b16 %v1456
        %v1529 = vunpack.c.l.b16 %v1457
        %v1530 = vunpack.c.l.b16 %v1458
        %v1531 = vunpack.c.l.b16 %v1459
        %v1532 = vunpack.c.h.b16 %v1456
        %v1533 = vunpack.c.h.b16 %v1457
        %v1534 = vunpack.c.h.b16 %v1458
        %v1535 = vunpack.c.h.b16 %v1459
        %v1536 = vunpack.c.l.b16 %v1460
        %v1537 = vunpack.c.l.b16 %v1461
        %v1538 = vunpack.c.l.b16 %v1462
        %v1539 = vunpack.c.l.b16 %v1463
        %v1540 = vunpack.c.h.b16 %v1460
        %v1541 = vunpack.c.h.b16 %v1461
        %v1542 = vunpack.c.h.b16 %v1462
        %v1543 = vunpack.c.h.b16 %v1463
        %v1544 = vunpack.c.l.b16 %v1464
        %v1545 = vunpack.c.l.b16 %v1465
        %v1546 = vunpack.c.l.b16 %v1466
        %v1547 = vunpack.c.l.b16 %v1467
        %v1548 = vunpack.c.h.b16 %v1464
        %v1549 = vunpack.c.h.b16 %v1465
        %v1550 = vunpack.c.h.b16 %v1466
        %v1551 = vunpack.c.h.b16 %v1467
        %v1552 = vunpack.c.l.b16 %v1468
        %v1553 = vunpack.c.l.b16 %v1469
        %v1554 = vunpack.c.l.b16 %v1470
        %v1555 = vunpack.c.l.b16 %v1471
        %v1556 = vunpack.c.h.b16 %v1468
        %v1557 = vunpack.c.h.b16 %v1469
        %v1558 = vunpack.c.h.b16 %v1470
        %v1559 = vunpack.c.h.b16 %v1471
        %v1560 = vunpack.c.l.b16 %v1472
        %v1561 = vunpack.c.l.b16 %v1473
        %v1562 = vunpack.c.l.b16 %v1474
        %v1563 = vunpack.c.l.b16 %v1475
        %v1564 = vunpack.c.h.b16 %v1472
        %v1565 = vunpack.c.h.b16 %v1473
        %v1566 = vunpack.c.h.b16 %v1474
        %v1567 = vunpack.c.h.b16 %v1475
        %v1568 = vunpack.c.l.b16 %v1476
        %v1569 = vunpack.c.l.b16 %v1477
        %v1570 = vunpack.c.l.b16 %v1478
        %v1571 = vunpack.c.l.b16 %v1479
        %v1572 = vunpack.c.h.b16 %v1476
        %v1573 = vunpack.c.h.b16 %v1477
        %v1574 = vunpack.c.h.b16 %v1478
        %v1575 = vunpack.c.h.b16 %v1479
        %v1576 = vpack.c.b16 %v1513, %v1512
        %v1577 = vpack.c.b16 %v1515, %v1514
        %v1578 = vpack.c.b16 %v1517, %v1516
        %v1579 = vpack.c.b16 %v1519, %v1518
        %v1580 = vpack.c.b16 %v1521, %v1520
        %v1581 = vpack.c.b16 %v1523, %v1522
        %v1582 = vpack.c.b16 %v1525, %v1524
        %v1583 = vpack.c.b16 %v1527, %v1526
        %v1584 = vpack.c.b16 %v1529, %v1528
        %v1585 = vpack.c.b16 %v1531, %v1530
        %v1586 = vpack.c.b16 %v1533, %v1532
        %v1587 = vpack.c.b16 %v1535, %v1534
        %v1588 = vpack.c.b16 %v1537, %v1536
        %v1589 = vpack.c.b16 %v1539, %v1538
        %v1590 = vpack.c.b16 %v1541, %v1540
        %v1591 = vpack.c.b16 %v1543, %v1542
        %v1592 = vpack.c.b16 %v1545, %v1544
        %v1593 = vpack.c.b16 %v1547, %v1546
        %v1594 = vpack.c.b16 %v1549, %v1548
        %v1595 = vpack.c.b16 %v1551, %v1550
        %v1596 = vpack.c.b16 %v1553, %v1552
        %v1597 = vpack.c.b16 %v1555, %v1554
        %v1598 = vpack.c.b16 %v1557, %v1556
        %v1599 = vpack.c.b16 %v1559, %v1558
        %v1600 = vpack.c.b16 %v1561, %v1560
        %v1601 = vpack.c.b16 %v1563, %v1562
        %v1602 = vpack.c.b16 %v1565, %v1564
        %v1603 = vpack.c.b16 %v1567, %v1566
        %v1604 = vpack.c.b16 %v1569, %v1568
        %v1605 = vpack.c.b16 %v1571, %v1570
        %v1606 = vpack.c.b16 %v1573, %v1572
        %v1607 = vpack.c.b16 %v1575, %v1574
        %1640 = vst [vmem:[%s328] sm:$0xff] %v1576
        %1641 = vst [vmem:[%s328 + $0x8] sm:$0xff] %v1577
        %1642 = vst [vmem:[%s328 + $0x10] sm:$0xff] %v1578
        %1643 = vst [vmem:[%s328 + $0x18] sm:$0xff] %v1579
        %1644 = vst [vmem:[%s328 + $0x20] sm:$0xff] %v1580
        %1645 = vst [vmem:[%s328 + $0x28] sm:$0xff] %v1581
        %1646 = vst [vmem:[%s328 + $0x30] sm:$0xff] %v1582
        %1647 = vst [vmem:[%s328 + $0x38] sm:$0xff] %v1583
        %1648 = vst [vmem:[%s328 + $0x40] sm:$0xff] %v1584
        %1649 = vst [vmem:[%s328 + $0x48] sm:$0xff] %v1585
        %1650 = vst [vmem:[%s328 + $0x50] sm:$0xff] %v1586
        %1651 = vst [vmem:[%s328 + $0x58] sm:$0xff] %v1587
        %1652 = vst [vmem:[%s328 + $0x60] sm:$0xff] %v1588
        %1653 = vst [vmem:[%s328 + $0x68] sm:$0xff] %v1589
        %1654 = vst [vmem:[%s328 + $0x70] sm:$0xff] %v1590
        %1655 = vst [vmem:[%s328 + $0x78] sm:$0xff] %v1591
        %1656 = vst [vmem:[%s328 + $0x80] sm:$0xff] %v1592
        %1657 = vst [vmem:[%s328 + $0x88] sm:$0xff] %v1593
        %1658 = vst [vmem:[%s328 + $0x90] sm:$0xff] %v1594
        %1659 = vst [vmem:[%s328 + $0x98] sm:$0xff] %v1595
        %1660 = vst [vmem:[%s328 + $0xa0] sm:$0xff] %v1596
        %1661 = vst [vmem:[%s328 + $0xa8] sm:$0xff] %v1597
        %1662 = vst [vmem:[%s328 + $0xb0] sm:$0xff] %v1598
        %1663 = vst [vmem:[%s328 + $0xb8] sm:$0xff] %v1599
        %1664 = vst [vmem:[%s328 + $0xc0] sm:$0xff] %v1600
        %1665 = vst [vmem:[%s328 + $0xc8] sm:$0xff] %v1601
        %1666 = vst [vmem:[%s328 + $0xd0] sm:$0xff] %v1602
        %1667 = vst [vmem:[%s328 + $0xd8] sm:$0xff] %v1603
        %1668 = vst [vmem:[%s328 + $0xe0] sm:$0xff] %v1604
        %1669 = vst [vmem:[%s328 + $0xe8] sm:$0xff] %v1605
        %1670 = vst [vmem:[%s328 + $0xf0] sm:$0xff] %v1606
        %1671 = vst [vmem:[%s328 + $0xf8] sm:$0xff] %v1607
        %s1672 = sand.u32 %s98, 1
        %s1673 = scalar_lea.sflag [#allocation4], %s1672
        %s1674 = sand.u32 %s98, 1
        %s1675 = smul.addr %s1674, 256
        %s1676 = scalar_lea.vmem [#allocation3], %s1675
        // Predicated region
        $region56: #{vae_forward.5} parent=50 // pred_check
          %p1677 = pneg %p108
        $region57: #{vae_forward.5} parent=50 // pred_check_branch
          %1679 = sbr.rel (%p1677) target = $region59
        $region58: #{vae_forward.5} parent=50 // pred_region
          %s1680 = smul.u32 4, %s17
          %s1682 = ssub.s32 4096, 4096
          %1683 = vsyncadd %s1673, %s1682
          %s1684 = smul.addr %s1680, 64
          %s1685 = scalar_lea.hbm %s3, %s1684
          %s1686 = sshll.u32 %s1676, 4
          %s1687 = int_to_ptr.vmem [resolvable:$true] %s1686
          %1692 = dma.vmem_to_hbm [thread:$0]  %s1687, 4096, %s1685, %s1673, 256, 512, 16
        $region59: #{vae_forward.5} parent=50 // pred_fallthru
          _
      $region51: #{vae_forward.5} parent=5 // pred_fallthru
        _
      %p1693 = scmp.le.s32.totalorder 2, %s12
      // Predicated region
      $region60: #{vae_forward.5} parent=5 // pred_check
        %p1694 = pneg %p1693
      $region61: #{vae_forward.5} parent=5 // pred_check_branch
        %1696 = sbr.rel (%p1694) target = $region63
      $region62: #{vae_forward.5} parent=5 // pred_region
        %s1697 = ssub.s32 %s12, 2
        // Predicated region
        $region64: #{vae_forward.5} parent=62 // pred_check
          %p1698 = pneg %p114
        $region65: #{vae_forward.5} parent=62 // pred_check_branch
          %1700 = sbr.rel (%p1698) target = $region67
        $region66: #{vae_forward.5} parent=62 // pred_region
          %s1701 = sand.u32 %s99, 1
          %s1702 = scalar_lea.sflag [#allocation4], %s1701
          %s1703 = sand.u32 %s99, 1
          %s1704 = smul.addr %s1703, 256
          %s1705 = scalar_lea.vmem [#allocation3], %s1704
          %1706 = dma.done %s1702, 4096
        $region67: #{vae_forward.5} parent=62 // pred_fallthru
          _
      $region63: #{vae_forward.5} parent=5 // pred_fallthru
        _
    $region6: #{vae_forward.5} parent=1 // loop_footer
      %s16 = sadd.s32 1, %s12
    $region7: #{vae_forward.5} parent=1 // loop_footer_branch
      %11 = sbr.rel target = $region3
    $region8: #{vae_forward.5} parent=1 // loop_exit
      _
    %1707 = vsyncpa [#allocation4], 1
    %s1708 = scalar_lea.sflag [#allocation4], 1
    %1709 = vsyncpa %s1708, 1

// kernel: vae_forward.4
$region0: #{vae_forward.4}
  #allocation0 [shape = 'u32[]', space=smem, size = 0x4, offset = 0x4, fixed_abs, tag = 'smem constant byte address 0x4 - core index']
  #allocation1 [shape = 'u32[144,128]{1,0:T(1,128)}', space=vmem, size = 0x12000, scoped, tag = 'internal scratch']
  %s0 = inlined_call_operand.vmem [shape: f32[128,256], index: 0, kind: input, shape index: {}]
  %s1 = inlined_call_operand.vmem [shape: f32[1,256], index: 1, kind: input, shape index: {}]
  %s2 = inlined_call_operand.vmem [shape: f32[1,256], index: 2, kind: input, shape index: {}]
  %s3 = inlined_call_operand.vmem [shape: f32[1,256], index: 3, kind: input, shape index: {}]
  %s4 = inlined_call_operand.vmem [shape: f32[256,64], index: 4, kind: input, shape index: {}]
  %s5 = inlined_call_operand.vmem [shape: f32[1,64], index: 5, kind: input, shape index: {}]
  %s6 = inlined_call_operand.vmem [shape: f32[1,64], index: 6, kind: input, shape index: {}]
  %s7 = inlined_call_operand.vmem [shape: f32[1,64], index: 7, kind: input, shape index: {}]
  %s8 = inlined_call_operand.vmem [shape: f32[64,256], index: 8, kind: input, shape index: {}]
  %s9 = inlined_call_operand.vmem [shape: f32[1,256], index: 9, kind: input, shape index: {}]
  %s10 = inlined_call_operand.vmem [shape: f32[128,128], index: 10, kind: input, shape index: {}]
  %s11 = inlined_call_operand.vmem [shape: f32[128,64], index: 11, kind: input, shape index: {}]
  %s12 = inlined_call_operand.vmem [shape: f32[1,64], index: 12, kind: input, shape index: {}]
  %s13 = inlined_call_operand.vmem [shape: f32[64,256], index: 13, kind: input, shape index: {}]
  %s14 = inlined_call_operand.vmem [shape: f32[1,256], index: 14, kind: input, shape index: {}]
  %s15 = inlined_call_operand.vmem [shape: f32[1,256], index: 15, kind: input, shape index: {}]
  %s16 = inlined_call_operand.vmem [shape: f32[1,256], index: 16, kind: input, shape index: {}]
  %s17 = inlined_call_operand.vmem [shape: bf16[128,256], index: 17, kind: output, shape index: {0}]
  %s18 = inlined_call_operand.vmem [shape: f32[128,384], index: 18, kind: output, shape index: {1}]
  %19 = xla_tuple %s17, %s18
  %s20 = sld [smem:[#allocation0]]
  $region86: #{vae_forward.4} parent=0
    _
  %s22 = ssub.s32 1, %s20
  %s23 = scalar_select 0, %s22, %s20
  // Predicated region
  $region2: #{vae_forward.4} parent=0 // pred_check
    _
  $region3: #{vae_forward.4} parent=0 // pred_check_branch
    %25 = sbr.rel (0) target = $region5
  $region4: #{vae_forward.4} parent=0 // pred_region
    _
  $region5: #{vae_forward.4} parent=0 // pred_fallthru
    _
  // Predicated region
  $region6: #{vae_forward.4} parent=0 // pred_check
    _
  $region7: #{vae_forward.4} parent=0 // pred_check_branch
    %27 = sbr.rel (0) target = $region9
  $region8: #{vae_forward.4} parent=0 // pred_region
    _
  $region9: #{vae_forward.4} parent=0 // pred_fallthru
    _
  // Predicated region
  $region10: #{vae_forward.4} parent=0 // pred_check
    _
  $region11: #{vae_forward.4} parent=0 // pred_check_branch
    %29 = sbr.rel (0) target = $region13
  $region12: #{vae_forward.4} parent=0 // pred_region
    _
  $region13: #{vae_forward.4} parent=0 // pred_fallthru
    _
  // Predicated region
  $region14: #{vae_forward.4} parent=0 // pred_check
    _
  $region15: #{vae_forward.4} parent=0 // pred_check_branch
    %31 = sbr.rel (0) target = $region17
  $region16: #{vae_forward.4} parent=0 // pred_region
    _
  $region17: #{vae_forward.4} parent=0 // pred_fallthru
    _
  // Predicated region
  $region18: #{vae_forward.4} parent=0 // pred_check
    _
  $region19: #{vae_forward.4} parent=0 // pred_check_branch
    %33 = sbr.rel (0) target = $region21
  $region20: #{vae_forward.4} parent=0 // pred_region
    _
  $region21: #{vae_forward.4} parent=0 // pred_fallthru
    _
  // Predicated region
  $region22: #{vae_forward.4} parent=0 // pred_check
    _
  $region23: #{vae_forward.4} parent=0 // pred_check_branch
    %35 = sbr.rel (0) target = $region25
  $region24: #{vae_forward.4} parent=0 // pred_region
    _
  $region25: #{vae_forward.4} parent=0 // pred_fallthru
    _
  // Predicated region
  $region26: #{vae_forward.4} parent=0 // pred_check
    _
  $region27: #{vae_forward.4} parent=0 // pred_check_branch
    %37 = sbr.rel (0) target = $region29
  $region28: #{vae_forward.4} parent=0 // pred_region
    _
  $region29: #{vae_forward.4} parent=0 // pred_fallthru
    _
  // Predicated region
  $region30: #{vae_forward.4} parent=0 // pred_check
    _
  $region31: #{vae_forward.4} parent=0 // pred_check_branch
    %39 = sbr.rel (0) target = $region33
  $region32: #{vae_forward.4} parent=0 // pred_region
    _
  $region33: #{vae_forward.4} parent=0 // pred_fallthru
    _
  // Predicated region
  $region34: #{vae_forward.4} parent=0 // pred_check
    _
  $region35: #{vae_forward.4} parent=0 // pred_check_branch
    %41 = sbr.rel (0) target = $region37
  $region36: #{vae_forward.4} parent=0 // pred_region
    _
  $region37: #{vae_forward.4} parent=0 // pred_fallthru
    _
  // Predicated region
  $region38: #{vae_forward.4} parent=0 // pred_check
    _
  $region39: #{vae_forward.4} parent=0 // pred_check_branch
    %43 = sbr.rel (0) target = $region41
  $region40: #{vae_forward.4} parent=0 // pred_region
    _
  $region41: #{vae_forward.4} parent=0 // pred_fallthru
    _
  // Predicated region
  $region42: #{vae_forward.4} parent=0 // pred_check
    _
  $region43: #{vae_forward.4} parent=0 // pred_check_branch
    %45 = sbr.rel (0) target = $region45
  $region44: #{vae_forward.4} parent=0 // pred_region
    _
  $region45: #{vae_forward.4} parent=0 // pred_fallthru
    _
  // Predicated region
  $region46: #{vae_forward.4} parent=0 // pred_check
    _
  $region47: #{vae_forward.4} parent=0 // pred_check_branch
    %47 = sbr.rel (0) target = $region49
  $region48: #{vae_forward.4} parent=0 // pred_region
    _
  $region49: #{vae_forward.4} parent=0 // pred_fallthru
    _
  // Predicated region
  $region50: #{vae_forward.4} parent=0 // pred_check
    _
  $region51: #{vae_forward.4} parent=0 // pred_check_branch
    %49 = sbr.rel (0) target = $region53
  $region52: #{vae_forward.4} parent=0 // pred_region
    _
  $region53: #{vae_forward.4} parent=0 // pred_fallthru
    _
  // Predicated region
  $region54: #{vae_forward.4} parent=0 // pred_check
    _
  $region55: #{vae_forward.4} parent=0 // pred_check_branch
    %51 = sbr.rel (0) target = $region57
  $region56: #{vae_forward.4} parent=0 // pred_region
    _
  $region57: #{vae_forward.4} parent=0 // pred_fallthru
    _
  // Predicated region
  $region58: #{vae_forward.4} parent=0 // pred_check
    _
  $region59: #{vae_forward.4} parent=0 // pred_check_branch
    %53 = sbr.rel (0) target = $region61
  $region60: #{vae_forward.4} parent=0 // pred_region
    _
  $region61: #{vae_forward.4} parent=0 // pred_fallthru
    _
  // Predicated region
  $region62: #{vae_forward.4} parent=0 // pred_check
    _
  $region63: #{vae_forward.4} parent=0 // pred_check_branch
    %55 = sbr.rel (0) target = $region65
  $region64: #{vae_forward.4} parent=0 // pred_region
    _
  $region65: #{vae_forward.4} parent=0 // pred_fallthru
    _
  // Predicated region
  $region66: #{vae_forward.4} parent=0 // pred_check
    _
  $region67: #{vae_forward.4} parent=0 // pred_check_branch
    %57 = sbr.rel (0) target = $region69
  $region68: #{vae_forward.4} parent=0 // pred_region
    _
  $region69: #{vae_forward.4} parent=0 // pred_fallthru
    _
  %v58 = vld [vmem:[%s0] sm:$0xff]
  %v59 = vld [vmem:[%s0 + $0x8] sm:$0xff]
  %v60 = vld [vmem:[%s0 + $0x10] sm:$0xff]
  %v61 = vld [vmem:[%s0 + $0x18] sm:$0xff]
  %v62 = vld [vmem:[%s0 + $0x20] sm:$0xff]
  %v63 = vld [vmem:[%s0 + $0x28] sm:$0xff]
  %v64 = vld [vmem:[%s0 + $0x30] sm:$0xff]
  %v65 = vld [vmem:[%s0 + $0x38] sm:$0xff]
  %v66 = vld [vmem:[%s0 + $0x40] sm:$0xff]
  %v67 = vld [vmem:[%s0 + $0x48] sm:$0xff]
  %v68 = vld [vmem:[%s0 + $0x50] sm:$0xff]
  %v69 = vld [vmem:[%s0 + $0x58] sm:$0xff]
  %v70 = vld [vmem:[%s0 + $0x60] sm:$0xff]
  %v71 = vld [vmem:[%s0 + $0x68] sm:$0xff]
  %v72 = vld [vmem:[%s0 + $0x70] sm:$0xff]
  %v73 = vld [vmem:[%s0 + $0x78] sm:$0xff]
  %v74 = vld [vmem:[%s0 + $0x80] sm:$0xff]
  %v75 = vld [vmem:[%s0 + $0x88] sm:$0xff]
  %v76 = vld [vmem:[%s0 + $0x90] sm:$0xff]
  %v77 = vld [vmem:[%s0 + $0x98] sm:$0xff]
  %v78 = vld [vmem:[%s0 + $0xa0] sm:$0xff]
  %v79 = vld [vmem:[%s0 + $0xa8] sm:$0xff]
  %v80 = vld [vmem:[%s0 + $0xb0] sm:$0xff]
  %v81 = vld [vmem:[%s0 + $0xb8] sm:$0xff]
  %v82 = vld [vmem:[%s0 + $0xc0] sm:$0xff]
  %v83 = vld [vmem:[%s0 + $0xc8] sm:$0xff]
  %v84 = vld [vmem:[%s0 + $0xd0] sm:$0xff]
  %v85 = vld [vmem:[%s0 + $0xd8] sm:$0xff]
  %v86 = vld [vmem:[%s0 + $0xe0] sm:$0xff]
  %v87 = vld [vmem:[%s0 + $0xe8] sm:$0xff]
  %v88 = vld [vmem:[%s0 + $0xf0] sm:$0xff]
  %v89 = vld [vmem:[%s0 + $0xf8] sm:$0xff]
  %v90 = vld [vmem:[%s1] sm:$0x3]
  %v92 = vlaneseq
  %v93 = vshrl.u32 %v92, 7
  %v94 = vsub.s32 0, %v93
  %v95 = vrot.slane %v90, %v94
  %v96 = vlaneseq
  %v97 = vshrl.u32 %v96, 7
  %v98 = vsub.s32 1, %v97
  %v99 = vrot.slane %v90, %v98
  %v102 = vadd.f32 %v58, %v95
  %v103 = vadd.f32 %v59, %v99
  %v104 = vadd.f32 %v60, %v95
  %v105 = vadd.f32 %v61, %v99
  %v106 = vadd.f32 %v62, %v95
  %v107 = vadd.f32 %v63, %v99
  %v108 = vadd.f32 %v64, %v95
  %v109 = vadd.f32 %v65, %v99
  %v110 = vadd.f32 %v66, %v95
  %v111 = vadd.f32 %v67, %v99
  %v112 = vadd.f32 %v68, %v95
  %v113 = vadd.f32 %v69, %v99
  %v114 = vadd.f32 %v70, %v95
  %v115 = vadd.f32 %v71, %v99
  %v116 = vadd.f32 %v72, %v95
  %v117 = vadd.f32 %v73, %v99
  %v118 = vadd.f32 %v74, %v95
  %v119 = vadd.f32 %v75, %v99
  %v120 = vadd.f32 %v76, %v95
  %v121 = vadd.f32 %v77, %v99
  %v122 = vadd.f32 %v78, %v95
  %v123 = vadd.f32 %v79, %v99
  %v124 = vadd.f32 %v80, %v95
  %v125 = vadd.f32 %v81, %v99
  %v126 = vadd.f32 %v82, %v95
  %v127 = vadd.f32 %v83, %v99
  %v128 = vadd.f32 %v84, %v95
  %v129 = vadd.f32 %v85, %v99
  %v130 = vadd.f32 %v86, %v95
  %v131 = vadd.f32 %v87, %v99
  %v132 = vadd.f32 %v88, %v95
  %v133 = vadd.f32 %v89, %v99
  %v134 = vld [vmem:[%s2] sm:$0x3]
  %v135 = vld [vmem:[%s3] sm:$0x3]
  %v136 = vmul.f32 %v102, %v102
  %v137 = vmul.f32 %v103, %v103
  %v138 = vmul.f32 %v104, %v104
  %v139 = vmul.f32 %v105, %v105
  %v140 = vmul.f32 %v106, %v106
  %v141 = vmul.f32 %v107, %v107
  %v142 = vmul.f32 %v108, %v108
  %v143 = vmul.f32 %v109, %v109
  %v144 = vmul.f32 %v110, %v110
  %v145 = vmul.f32 %v111, %v111
  %v146 = vmul.f32 %v112, %v112
  %v147 = vmul.f32 %v113, %v113
  %v148 = vmul.f32 %v114, %v114
  %v149 = vmul.f32 %v115, %v115
  %v150 = vmul.f32 %v116, %v116
  %v151 = vmul.f32 %v117, %v117
  %v152 = vmul.f32 %v118, %v118
  %v153 = vmul.f32 %v119, %v119
  %v154 = vmul.f32 %v120, %v120
  %v155 = vmul.f32 %v121, %v121
  %v156 = vmul.f32 %v122, %v122
  %v157 = vmul.f32 %v123, %v123
  %v158 = vmul.f32 %v124, %v124
  %v159 = vmul.f32 %v125, %v125
  %v160 = vmul.f32 %v126, %v126
  %v161 = vmul.f32 %v127, %v127
  %v162 = vmul.f32 %v128, %v128
  %v163 = vmul.f32 %v129, %v129
  %v164 = vmul.f32 %v130, %v130
  %v165 = vmul.f32 %v131, %v131
  %v166 = vmul.f32 %v132, %v132
  %v167 = vmul.f32 %v133, %v133
  %168 = vmatprep.subr.mxu0 %v103
  %169 = vmatpush1.msra.mxu0 %v102
  %170 = vmatprep.subr.mxu0 %v105
  %171 = vmatpush1.msra.mxu0 %v104
  %172 = vmatprep.subr.mxu0 %v107
  %173 = vmatpush1.msra.mxu0 %v106
  %174 = vmatprep.subr.mxu0 %v109
  %175 = vmatpush1.msra.mxu0 %v108
  %176 = vmatprep.subr.mxu0 %v111
  %177 = vmatpush1.msra.mxu0 %v110
  %178 = vmatprep.subr.mxu0 %v113
  %179 = vmatpush1.msra.mxu0 %v112
  %180 = vmatprep.subr.mxu0 %v115
  %181 = vmatpush1.msra.mxu0 %v114
  %182 = vmatprep.subr.mxu0 %v117
  %183 = vmatpush1.msra.mxu0 %v116
  %184 = vmatprep.subr.mxu0 %v119
  %185 = vmatpush1.msra.mxu0 %v118
  %186 = vmatprep.subr.mxu0 %v121
  %187 = vmatpush1.msra.mxu0 %v120
  %188 = vmatprep.subr.mxu0 %v123
  %189 = vmatpush1.msra.mxu0 %v122
  %190 = vmatprep.subr.mxu0 %v125
  %191 = vmatpush1.msra.mxu0 %v124
  %192 = vmatprep.subr.mxu0 %v127
  %193 = vmatpush1.msra.mxu0 %v126
  %194 = vmatprep.subr.mxu0 %v129
  %195 = vmatpush1.msra.mxu0 %v128
  %196 = vmatprep.subr.mxu0 %v131
  %197 = vmatpush1.msra.mxu0 %v130
  %198 = vmatprep.subr.mxu0 %v133
  %199 = vmatpush1.msra.mxu0 %v132
  %200 = vmatprep.subr.mxu0 0.0
  %201 = vmatpush1.msra.mxu0 0.0
  %202 = vmatprep.subr.mxu0 0.0
  %203 = vmatpush1.msra.mxu0 0.0
  %204 = vmatprep.subr.mxu0 0.0
  %205 = vmatpush1.msra.mxu0 0.0
  %206 = vmatprep.subr.mxu0 0.0
  %207 = vmatpush1.msra.mxu0 0.0
  %208 = vmatprep.subr.mxu0 0.0
  %209 = vmatpush1.msra.mxu0 0.0
  %210 = vmatprep.subr.mxu0 0.0
  %211 = vmatpush1.msra.mxu0 0.0
  %212 = vmatprep.subr.mxu0 0.0
  %213 = vmatpush1.msra.mxu0 0.0
  %214 = vmatprep.subr.mxu0 0.0
  %215 = vmatpush1.msra.mxu0 0.0
  %216 = vmatprep.subr.mxu0 0.0
  %217 = vmatpush1.msra.mxu0 0.0
  %218 = vmatprep.subr.mxu0 0.0
  %219 = vmatpush1.msra.mxu0 0.0
  %220 = vmatprep.subr.mxu0 0.0
  %221 = vmatpush1.msra.mxu0 0.0
  %222 = vmatprep.subr.mxu0 0.0
  %223 = vmatpush1.msra.mxu0 0.0
  %224 = vmatprep.subr.mxu0 0.0
  %225 = vmatpush1.msra.mxu0 0.0
  %226 = vmatprep.subr.mxu0 0.0
  %227 = vmatpush1.msra.mxu0 0.0
  %228 = vmatprep.subr.mxu0 0.0
  %229 = vmatpush1.msra.mxu0 0.0
  %230 = vmatprep.subr.mxu0 0.0
  %231 = vmatpush1.msra.mxu0 0.0
  %232 = vmatprep.mubr.f32.mxu0 0.0
  %233 = vmatmul.mubr.f32.gmra.mrb[0].mxu0 1.0
  %v234 = vpop.f32.mrb[0].mxu0
  %v235 = vadd.f32 0.0, %v234
  %v236 = vpop.f32.mrb[0].mxu0
  %v237 = vadd.f32 0.0, %v236
  %238 = vdwg.mxu0
  %239 = vmatprep.subr.mxu0 %v137
  %240 = vmatpush1.msra.mxu0 %v136
  %241 = vmatprep.subr.mxu0 %v139
  %242 = vmatpush1.msra.mxu0 %v138
  %243 = vmatprep.subr.mxu0 %v141
  %244 = vmatpush1.msra.mxu0 %v140
  %245 = vmatprep.subr.mxu0 %v143
  %246 = vmatpush1.msra.mxu0 %v142
  %247 = vmatprep.subr.mxu0 %v145
  %248 = vmatpush1.msra.mxu0 %v144
  %249 = vmatprep.subr.mxu0 %v147
  %250 = vmatpush1.msra.mxu0 %v146
  %251 = vmatprep.subr.mxu0 %v149
  %252 = vmatpush1.msra.mxu0 %v148
  %253 = vmatprep.subr.mxu0 %v151
  %254 = vmatpush1.msra.mxu0 %v150
  %255 = vmatprep.subr.mxu0 %v153
  %256 = vmatpush1.msra.mxu0 %v152
  %257 = vmatprep.subr.mxu0 %v155
  %258 = vmatpush1.msra.mxu0 %v154
  %259 = vmatprep.subr.mxu0 %v157
  %260 = vmatpush1.msra.mxu0 %v156
  %261 = vmatprep.subr.mxu0 %v159
  %262 = vmatpush1.msra.mxu0 %v158
  %263 = vmatprep.subr.mxu0 %v161
  %264 = vmatpush1.msra.mxu0 %v160
  %265 = vmatprep.subr.mxu0 %v163
  %266 = vmatpush1.msra.mxu0 %v162
  %267 = vmatprep.subr.mxu0 %v165
  %268 = vmatpush1.msra.mxu0 %v164
  %269 = vmatprep.subr.mxu0 %v167
  %270 = vmatpush1.msra.mxu0 %v166
  %271 = vmatprep.subr.mxu0 0.0
  %272 = vmatpush1.msra.mxu0 0.0
  %273 = vmatprep.subr.mxu0 0.0
  %274 = vmatpush1.msra.mxu0 0.0
  %275 = vmatprep.subr.mxu0 0.0
  %276 = vmatpush1.msra.mxu0 0.0
  %277 = vmatprep.subr.mxu0 0.0
  %278 = vmatpush1.msra.mxu0 0.0
  %279 = vmatprep.subr.mxu0 0.0
  %280 = vmatpush1.msra.mxu0 0.0
  %281 = vmatprep.subr.mxu0 0.0
  %282 = vmatpush1.msra.mxu0 0.0
  %283 = vmatprep.subr.mxu0 0.0
  %284 = vmatpush1.msra.mxu0 0.0
  %285 = vmatprep.subr.mxu0 0.0
  %286 = vmatpush1.msra.mxu0 0.0
  %287 = vmatprep.subr.mxu0 0.0
  %288 = vmatpush1.msra.mxu0 0.0
  %289 = vmatprep.subr.mxu0 0.0
  %290 = vmatpush1.msra.mxu0 0.0
  %291 = vmatprep.subr.mxu0 0.0
  %292 = vmatpush1.msra.mxu0 0.0
  %293 = vmatprep.subr.mxu0 0.0
  %294 = vmatpush1.msra.mxu0 0.0
  %295 = vmatprep.subr.mxu0 0.0
  %296 = vmatpush1.msra.mxu0 0.0
  %297 = vmatprep.subr.mxu0 0.0
  %298 = vmatpush1.msra.mxu0 0.0
  %299 = vmatprep.subr.mxu0 0.0
  %300 = vmatpush1.msra.mxu0 0.0
  %301 = vmatprep.subr.mxu0 0.0
  %302 = vmatpush1.msra.mxu0 0.0
  %303 = vmatprep.mubr.f32.mxu0 0.0
  %304 = vmatmul.mubr.f32.gmra.mrb[0].mxu0 1.0
  %v305 = vpop.f32.mrb[0].mxu0
  %v306 = vadd.f32 0.0, %v305
  %v307 = vpop.f32.mrb[0].mxu0
  %v308 = vadd.f32 0.0, %v307
  %309 = vdwg.mxu0
  %v310 = vmul.f32 %v235, 0.0078125
  %v311 = vmul.f32 %v237, 0.0078125
  %v312 = vmul.f32 %v306, 0.0078125
  %v313 = vmul.f32 %v308, 0.0078125
  %v314 = vmul.f32 %v310, %v310
  %v315 = vmul.f32 %v311, %v311
  %v316 = vsub.f32 %v312, %v314
  %v317 = vsub.f32 %v313, %v315
  %v318 = vmax.f32 %v316, 0.0
  %v319 = vmax.f32 %v317, 0.0
  %v320 = vadd.f32 %v318, 1e-05
  %v321 = vadd.f32 %v319, 1e-05
  %v322 = vrsqrt.pop %v320
  %v323 = vrsqrt.pop %v321
  %v326 = vcombine.low %v322, %v323
  %v328 = vunpack.c.l.s4 1966171168
  %v329 = vunpack.c.0.s8 %v328
  %v330 = vlaneseq
  %v331 = vshrl.u32 %v330, 7
  %v332 = vsub.s32 %v329, %v331
  %v333 = vrot.slane %v326, %v332
  %v335 = vunpack.c.l.s4 1966171168
  %v336 = vunpack.c.0.s8 %v335
  %v337 = vlaneseq
  %v338 = vshrl.u32 %v337, 7
  %v339 = vsub.s32 %v336, %v338
  %v340 = vrot.slane %v333, %v339
  %v342 = vmul.f32 %v134, %v340
  %v344 = vlaneseq
  %v345 = vshrl.u32 %v344, 7
  %v346 = vsub.s32 0, %v345
  %v347 = vrot.slane %v342, %v346
  %v348 = vlaneseq
  %v349 = vshrl.u32 %v348, 7
  %v350 = vsub.s32 1, %v349
  %v351 = vrot.slane %v342, %v350
  %v354 = vmul.f32 %v310, %v347
  %v355 = vmul.f32 %v311, %v351
  %v358 = vcombine.low %v354, %v355
  %v360 = vunpack.c.l.s4 1966171168
  %v361 = vunpack.c.0.s8 %v360
  %v362 = vlaneseq
  %v363 = vshrl.u32 %v362, 7
  %v364 = vsub.s32 %v361, %v363
  %v365 = vrot.slane %v358, %v364
  %v367 = vunpack.c.l.s4 1966171168
  %v368 = vunpack.c.0.s8 %v367
  %v369 = vlaneseq
  %v370 = vshrl.u32 %v369, 7
  %v371 = vsub.s32 %v368, %v370
  %v372 = vrot.slane %v365, %v371
  %v374 = vsub.f32 %v135, %v372
  %v375 = vmul.f32 %v102, %v347
  %v376 = vmul.f32 %v103, %v351
  %v377 = vmul.f32 %v104, %v347
  %v378 = vmul.f32 %v105, %v351
  %v379 = vmul.f32 %v106, %v347
  %v380 = vmul.f32 %v107, %v351
  %v381 = vmul.f32 %v108, %v347
  %v382 = vmul.f32 %v109, %v351
  %v383 = vmul.f32 %v110, %v347
  %v384 = vmul.f32 %v111, %v351
  %v385 = vmul.f32 %v112, %v347
  %v386 = vmul.f32 %v113, %v351
  %v387 = vmul.f32 %v114, %v347
  %v388 = vmul.f32 %v115, %v351
  %v389 = vmul.f32 %v116, %v347
  %v390 = vmul.f32 %v117, %v351
  %v391 = vmul.f32 %v118, %v347
  %v392 = vmul.f32 %v119, %v351
  %v393 = vmul.f32 %v120, %v347
  %v394 = vmul.f32 %v121, %v351
  %v395 = vmul.f32 %v122, %v347
  %v396 = vmul.f32 %v123, %v351
  %v397 = vmul.f32 %v124, %v347
  %v398 = vmul.f32 %v125, %v351
  %v399 = vmul.f32 %v126, %v347
  %v400 = vmul.f32 %v127, %v351
  %v401 = vmul.f32 %v128, %v347
  %v402 = vmul.f32 %v129, %v351
  %v403 = vmul.f32 %v130, %v347
  %v404 = vmul.f32 %v131, %v351
  %v405 = vmul.f32 %v132, %v347
  %v406 = vmul.f32 %v133, %v351
  %v408 = vlaneseq
  %v409 = vshrl.u32 %v408, 7
  %v410 = vsub.s32 0, %v409
  %v411 = vrot.slane %v374, %v410
  %v412 = vlaneseq
  %v413 = vshrl.u32 %v412, 7
  %v414 = vsub.s32 1, %v413
  %v415 = vrot.slane %v374, %v414
  %v418 = vadd.f32 %v375, %v411
  %v419 = vadd.f32 %v376, %v415
  %v420 = vadd.f32 %v377, %v411
  %v421 = vadd.f32 %v378, %v415
  %v422 = vadd.f32 %v379, %v411
  %v423 = vadd.f32 %v380, %v415
  %v424 = vadd.f32 %v381, %v411
  %v425 = vadd.f32 %v382, %v415
  %v426 = vadd.f32 %v383, %v411
  %v427 = vadd.f32 %v384, %v415
  %v428 = vadd.f32 %v385, %v411
  %v429 = vadd.f32 %v386, %v415
  %v430 = vadd.f32 %v387, %v411
  %v431 = vadd.f32 %v388, %v415
  %v432 = vadd.f32 %v389, %v411
  %v433 = vadd.f32 %v390, %v415
  %v434 = vadd.f32 %v391, %v411
  %v435 = vadd.f32 %v392, %v415
  %v436 = vadd.f32 %v393, %v411
  %v437 = vadd.f32 %v394, %v415
  %v438 = vadd.f32 %v395, %v411
  %v439 = vadd.f32 %v396, %v415
  %v440 = vadd.f32 %v397, %v411
  %v441 = vadd.f32 %v398, %v415
  %v442 = vadd.f32 %v399, %v411
  %v443 = vadd.f32 %v400, %v415
  %v444 = vadd.f32 %v401, %v411
  %v445 = vadd.f32 %v402, %v415
  %v446 = vadd.f32 %v403, %v411
  %v447 = vadd.f32 %v404, %v415
  %v448 = vadd.f32 %v405, %v411
  %v449 = vadd.f32 %v406, %v415
  %v450 = vmax.f32 %v418, 0.0
  %v451 = vmax.f32 %v419, 0.0
  %v452 = vmax.f32 %v420, 0.0
  %v453 = vmax.f32 %v421, 0.0
  %v454 = vmax.f32 %v422, 0.0
  %v455 = vmax.f32 %v423, 0.0
  %v456 = vmax.f32 %v424, 0.0
  %v457 = vmax.f32 %v425, 0.0
  %v458 = vmax.f32 %v426, 0.0
  %v459 = vmax.f32 %v427, 0.0
  %v460 = vmax.f32 %v428, 0.0
  %v461 = vmax.f32 %v429, 0.0
  %v462 = vmax.f32 %v430, 0.0
  %v463 = vmax.f32 %v431, 0.0
  %v464 = vmax.f32 %v432, 0.0
  %v465 = vmax.f32 %v433, 0.0
  %v466 = vmax.f32 %v434, 0.0
  %v467 = vmax.f32 %v435, 0.0
  %v468 = vmax.f32 %v436, 0.0
  %v469 = vmax.f32 %v437, 0.0
  %v470 = vmax.f32 %v438, 0.0
  %v471 = vmax.f32 %v439, 0.0
  %v472 = vmax.f32 %v440, 0.0
  %v473 = vmax.f32 %v441, 0.0
  %v474 = vmax.f32 %v442, 0.0
  %v475 = vmax.f32 %v443, 0.0
  %v476 = vmax.f32 %v444, 0.0
  %v477 = vmax.f32 %v445, 0.0
  %v478 = vmax.f32 %v446, 0.0
  %v479 = vmax.f32 %v447, 0.0
  %v480 = vmax.f32 %v448, 0.0
  %v481 = vmax.f32 %v449, 0.0
  %v482 = vld [vmem:[%s4] sm:$0xff]
  %v483 = vld [vmem:[%s4 + $0x8] sm:$0xff]
  %v484 = vld [vmem:[%s4 + $0x10] sm:$0xff]
  %v485 = vld [vmem:[%s4 + $0x18] sm:$0xff]
  %v486 = vld [vmem:[%s4 + $0x20] sm:$0xff]
  %v487 = vld [vmem:[%s4 + $0x28] sm:$0xff]
  %v488 = vld [vmem:[%s4 + $0x30] sm:$0xff]
  %v489 = vld [vmem:[%s4 + $0x38] sm:$0xff]
  %v490 = vld [vmem:[%s4 + $0x40] sm:$0xff]
  %v491 = vld [vmem:[%s4 + $0x48] sm:$0xff]
  %v492 = vld [vmem:[%s4 + $0x50] sm:$0xff]
  %v493 = vld [vmem:[%s4 + $0x58] sm:$0xff]
  %v494 = vld [vmem:[%s4 + $0x60] sm:$0xff]
  %v495 = vld [vmem:[%s4 + $0x68] sm:$0xff]
  %v496 = vld [vmem:[%s4 + $0x70] sm:$0xff]
  %v497 = vld [vmem:[%s4 + $0x78] sm:$0xff]
  %v498 = vld [vmem:[%s4 + $0x80] sm:$0xff]
  %v499 = vld [vmem:[%s4 + $0x88] sm:$0xff]
  %v500 = vld [vmem:[%s4 + $0x90] sm:$0xff]
  %v501 = vld [vmem:[%s4 + $0x98] sm:$0xff]
  %v502 = vld [vmem:[%s4 + $0xa0] sm:$0xff]
  %v503 = vld [vmem:[%s4 + $0xa8] sm:$0xff]
  %v504 = vld [vmem:[%s4 + $0xb0] sm:$0xff]
  %v505 = vld [vmem:[%s4 + $0xb8] sm:$0xff]
  %v506 = vld [vmem:[%s4 + $0xc0] sm:$0xff]
  %v507 = vld [vmem:[%s4 + $0xc8] sm:$0xff]
  %v508 = vld [vmem:[%s4 + $0xd0] sm:$0xff]
  %v509 = vld [vmem:[%s4 + $0xd8] sm:$0xff]
  %v510 = vld [vmem:[%s4 + $0xe0] sm:$0xff]
  %v511 = vld [vmem:[%s4 + $0xe8] sm:$0xff]
  %v512 = vld [vmem:[%s4 + $0xf0] sm:$0xff]
  %v513 = vld [vmem:[%s4 + $0xf8] sm:$0xff]
  %v514 = vld [vmem:[%s5] sm:$0x1]
  %v516 = vlaneseq
  %v517 = vshrl.u32 %v516, 7
  %v518 = vsub.s32 0, %v517
  %v519 = vrot.slane %v514, %v518
  %521 = vmatprep.subr.mxu0 0.0
  %522 = vmatpush1.msra.mxu0 %v482
  %523 = vmatprep.subr.mxu0 0.0
  %524 = vmatpush1.msra.mxu0 %v483
  %525 = vmatprep.subr.mxu0 0.0
  %526 = vmatpush1.msra.mxu0 %v484
  %527 = vmatprep.subr.mxu0 0.0
  %528 = vmatpush1.msra.mxu0 %v485
  %529 = vmatprep.subr.mxu0 0.0
  %530 = vmatpush1.msra.mxu0 %v486
  %531 = vmatprep.subr.mxu0 0.0
  %532 = vmatpush1.msra.mxu0 %v487
  %533 = vmatprep.subr.mxu0 0.0
  %534 = vmatpush1.msra.mxu0 %v488
  %535 = vmatprep.subr.mxu0 0.0
  %536 = vmatpush1.msra.mxu0 %v489
  %537 = vmatprep.subr.mxu0 0.0
  %538 = vmatpush1.msra.mxu0 %v490
  %539 = vmatprep.subr.mxu0 0.0
  %540 = vmatpush1.msra.mxu0 %v491
  %541 = vmatprep.subr.mxu0 0.0
  %542 = vmatpush1.msra.mxu0 %v492
  %543 = vmatprep.subr.mxu0 0.0
  %544 = vmatpush1.msra.mxu0 %v493
  %545 = vmatprep.subr.mxu0 0.0
  %546 = vmatpush1.msra.mxu0 %v494
  %547 = vmatprep.subr.mxu0 0.0
  %548 = vmatpush1.msra.mxu0 %v495
  %549 = vmatprep.subr.mxu0 0.0
  %550 = vmatpush1.msra.mxu0 %v496
  %551 = vmatprep.subr.mxu0 0.0
  %552 = vmatpush1.msra.mxu0 %v497
  %553 = vmatprep.subr.mxu0 0.0
  %554 = vmatpush1.msra.mxu0 %v498
  %555 = vmatprep.subr.mxu0 0.0
  %556 = vmatpush1.msra.mxu0 %v499
  %557 = vmatprep.subr.mxu0 0.0
  %558 = vmatpush1.msra.mxu0 %v500
  %559 = vmatprep.subr.mxu0 0.0
  %560 = vmatpush1.msra.mxu0 %v501
  %561 = vmatprep.subr.mxu0 0.0
  %562 = vmatpush1.msra.mxu0 %v502
  %563 = vmatprep.subr.mxu0 0.0
  %564 = vmatpush1.msra.mxu0 %v503
  %565 = vmatprep.subr.mxu0 0.0
  %566 = vmatpush1.msra.mxu0 %v504
  %567 = vmatprep.subr.mxu0 0.0
  %568 = vmatpush1.msra.mxu0 %v505
  %569 = vmatprep.subr.mxu0 0.0
  %570 = vmatpush1.msra.mxu0 %v506
  %571 = vmatprep.subr.mxu0 0.0
  %572 = vmatpush1.msra.mxu0 %v507
  %573 = vmatprep.subr.mxu0 0.0
  %574 = vmatpush1.msra.mxu0 %v508
  %575 = vmatprep.subr.mxu0 0.0
  %576 = vmatpush1.msra.mxu0 %v509
  %577 = vmatprep.subr.mxu0 0.0
  %578 = vmatpush1.msra.mxu0 %v510
  %579 = vmatprep.subr.mxu0 0.0
  %580 = vmatpush1.msra.mxu0 %v511
  %581 = vmatprep.subr.mxu0 0.0
  %582 = vmatpush1.msra.mxu0 %v512
  %583 = vmatprep.subr.mxu0 0.0
  %584 = vmatpush1.msra.mxu0 %v513
  %585 = vmatprep.mubr.f32.mxu0 %v451
  %586 = vmatmul.mubr.f32.gmra.mrb[0].mxu0 %v450
  %v587 = vpop.f32.mrb[0].mxu0
  %v588 = vadd.f32 %v519, %v587
  %v589 = vpop.f32.mrb[0].mxu0
  %590 = vmatprep.mubr.f32.mxu0 %v453
  %591 = vmatmul.mubr.f32.gmra.mrb[0].mxu0 %v452
  %v592 = vpop.f32.mrb[0].mxu0
  %v593 = vadd.f32 %v519, %v592
  %v594 = vpop.f32.mrb[0].mxu0
  %595 = vmatprep.mubr.f32.mxu0 %v455
  %596 = vmatmul.mubr.f32.gmra.mrb[0].mxu0 %v454
  %v597 = vpop.f32.mrb[0].mxu0
  %v598 = vadd.f32 %v519, %v597
  %v599 = vpop.f32.mrb[0].mxu0
  %600 = vmatprep.mubr.f32.mxu0 %v457
  %601 = vmatmul.mubr.f32.gmra.mrb[0].mxu0 %v456
  %v602 = vpop.f32.mrb[0].mxu0
  %v603 = vadd.f32 %v519, %v602
  %v604 = vpop.f32.mrb[0].mxu0
  %605 = vmatprep.mubr.f32.mxu0 %v459
  %606 = vmatmul.mubr.f32.gmra.mrb[0].mxu0 %v458
  %v607 = vpop.f32.mrb[0].mxu0
  %v608 = vadd.f32 %v519, %v607
  %v609 = vpop.f32.mrb[0].mxu0
  %610 = vmatprep.mubr.f32.mxu0 %v461
  %611 = vmatmul.mubr.f32.gmra.mrb[0].mxu0 %v460
  %v612 = vpop.f32.mrb[0].mxu0
  %v613 = vadd.f32 %v519, %v612
  %v614 = vpop.f32.mrb[0].mxu0
  %615 = vmatprep.mubr.f32.mxu0 %v463
  %616 = vmatmul.mubr.f32.gmra.mrb[0].mxu0 %v462
  %v617 = vpop.f32.mrb[0].mxu0
  %v618 = vadd.f32 %v519, %v617
  %v619 = vpop.f32.mrb[0].mxu0
  %620 = vmatprep.mubr.f32.mxu0 %v465
  %621 = vmatmul.mubr.f32.gmra.mrb[0].mxu0 %v464
  %v622 = vpop.f32.mrb[0].mxu0
  %v623 = vadd.f32 %v519, %v622
  %v624 = vpop.f32.mrb[0].mxu0
  %625 = vmatprep.mubr.f32.mxu0 %v467
  %626 = vmatmul.mubr.f32.gmra.mrb[0].mxu0 %v466
  %v627 = vpop.f32.mrb[0].mxu0
  %v628 = vadd.f32 %v519, %v627
  %v629 = vpop.f32.mrb[0].mxu0
  %630 = vmatprep.mubr.f32.mxu0 %v469
  %631 = vmatmul.mubr.f32.gmra.mrb[0].mxu0 %v468
  %v632 = vpop.f32.mrb[0].mxu0
  %v633 = vadd.f32 %v519, %v632
  %v634 = vpop.f32.mrb[0].mxu0
  %635 = vmatprep.mubr.f32.mxu0 %v471
  %636 = vmatmul.mubr.f32.gmra.mrb[0].mxu0 %v470
  %v637 = vpop.f32.mrb[0].mxu0
  %v638 = vadd.f32 %v519, %v637
  %v639 = vpop.f32.mrb[0].mxu0
  %640 = vmatprep.mubr.f32.mxu0 %v473
  %641 = vmatmul.mubr.f32.gmra.mrb[0].mxu0 %v472
  %v642 = vpop.f32.mrb[0].mxu0
  %v643 = vadd.f32 %v519, %v642
  %v644 = vpop.f32.mrb[0].mxu0
  %645 = vmatprep.mubr.f32.mxu0 %v475
  %646 = vmatmul.mubr.f32.gmra.mrb[0].mxu0 %v474
  %v647 = vpop.f32.mrb[0].mxu0
  %v648 = vadd.f32 %v519, %v647
  %v649 = vpop.f32.mrb[0].mxu0
  %650 = vmatprep.mubr.f32.mxu0 %v477
  %651 = vmatmul.mubr.f32.gmra.mrb[0].mxu0 %v476
  %v652 = vpop.f32.mrb[0].mxu0
  %v653 = vadd.f32 %v519, %v652
  %v654 = vpop.f32.mrb[0].mxu0
  %655 = vmatprep.mubr.f32.mxu0 %v479
  %656 = vmatmul.mubr.f32.gmra.mrb[0].mxu0 %v478
  %v657 = vpop.f32.mrb[0].mxu0
  %v658 = vadd.f32 %v519, %v657
  %v659 = vpop.f32.mrb[0].mxu0
  %660 = vmatprep.mubr.f32.mxu0 %v481
  %661 = vmatmul.mubr.f32.gmra.mrb[0].mxu0 %v480
  %v662 = vpop.f32.mrb[0].mxu0
  %v663 = vadd.f32 %v519, %v662
  %v664 = vpop.f32.mrb[0].mxu0
  %665 = vdwg.mxu0
  %v666 = vld [vmem:[%s6] sm:$0x1]
  %v667 = vld [vmem:[%s7] sm:$0x1]
  %v668 = vmul.f32 %v588, %v588
  %v669 = vmul.f32 %v593, %v593
  %v670 = vmul.f32 %v598, %v598
  %v671 = vmul.f32 %v603, %v603
  %v672 = vmul.f32 %v608, %v608
  %v673 = vmul.f32 %v613, %v613
  %v674 = vmul.f32 %v618, %v618
  %v675 = vmul.f32 %v623, %v623
  %v676 = vmul.f32 %v628, %v628
  %v677 = vmul.f32 %v633, %v633
  %v678 = vmul.f32 %v638, %v638
  %v679 = vmul.f32 %v643, %v643
  %v680 = vmul.f32 %v648, %v648
  %v681 = vmul.f32 %v653, %v653
  %v682 = vmul.f32 %v658, %v658
  %v683 = vmul.f32 %v663, %v663
  %700 = vrot.lane.b32.xlu0 %v668, 64
  %v701 = vpop.permute.xlu0 %700
  %702 = vrot.lane.b32.xlu0 %v669, 64
  %v703 = vpop.permute.xlu0 %702
  %704 = vrot.lane.b32.xlu0 %v670, 64
  %v705 = vpop.permute.xlu0 %704
  %706 = vrot.lane.b32.xlu0 %v671, 64
  %v707 = vpop.permute.xlu0 %706
  %708 = vrot.lane.b32.xlu0 %v672, 64
  %v709 = vpop.permute.xlu0 %708
  %710 = vrot.lane.b32.xlu0 %v673, 64
  %v711 = vpop.permute.xlu0 %710
  %712 = vrot.lane.b32.xlu0 %v674, 64
  %v713 = vpop.permute.xlu0 %712
  %714 = vrot.lane.b32.xlu0 %v675, 64
  %v715 = vpop.permute.xlu0 %714
  %716 = vrot.lane.b32.xlu0 %v676, 64
  %v717 = vpop.permute.xlu0 %716
  %718 = vrot.lane.b32.xlu0 %v677, 64
  %v719 = vpop.permute.xlu0 %718
  %720 = vrot.lane.b32.xlu0 %v678, 64
  %v721 = vpop.permute.xlu0 %720
  %722 = vrot.lane.b32.xlu0 %v679, 64
  %v723 = vpop.permute.xlu0 %722
  %724 = vrot.lane.b32.xlu0 %v680, 64
  %v725 = vpop.permute.xlu0 %724
  %726 = vrot.lane.b32.xlu0 %v681, 64
  %v727 = vpop.permute.xlu0 %726
  %728 = vrot.lane.b32.xlu0 %v682, 64
  %v729 = vpop.permute.xlu0 %728
  %730 = vrot.lane.b32.xlu0 %v683, 64
  %v731 = vpop.permute.xlu0 %730
  %vm748 = vcmask 523264
  %v749 = vsel %vm748, %v588, %v701
  %v750 = vsel %vm748, %v593, %v703
  %v751 = vsel %vm748, %v598, %v705
  %v752 = vsel %vm748, %v603, %v707
  %v753 = vsel %vm748, %v608, %v709
  %v754 = vsel %vm748, %v613, %v711
  %v755 = vsel %vm748, %v618, %v713
  %v756 = vsel %vm748, %v623, %v715
  %v757 = vsel %vm748, %v628, %v717
  %v758 = vsel %vm748, %v633, %v719
  %v759 = vsel %vm748, %v638, %v721
  %v760 = vsel %vm748, %v643, %v723
  %v761 = vsel %vm748, %v648, %v725
  %v762 = vsel %vm748, %v653, %v727
  %v763 = vsel %vm748, %v658, %v729
  %v764 = vsel %vm748, %v663, %v731
  %765 = vmatprep.subr.mxu0 0.0
  %766 = vmatpush1.msra.mxu0 %v749
  %767 = vmatprep.subr.mxu0 0.0
  %768 = vmatpush1.msra.mxu0 %v750
  %769 = vmatprep.subr.mxu0 0.0
  %770 = vmatpush1.msra.mxu0 %v751
  %771 = vmatprep.subr.mxu0 0.0
  %772 = vmatpush1.msra.mxu0 %v752
  %773 = vmatprep.subr.mxu0 0.0
  %774 = vmatpush1.msra.mxu0 %v753
  %775 = vmatprep.subr.mxu0 0.0
  %776 = vmatpush1.msra.mxu0 %v754
  %777 = vmatprep.subr.mxu0 0.0
  %778 = vmatpush1.msra.mxu0 %v755
  %779 = vmatprep.subr.mxu0 0.0
  %780 = vmatpush1.msra.mxu0 %v756
  %781 = vmatprep.subr.mxu0 0.0
  %782 = vmatpush1.msra.mxu0 %v757
  %783 = vmatprep.subr.mxu0 0.0
  %784 = vmatpush1.msra.mxu0 %v758
  %785 = vmatprep.subr.mxu0 0.0
  %786 = vmatpush1.msra.mxu0 %v759
  %787 = vmatprep.subr.mxu0 0.0
  %788 = vmatpush1.msra.mxu0 %v760
  %789 = vmatprep.subr.mxu0 0.0
  %790 = vmatpush1.msra.mxu0 %v761
  %791 = vmatprep.subr.mxu0 0.0
  %792 = vmatpush1.msra.mxu0 %v762
  %793 = vmatprep.subr.mxu0 0.0
  %794 = vmatpush1.msra.mxu0 %v763
  %795 = vmatprep.subr.mxu0 0.0
  %796 = vmatpush1.msra.mxu0 %v764
  %797 = vmatprep.subr.mxu0 0.0
  %798 = vmatpush1.msra.mxu0 0.0
  %799 = vmatprep.subr.mxu0 0.0
  %800 = vmatpush1.msra.mxu0 0.0
  %801 = vmatprep.subr.mxu0 0.0
  %802 = vmatpush1.msra.mxu0 0.0
  %803 = vmatprep.subr.mxu0 0.0
  %804 = vmatpush1.msra.mxu0 0.0
  %805 = vmatprep.subr.mxu0 0.0
  %806 = vmatpush1.msra.mxu0 0.0
  %807 = vmatprep.subr.mxu0 0.0
  %808 = vmatpush1.msra.mxu0 0.0
  %809 = vmatprep.subr.mxu0 0.0
  %810 = vmatpush1.msra.mxu0 0.0
  %811 = vmatprep.subr.mxu0 0.0
  %812 = vmatpush1.msra.mxu0 0.0
  %813 = vmatprep.subr.mxu0 0.0
  %814 = vmatpush1.msra.mxu0 0.0
  %815 = vmatprep.subr.mxu0 0.0
  %816 = vmatpush1.msra.mxu0 0.0
  %817 = vmatprep.subr.mxu0 0.0
  %818 = vmatpush1.msra.mxu0 0.0
  %819 = vmatprep.subr.mxu0 0.0
  %820 = vmatpush1.msra.mxu0 0.0
  %821 = vmatprep.subr.mxu0 0.0
  %822 = vmatpush1.msra.mxu0 0.0
  %823 = vmatprep.subr.mxu0 0.0
  %824 = vmatpush1.msra.mxu0 0.0
  %825 = vmatprep.subr.mxu0 0.0
  %826 = vmatpush1.msra.mxu0 0.0
  %827 = vmatprep.subr.mxu0 0.0
  %828 = vmatpush1.msra.mxu0 0.0
  %829 = vmatprep.mubr.f32.mxu0 0.0
  %830 = vmatmul.mubr.f32.gmra.mrb[0].mxu0 1.0
  %v831 = vpop.f32.mrb[0].mxu0
  %v832 = vadd.f32 0.0, %v831
  %v833 = vpop.f32.mrb[0].mxu0
  %834 = vdwg.mxu0
  %v835 = vmul.f32 %v832, 0.0078125
  %v836 = vmul.f32 %v835, %v835
  %838 = vrot.lane.b32.xlu0 %v836, 64
  %v839 = vpop.permute.xlu0 %838
  %v841 = vsub.f32 %v835, %v839
  %v842 = vmax.f32 %v841, 0.0
  %v843 = vadd.f32 %v842, 1e-05
  %v844 = vrsqrt.pop %v843
  %v847 = vunpack.c.l.s4 1966171168
  %v848 = vunpack.c.0.s8 %v847
  %v849 = vlaneseq
  %v850 = vshrl.u32 %v849, 7
  %v851 = vsub.s32 %v848, %v850
  %v852 = vrot.slane %v844, %v851
  %v854 = vunpack.c.l.s4 1966171168
  %v855 = vunpack.c.0.s8 %v854
  %v856 = vlaneseq
  %v857 = vshrl.u32 %v856, 7
  %v858 = vsub.s32 %v855, %v857
  %v859 = vrot.slane %v852, %v858
  %860 = vrot.lane.b32.xlu0 %v859, 64
  %v861 = vpop.permute.xlu0 %860
  %v863 = vmul.f32 %v666, %v861
  %v864 = vmul.f32 %v835, %v863
  %v865 = vsub.f32 %v667, %v864
  %v867 = vlaneseq
  %v868 = vshrl.u32 %v867, 7
  %v869 = vsub.s32 0, %v868
  %v870 = vrot.slane %v863, %v869
  %v872 = vmul.f32 %v588, %v870
  %v873 = vmul.f32 %v593, %v870
  %v874 = vmul.f32 %v598, %v870
  %v875 = vmul.f32 %v603, %v870
  %v876 = vmul.f32 %v608, %v870
  %v877 = vmul.f32 %v613, %v870
  %v878 = vmul.f32 %v618, %v870
  %v879 = vmul.f32 %v623, %v870
  %v880 = vmul.f32 %v628, %v870
  %v881 = vmul.f32 %v633, %v870
  %v882 = vmul.f32 %v638, %v870
  %v883 = vmul.f32 %v643, %v870
  %v884 = vmul.f32 %v648, %v870
  %v885 = vmul.f32 %v653, %v870
  %v886 = vmul.f32 %v658, %v870
  %v887 = vmul.f32 %v663, %v870
  %v889 = vlaneseq
  %v890 = vshrl.u32 %v889, 7
  %v891 = vsub.s32 0, %v890
  %v892 = vrot.slane %v865, %v891
  %v894 = vadd.f32 %v872, %v892
  %v895 = vadd.f32 %v873, %v892
  %v896 = vadd.f32 %v874, %v892
  %v897 = vadd.f32 %v875, %v892
  %v898 = vadd.f32 %v876, %v892
  %v899 = vadd.f32 %v877, %v892
  %v900 = vadd.f32 %v878, %v892
  %v901 = vadd.f32 %v879, %v892
  %v902 = vadd.f32 %v880, %v892
  %v903 = vadd.f32 %v881, %v892
  %v904 = vadd.f32 %v882, %v892
  %v905 = vadd.f32 %v883, %v892
  %v906 = vadd.f32 %v884, %v892
  %v907 = vadd.f32 %v885, %v892
  %v908 = vadd.f32 %v886, %v892
  %v909 = vadd.f32 %v887, %v892
  %v910 = vmax.f32 %v894, 0.0
  %v911 = vmax.f32 %v895, 0.0
  %v912 = vmax.f32 %v896, 0.0
  %v913 = vmax.f32 %v897, 0.0
  %v914 = vmax.f32 %v898, 0.0
  %v915 = vmax.f32 %v899, 0.0
  %v916 = vmax.f32 %v900, 0.0
  %v917 = vmax.f32 %v901, 0.0
  %v918 = vmax.f32 %v902, 0.0
  %v919 = vmax.f32 %v903, 0.0
  %v920 = vmax.f32 %v904, 0.0
  %v921 = vmax.f32 %v905, 0.0
  %v922 = vmax.f32 %v906, 0.0
  %v923 = vmax.f32 %v907, 0.0
  %v924 = vmax.f32 %v908, 0.0
  %v925 = vmax.f32 %v909, 0.0
  %v926 = vld [vmem:[%s8] sm:$0xff]
  %v927 = vld [vmem:[%s8 + $0x8] sm:$0xff]
  %v928 = vld [vmem:[%s8 + $0x10] sm:$0xff]
  %v929 = vld [vmem:[%s8 + $0x18] sm:$0xff]
  %v930 = vld [vmem:[%s8 + $0x20] sm:$0xff]
  %v931 = vld [vmem:[%s8 + $0x28] sm:$0xff]
  %v932 = vld [vmem:[%s8 + $0x30] sm:$0xff]
  %v933 = vld [vmem:[%s8 + $0x38] sm:$0xff]
  %v934 = vld [vmem:[%s8 + $0x40] sm:$0xff]
  %v935 = vld [vmem:[%s8 + $0x48] sm:$0xff]
  %v936 = vld [vmem:[%s8 + $0x50] sm:$0xff]
  %v937 = vld [vmem:[%s8 + $0x58] sm:$0xff]
  %v938 = vld [vmem:[%s8 + $0x60] sm:$0xff]
  %v939 = vld [vmem:[%s8 + $0x68] sm:$0xff]
  %v940 = vld [vmem:[%s8 + $0x70] sm:$0xff]
  %v941 = vld [vmem:[%s8 + $0x78] sm:$0xff]
  %v942 = vld [vmem:[%s9] sm:$0x3]
  %v944 = vlaneseq
  %v945 = vshrl.u32 %v944, 7
  %v946 = vsub.s32 0, %v945
  %v947 = vrot.slane %v942, %v946
  %v948 = vlaneseq
  %v949 = vshrl.u32 %v948, 7
  %v950 = vsub.s32 1, %v949
  %v951 = vrot.slane %v942, %v950
  %v955 = vsel %vm748, %v910, 0
  %v958 = vsel %vm748, %v911, 0
  %v961 = vsel %vm748, %v912, 0
  %v964 = vsel %vm748, %v913, 0
  %v967 = vsel %vm748, %v914, 0
  %v970 = vsel %vm748, %v915, 0
  %v973 = vsel %vm748, %v916, 0
  %v976 = vsel %vm748, %v917, 0
  %v979 = vsel %vm748, %v918, 0
  %v982 = vsel %vm748, %v919, 0
  %v985 = vsel %vm748, %v920, 0
  %v988 = vsel %vm748, %v921, 0
  %v991 = vsel %vm748, %v922, 0
  %v994 = vsel %vm748, %v923, 0
  %v997 = vsel %vm748, %v924, 0
  %v1000 = vsel %vm748, %v925, 0
  %1002 = vmatprep.subr.mxu0 %v927
  %1003 = vmatpush1.msra.mxu0 %v926
  %1004 = vmatprep.subr.mxu0 %v929
  %1005 = vmatpush1.msra.mxu0 %v928
  %1006 = vmatprep.subr.mxu0 %v931
  %1007 = vmatpush1.msra.mxu0 %v930
  %1008 = vmatprep.subr.mxu0 %v933
  %1009 = vmatpush1.msra.mxu0 %v932
  %1010 = vmatprep.subr.mxu0 %v935
  %1011 = vmatpush1.msra.mxu0 %v934
  %1012 = vmatprep.subr.mxu0 %v937
  %1013 = vmatpush1.msra.mxu0 %v936
  %1014 = vmatprep.subr.mxu0 %v939
  %1015 = vmatpush1.msra.mxu0 %v938
  %1016 = vmatprep.subr.mxu0 %v941
  %1017 = vmatpush1.msra.mxu0 %v940
  %1018 = vmatprep.subr.mxu0 0.0
  %1019 = vmatpush1.msra.mxu0 0.0
  %1020 = vmatprep.subr.mxu0 0.0
  %1021 = vmatpush1.msra.mxu0 0.0
  %1022 = vmatprep.subr.mxu0 0.0
  %1023 = vmatpush1.msra.mxu0 0.0
  %1024 = vmatprep.subr.mxu0 0.0
  %1025 = vmatpush1.msra.mxu0 0.0
  %1026 = vmatprep.subr.mxu0 0.0
  %1027 = vmatpush1.msra.mxu0 0.0
  %1028 = vmatprep.subr.mxu0 0.0
  %1029 = vmatpush1.msra.mxu0 0.0
  %1030 = vmatprep.subr.mxu0 0.0
  %1031 = vmatpush1.msra.mxu0 0.0
  %1032 = vmatprep.subr.mxu0 0.0
  %1033 = vmatpush1.msra.mxu0 0.0
  %1034 = vmatprep.subr.mxu0 0.0
  %1035 = vmatpush1.msra.mxu0 0.0
  %1036 = vmatprep.subr.mxu0 0.0
  %1037 = vmatpush1.msra.mxu0 0.0
  %1038 = vmatprep.subr.mxu0 0.0
  %1039 = vmatpush1.msra.mxu0 0.0
  %1040 = vmatprep.subr.mxu0 0.0
  %1041 = vmatpush1.msra.mxu0 0.0
  %1042 = vmatprep.subr.mxu0 0.0
  %1043 = vmatpush1.msra.mxu0 0.0
  %1044 = vmatprep.subr.mxu0 0.0
  %1045 = vmatpush1.msra.mxu0 0.0
  %1046 = vmatprep.subr.mxu0 0.0
  %1047 = vmatpush1.msra.mxu0 0.0
  %1048 = vmatprep.subr.mxu0 0.0
  %1049 = vmatpush1.msra.mxu0 0.0
  %1050 = vmatprep.subr.mxu0 0.0
  %1051 = vmatpush1.msra.mxu0 0.0
  %1052 = vmatprep.subr.mxu0 0.0
  %1053 = vmatpush1.msra.mxu0 0.0
  %1054 = vmatprep.subr.mxu0 0.0
  %1055 = vmatpush1.msra.mxu0 0.0
  %1056 = vmatprep.subr.mxu0 0.0
  %1057 = vmatpush1.msra.mxu0 0.0
  %1058 = vmatprep.subr.mxu0 0.0
  %1059 = vmatpush1.msra.mxu0 0.0
  %1060 = vmatprep.subr.mxu0 0.0
  %1061 = vmatpush1.msra.mxu0 0.0
  %1062 = vmatprep.subr.mxu0 0.0
  %1063 = vmatpush1.msra.mxu0 0.0
  %1064 = vmatprep.subr.mxu0 0.0
  %1065 = vmatpush1.msra.mxu0 0.0
  %1066 = vmatprep.mubr.f32.mxu0 0.0
  %1067 = vmatmul.mubr.f32.gmra.mrb[0].mxu0 %v955
  %v1068 = vpop.f32.mrb[0].mxu0
  %v1069 = vadd.f32 %v947, %v1068
  %v1070 = vpop.f32.mrb[0].mxu0
  %v1071 = vadd.f32 %v951, %v1070
  %1072 = vmatprep.mubr.f32.mxu0 0.0
  %1073 = vmatmul.mubr.f32.gmra.mrb[0].mxu0 %v958
  %v1074 = vpop.f32.mrb[0].mxu0
  %v1075 = vadd.f32 %v947, %v1074
  %v1076 = vpop.f32.mrb[0].mxu0
  %v1077 = vadd.f32 %v951, %v1076
  %1078 = vmatprep.mubr.f32.mxu0 0.0
  %1079 = vmatmul.mubr.f32.gmra.mrb[0].mxu0 %v961
  %v1080 = vpop.f32.mrb[0].mxu0
  %v1081 = vadd.f32 %v947, %v1080
  %v1082 = vpop.f32.mrb[0].mxu0
  %v1083 = vadd.f32 %v951, %v1082
  %1084 = vmatprep.mubr.f32.mxu0 0.0
  %1085 = vmatmul.mubr.f32.gmra.mrb[0].mxu0 %v964
  %v1086 = vpop.f32.mrb[0].mxu0
  %v1087 = vadd.f32 %v947, %v1086
  %v1088 = vpop.f32.mrb[0].mxu0
  %v1089 = vadd.f32 %v951, %v1088
  %1090 = vmatprep.mubr.f32.mxu0 0.0
  %1091 = vmatmul.mubr.f32.gmra.mrb[0].mxu0 %v967
  %v1092 = vpop.f32.mrb[0].mxu0
  %v1093 = vadd.f32 %v947, %v1092
  %v1094 = vpop.f32.mrb[0].mxu0
  %v1095 = vadd.f32 %v951, %v1094
  %1096 = vmatprep.mubr.f32.mxu0 0.0
  %1097 = vmatmul.mubr.f32.gmra.mrb[0].mxu0 %v970
  %v1098 = vpop.f32.mrb[0].mxu0
  %v1099 = vadd.f32 %v947, %v1098
  %v1100 = vpop.f32.mrb[0].mxu0
  %v1101 = vadd.f32 %v951, %v1100
  %1102 = vmatprep.mubr.f32.mxu0 0.0
  %1103 = vmatmul.mubr.f32.gmra.mrb[0].mxu0 %v973
  %v1104 = vpop.f32.mrb[0].mxu0
  %v1105 = vadd.f32 %v947, %v1104
  %v1106 = vpop.f32.mrb[0].mxu0
  %v1107 = vadd.f32 %v951, %v1106
  %1108 = vmatprep.mubr.f32.mxu0 0.0
  %1109 = vmatmul.mubr.f32.gmra.mrb[0].mxu0 %v976
  %v1110 = vpop.f32.mrb[0].mxu0
  %v1111 = vadd.f32 %v947, %v1110
  %v1112 = vpop.f32.mrb[0].mxu0
  %v1113 = vadd.f32 %v951, %v1112
  %1114 = vmatprep.mubr.f32.mxu0 0.0
  %1115 = vmatmul.mubr.f32.gmra.mrb[0].mxu0 %v979
  %v1116 = vpop.f32.mrb[0].mxu0
  %v1117 = vadd.f32 %v947, %v1116
  %v1118 = vpop.f32.mrb[0].mxu0
  %v1119 = vadd.f32 %v951, %v1118
  %1120 = vmatprep.mubr.f32.mxu0 0.0
  %1121 = vmatmul.mubr.f32.gmra.mrb[0].mxu0 %v982
  %v1122 = vpop.f32.mrb[0].mxu0
  %v1123 = vadd.f32 %v947, %v1122
  %v1124 = vpop.f32.mrb[0].mxu0
  %v1125 = vadd.f32 %v951, %v1124
  %1126 = vmatprep.mubr.f32.mxu0 0.0
  %1127 = vmatmul.mubr.f32.gmra.mrb[0].mxu0 %v985
  %v1128 = vpop.f32.mrb[0].mxu0
  %v1129 = vadd.f32 %v947, %v1128
  %v1130 = vpop.f32.mrb[0].mxu0
  %v1131 = vadd.f32 %v951, %v1130
  %1132 = vmatprep.mubr.f32.mxu0 0.0
  %1133 = vmatmul.mubr.f32.gmra.mrb[0].mxu0 %v988
  %v1134 = vpop.f32.mrb[0].mxu0
  %v1135 = vadd.f32 %v947, %v1134
  %v1136 = vpop.f32.mrb[0].mxu0
  %v1137 = vadd.f32 %v951, %v1136
  %1138 = vmatprep.mubr.f32.mxu0 0.0
  %1139 = vmatmul.mubr.f32.gmra.mrb[0].mxu0 %v991
  %v1140 = vpop.f32.mrb[0].mxu0
  %v1141 = vadd.f32 %v947, %v1140
  %v1142 = vpop.f32.mrb[0].mxu0
  %v1143 = vadd.f32 %v951, %v1142
  %1144 = vmatprep.mubr.f32.mxu0 0.0
  %1145 = vmatmul.mubr.f32.gmra.mrb[0].mxu0 %v994
  %v1146 = vpop.f32.mrb[0].mxu0
  %v1147 = vadd.f32 %v947, %v1146
  %v1148 = vpop.f32.mrb[0].mxu0
  %v1149 = vadd.f32 %v951, %v1148
  %1150 = vmatprep.mubr.f32.mxu0 0.0
  %1151 = vmatmul.mubr.f32.gmra.mrb[0].mxu0 %v997
  %v1152 = vpop.f32.mrb[0].mxu0
  %v1153 = vadd.f32 %v947, %v1152
  %v1154 = vpop.f32.mrb[0].mxu0
  %v1155 = vadd.f32 %v951, %v1154
  %1156 = vmatprep.mubr.f32.mxu0 0.0
  %1157 = vmatmul.mubr.f32.gmra.mrb[0].mxu0 %v1000
  %v1158 = vpop.f32.mrb[0].mxu0
  %v1159 = vadd.f32 %v947, %v1158
  %v1160 = vpop.f32.mrb[0].mxu0
  %v1161 = vadd.f32 %v951, %v1160
  %1162 = vdwg.mxu0
  %v1163 = vld [vmem:[%s10] sm:$0xff]
  %v1164 = vld [vmem:[%s10 + $0x8] sm:$0xff]
  %v1165 = vld [vmem:[%s10 + $0x10] sm:$0xff]
  %v1166 = vld [vmem:[%s10 + $0x18] sm:$0xff]
  %v1167 = vld [vmem:[%s10 + $0x20] sm:$0xff]
  %v1168 = vld [vmem:[%s10 + $0x28] sm:$0xff]
  %v1169 = vld [vmem:[%s10 + $0x30] sm:$0xff]
  %v1170 = vld [vmem:[%s10 + $0x38] sm:$0xff]
  %v1171 = vld [vmem:[%s10 + $0x40] sm:$0xff]
  %v1172 = vld [vmem:[%s10 + $0x48] sm:$0xff]
  %v1173 = vld [vmem:[%s10 + $0x50] sm:$0xff]
  %v1174 = vld [vmem:[%s10 + $0x58] sm:$0xff]
  %v1175 = vld [vmem:[%s10 + $0x60] sm:$0xff]
  %v1176 = vld [vmem:[%s10 + $0x68] sm:$0xff]
  %v1177 = vld [vmem:[%s10 + $0x70] sm:$0xff]
  %v1178 = vld [vmem:[%s10 + $0x78] sm:$0xff]
  %v1179 = vmul.f32 %v1071, 0.5
  %v1180 = vmul.f32 %v1077, 0.5
  %v1181 = vmul.f32 %v1083, 0.5
  %v1182 = vmul.f32 %v1089, 0.5
  %v1183 = vmul.f32 %v1095, 0.5
  %v1184 = vmul.f32 %v1101, 0.5
  %v1185 = vmul.f32 %v1107, 0.5
  %v1186 = vmul.f32 %v1113, 0.5
  %v1187 = vmul.f32 %v1119, 0.5
  %v1188 = vmul.f32 %v1125, 0.5
  %v1189 = vmul.f32 %v1131, 0.5
  %v1190 = vmul.f32 %v1137, 0.5
  %v1191 = vmul.f32 %v1143, 0.5
  %v1192 = vmul.f32 %v1149, 0.5
  %v1193 = vmul.f32 %v1155, 0.5
  %v1194 = vmul.f32 %v1161, 0.5
  %v1195 = vmul.f32 %v1179, 1.442695
  %v1196 = vpow.pop %v1195
  %v1197 = vmul.f32 %v1180, 1.442695
  %v1198 = vpow.pop %v1197
  %v1199 = vmul.f32 %v1181, 1.442695
  %v1200 = vpow.pop %v1199
  %v1201 = vmul.f32 %v1182, 1.442695
  %v1202 = vpow.pop %v1201
  %v1203 = vmul.f32 %v1183, 1.442695
  %v1204 = vpow.pop %v1203
  %v1205 = vmul.f32 %v1184, 1.442695
  %v1206 = vpow.pop %v1205
  %v1207 = vmul.f32 %v1185, 1.442695
  %v1208 = vpow.pop %v1207
  %v1209 = vmul.f32 %v1186, 1.442695
  %v1210 = vpow.pop %v1209
  %v1211 = vmul.f32 %v1187, 1.442695
  %v1212 = vpow.pop %v1211
  %v1213 = vmul.f32 %v1188, 1.442695
  %v1214 = vpow.pop %v1213
  %v1215 = vmul.f32 %v1189, 1.442695
  %v1216 = vpow.pop %v1215
  %v1217 = vmul.f32 %v1190, 1.442695
  %v1218 = vpow.pop %v1217
  %v1219 = vmul.f32 %v1191, 1.442695
  %v1220 = vpow.pop %v1219
  %v1221 = vmul.f32 %v1192, 1.442695
  %v1222 = vpow.pop %v1221
  %v1223 = vmul.f32 %v1193, 1.442695
  %v1224 = vpow.pop %v1223
  %v1225 = vmul.f32 %v1194, 1.442695
  %v1226 = vpow.pop %v1225
  %v1227 = vmul.f32 %v1163, %v1196
  %v1228 = vmul.f32 %v1164, %v1198
  %v1229 = vmul.f32 %v1165, %v1200
  %v1230 = vmul.f32 %v1166, %v1202
  %v1231 = vmul.f32 %v1167, %v1204
  %v1232 = vmul.f32 %v1168, %v1206
  %v1233 = vmul.f32 %v1169, %v1208
  %v1234 = vmul.f32 %v1170, %v1210
  %v1235 = vmul.f32 %v1171, %v1212
  %v1236 = vmul.f32 %v1172, %v1214
  %v1237 = vmul.f32 %v1173, %v1216
  %v1238 = vmul.f32 %v1174, %v1218
  %v1239 = vmul.f32 %v1175, %v1220
  %v1240 = vmul.f32 %v1176, %v1222
  %v1241 = vmul.f32 %v1177, %v1224
  %v1242 = vmul.f32 %v1178, %v1226
  %v1243 = vadd.f32 %v1069, %v1227
  %v1244 = vadd.f32 %v1075, %v1228
  %v1245 = vadd.f32 %v1081, %v1229
  %v1246 = vadd.f32 %v1087, %v1230
  %v1247 = vadd.f32 %v1093, %v1231
  %v1248 = vadd.f32 %v1099, %v1232
  %v1249 = vadd.f32 %v1105, %v1233
  %v1250 = vadd.f32 %v1111, %v1234
  %v1251 = vadd.f32 %v1117, %v1235
  %v1252 = vadd.f32 %v1123, %v1236
  %v1253 = vadd.f32 %v1129, %v1237
  %v1254 = vadd.f32 %v1135, %v1238
  %v1255 = vadd.f32 %v1141, %v1239
  %v1256 = vadd.f32 %v1147, %v1240
  %v1257 = vadd.f32 %v1153, %v1241
  %v1258 = vadd.f32 %v1159, %v1242
  %v1259 = vld [vmem:[%s11] sm:$0xff]
  %v1260 = vld [vmem:[%s11 + $0x8] sm:$0xff]
  %v1261 = vld [vmem:[%s11 + $0x10] sm:$0xff]
  %v1262 = vld [vmem:[%s11 + $0x18] sm:$0xff]
  %v1263 = vld [vmem:[%s11 + $0x20] sm:$0xff]
  %v1264 = vld [vmem:[%s11 + $0x28] sm:$0xff]
  %v1265 = vld [vmem:[%s11 + $0x30] sm:$0xff]
  %v1266 = vld [vmem:[%s11 + $0x38] sm:$0xff]
  %v1267 = vld [vmem:[%s11 + $0x40] sm:$0xff]
  %v1268 = vld [vmem:[%s11 + $0x48] sm:$0xff]
  %v1269 = vld [vmem:[%s11 + $0x50] sm:$0xff]
  %v1270 = vld [vmem:[%s11 + $0x58] sm:$0xff]
  %v1271 = vld [vmem:[%s11 + $0x60] sm:$0xff]
  %v1272 = vld [vmem:[%s11 + $0x68] sm:$0xff]
  %v1273 = vld [vmem:[%s11 + $0x70] sm:$0xff]
  %v1274 = vld [vmem:[%s11 + $0x78] sm:$0xff]
  %v1275 = vld [vmem:[%s12] sm:$0x1]
  %v1277 = vlaneseq
  %v1278 = vshrl.u32 %v1277, 7
  %v1279 = vsub.s32 0, %v1278
  %v1280 = vrot.slane %v1275, %v1279
  %1282 = vmatprep.subr.mxu0 0.0
  %1283 = vmatpush1.msra.mxu0 %v1259
  %1284 = vmatprep.subr.mxu0 0.0
  %1285 = vmatpush1.msra.mxu0 %v1260
  %1286 = vmatprep.subr.mxu0 0.0
  %1287 = vmatpush1.msra.mxu0 %v1261
  %1288 = vmatprep.subr.mxu0 0.0
  %1289 = vmatpush1.msra.mxu0 %v1262
  %1290 = vmatprep.subr.mxu0 0.0
  %1291 = vmatpush1.msra.mxu0 %v1263
  %1292 = vmatprep.subr.mxu0 0.0
  %1293 = vmatpush1.msra.mxu0 %v1264
  %1294 = vmatprep.subr.mxu0 0.0
  %1295 = vmatpush1.msra.mxu0 %v1265
  %1296 = vmatprep.subr.mxu0 0.0
  %1297 = vmatpush1.msra.mxu0 %v1266
  %1298 = vmatprep.subr.mxu0 0.0
  %1299 = vmatpush1.msra.mxu0 %v1267
  %1300 = vmatprep.subr.mxu0 0.0
  %1301 = vmatpush1.msra.mxu0 %v1268
  %1302 = vmatprep.subr.mxu0 0.0
  %1303 = vmatpush1.msra.mxu0 %v1269
  %1304 = vmatprep.subr.mxu0 0.0
  %1305 = vmatpush1.msra.mxu0 %v1270
  %1306 = vmatprep.subr.mxu0 0.0
  %1307 = vmatpush1.msra.mxu0 %v1271
  %1308 = vmatprep.subr.mxu0 0.0
  %1309 = vmatpush1.msra.mxu0 %v1272
  %1310 = vmatprep.subr.mxu0 0.0
  %1311 = vmatpush1.msra.mxu0 %v1273
  %1312 = vmatprep.subr.mxu0 0.0
  %1313 = vmatpush1.msra.mxu0 %v1274
  %1314 = vmatprep.subr.mxu0 0.0
  %1315 = vmatpush1.msra.mxu0 0.0
  %1316 = vmatprep.subr.mxu0 0.0
  %1317 = vmatpush1.msra.mxu0 0.0
  %1318 = vmatprep.subr.mxu0 0.0
  %1319 = vmatpush1.msra.mxu0 0.0
  %1320 = vmatprep.subr.mxu0 0.0
  %1321 = vmatpush1.msra.mxu0 0.0
  %1322 = vmatprep.subr.mxu0 0.0
  %1323 = vmatpush1.msra.mxu0 0.0
  %1324 = vmatprep.subr.mxu0 0.0
  %1325 = vmatpush1.msra.mxu0 0.0
  %1326 = vmatprep.subr.mxu0 0.0
  %1327 = vmatpush1.msra.mxu0 0.0
  %1328 = vmatprep.subr.mxu0 0.0
  %1329 = vmatpush1.msra.mxu0 0.0
  %1330 = vmatprep.subr.mxu0 0.0
  %1331 = vmatpush1.msra.mxu0 0.0
  %1332 = vmatprep.subr.mxu0 0.0
  %1333 = vmatpush1.msra.mxu0 0.0
  %1334 = vmatprep.subr.mxu0 0.0
  %1335 = vmatpush1.msra.mxu0 0.0
  %1336 = vmatprep.subr.mxu0 0.0
  %1337 = vmatpush1.msra.mxu0 0.0
  %1338 = vmatprep.subr.mxu0 0.0
  %1339 = vmatpush1.msra.mxu0 0.0
  %1340 = vmatprep.subr.mxu0 0.0
  %1341 = vmatpush1.msra.mxu0 0.0
  %1342 = vmatprep.subr.mxu0 0.0
  %1343 = vmatpush1.msra.mxu0 0.0
  %1344 = vmatprep.subr.mxu0 0.0
  %1345 = vmatpush1.msra.mxu0 0.0
  %1346 = vmatprep.mubr.f32.mxu0 0.0
  %1347 = vmatmul.mubr.f32.gmra.mrb[0].mxu0 %v1243
  %v1348 = vpop.f32.mrb[0].mxu0
  %v1349 = vadd.f32 %v1280, %v1348
  %v1350 = vpop.f32.mrb[0].mxu0
  %1351 = vmatprep.mubr.f32.mxu0 0.0
  %1352 = vmatmul.mubr.f32.gmra.mrb[0].mxu0 %v1244
  %v1353 = vpop.f32.mrb[0].mxu0
  %v1354 = vadd.f32 %v1280, %v1353
  %v1355 = vpop.f32.mrb[0].mxu0
  %1356 = vmatprep.mubr.f32.mxu0 0.0
  %1357 = vmatmul.mubr.f32.gmra.mrb[0].mxu0 %v1245
  %v1358 = vpop.f32.mrb[0].mxu0
  %v1359 = vadd.f32 %v1280, %v1358
  %v1360 = vpop.f32.mrb[0].mxu0
  %1361 = vmatprep.mubr.f32.mxu0 0.0
  %1362 = vmatmul.mubr.f32.gmra.mrb[0].mxu0 %v1246
  %v1363 = vpop.f32.mrb[0].mxu0
  %v1364 = vadd.f32 %v1280, %v1363
  %v1365 = vpop.f32.mrb[0].mxu0
  %1366 = vmatprep.mubr.f32.mxu0 0.0
  %1367 = vmatmul.mubr.f32.gmra.mrb[0].mxu0 %v1247
  %v1368 = vpop.f32.mrb[0].mxu0
  %v1369 = vadd.f32 %v1280, %v1368
  %v1370 = vpop.f32.mrb[0].mxu0
  %1371 = vmatprep.mubr.f32.mxu0 0.0
  %1372 = vmatmul.mubr.f32.gmra.mrb[0].mxu0 %v1248
  %v1373 = vpop.f32.mrb[0].mxu0
  %v1374 = vadd.f32 %v1280, %v1373
  %v1375 = vpop.f32.mrb[0].mxu0
  %1376 = vmatprep.mubr.f32.mxu0 0.0
  %1377 = vmatmul.mubr.f32.gmra.mrb[0].mxu0 %v1249
  %v1378 = vpop.f32.mrb[0].mxu0
  %v1379 = vadd.f32 %v1280, %v1378
  %v1380 = vpop.f32.mrb[0].mxu0
  %1381 = vmatprep.mubr.f32.mxu0 0.0
  %1382 = vmatmul.mubr.f32.gmra.mrb[0].mxu0 %v1250
  %v1383 = vpop.f32.mrb[0].mxu0
  %v1384 = vadd.f32 %v1280, %v1383
  %v1385 = vpop.f32.mrb[0].mxu0
  %1386 = vmatprep.mubr.f32.mxu0 0.0
  %1387 = vmatmul.mubr.f32.gmra.mrb[0].mxu0 %v1251
  %v1388 = vpop.f32.mrb[0].mxu0
  %v1389 = vadd.f32 %v1280, %v1388
  %v1390 = vpop.f32.mrb[0].mxu0
  %1391 = vmatprep.mubr.f32.mxu0 0.0
  %1392 = vmatmul.mubr.f32.gmra.mrb[0].mxu0 %v1252
  %v1393 = vpop.f32.mrb[0].mxu0
  %v1394 = vadd.f32 %v1280, %v1393
  %v1395 = vpop.f32.mrb[0].mxu0
  %1396 = vmatprep.mubr.f32.mxu0 0.0
  %1397 = vmatmul.mubr.f32.gmra.mrb[0].mxu0 %v1253
  %v1398 = vpop.f32.mrb[0].mxu0
  %v1399 = vadd.f32 %v1280, %v1398
  %v1400 = vpop.f32.mrb[0].mxu0
  %1401 = vmatprep.mubr.f32.mxu0 0.0
  %1402 = vmatmul.mubr.f32.gmra.mrb[0].mxu0 %v1254
  %v1403 = vpop.f32.mrb[0].mxu0
  %v1404 = vadd.f32 %v1280, %v1403
  %v1405 = vpop.f32.mrb[0].mxu0
  %1406 = vmatprep.mubr.f32.mxu0 0.0
  %1407 = vmatmul.mubr.f32.gmra.mrb[0].mxu0 %v1255
  %v1408 = vpop.f32.mrb[0].mxu0
  %v1409 = vadd.f32 %v1280, %v1408
  %v1410 = vpop.f32.mrb[0].mxu0
  %1411 = vmatprep.mubr.f32.mxu0 0.0
  %1412 = vmatmul.mubr.f32.gmra.mrb[0].mxu0 %v1256
  %v1413 = vpop.f32.mrb[0].mxu0
  %v1414 = vadd.f32 %v1280, %v1413
  %v1415 = vpop.f32.mrb[0].mxu0
  %1416 = vmatprep.mubr.f32.mxu0 0.0
  %1417 = vmatmul.mubr.f32.gmra.mrb[0].mxu0 %v1257
  %v1418 = vpop.f32.mrb[0].mxu0
  %v1419 = vadd.f32 %v1280, %v1418
  %v1420 = vpop.f32.mrb[0].mxu0
  %1421 = vmatprep.mubr.f32.mxu0 0.0
  %1422 = vmatmul.mubr.f32.gmra.mrb[0].mxu0 %v1258
  %v1423 = vpop.f32.mrb[0].mxu0
  %v1424 = vadd.f32 %v1280, %v1423
  %v1425 = vpop.f32.mrb[0].mxu0
  %1426 = vdwg.mxu0
  %v1427 = vmax.f32 %v1349, 0.0
  %v1428 = vmax.f32 %v1354, 0.0
  %v1429 = vmax.f32 %v1359, 0.0
  %v1430 = vmax.f32 %v1364, 0.0
  %v1431 = vmax.f32 %v1369, 0.0
  %v1432 = vmax.f32 %v1374, 0.0
  %v1433 = vmax.f32 %v1379, 0.0
  %v1434 = vmax.f32 %v1384, 0.0
  %v1435 = vmax.f32 %v1389, 0.0
  %v1436 = vmax.f32 %v1394, 0.0
  %v1437 = vmax.f32 %v1399, 0.0
  %v1438 = vmax.f32 %v1404, 0.0
  %v1439 = vmax.f32 %v1409, 0.0
  %v1440 = vmax.f32 %v1414, 0.0
  %v1441 = vmax.f32 %v1419, 0.0
  %v1442 = vmax.f32 %v1424, 0.0
  %v1443 = vld [vmem:[%s13] sm:$0xff]
  %v1444 = vld [vmem:[%s13 + $0x8] sm:$0xff]
  %v1445 = vld [vmem:[%s13 + $0x10] sm:$0xff]
  %v1446 = vld [vmem:[%s13 + $0x18] sm:$0xff]
  %v1447 = vld [vmem:[%s13 + $0x20] sm:$0xff]
  %v1448 = vld [vmem:[%s13 + $0x28] sm:$0xff]
  %v1449 = vld [vmem:[%s13 + $0x30] sm:$0xff]
  %v1450 = vld [vmem:[%s13 + $0x38] sm:$0xff]
  %v1451 = vld [vmem:[%s13 + $0x40] sm:$0xff]
  %v1452 = vld [vmem:[%s13 + $0x48] sm:$0xff]
  %v1453 = vld [vmem:[%s13 + $0x50] sm:$0xff]
  %v1454 = vld [vmem:[%s13 + $0x58] sm:$0xff]
  %v1455 = vld [vmem:[%s13 + $0x60] sm:$0xff]
  %v1456 = vld [vmem:[%s13 + $0x68] sm:$0xff]
  %v1457 = vld [vmem:[%s13 + $0x70] sm:$0xff]
  %v1458 = vld [vmem:[%s13 + $0x78] sm:$0xff]
  %v1459 = vld [vmem:[%s14] sm:$0x3]
  %v1461 = vlaneseq
  %v1462 = vshrl.u32 %v1461, 7
  %v1463 = vsub.s32 0, %v1462
  %v1464 = vrot.slane %v1459, %v1463
  %v1465 = vlaneseq
  %v1466 = vshrl.u32 %v1465, 7
  %v1467 = vsub.s32 1, %v1466
  %v1468 = vrot.slane %v1459, %v1467
  %v1472 = vsel %vm748, %v1427, 0
  %v1475 = vsel %vm748, %v1428, 0
  %v1478 = vsel %vm748, %v1429, 0
  %v1481 = vsel %vm748, %v1430, 0
  %v1484 = vsel %vm748, %v1431, 0
  %v1487 = vsel %vm748, %v1432, 0
  %v1490 = vsel %vm748, %v1433, 0
  %v1493 = vsel %vm748, %v1434, 0
  %v1496 = vsel %vm748, %v1435, 0
  %v1499 = vsel %vm748, %v1436, 0
  %v1502 = vsel %vm748, %v1437, 0
  %v1505 = vsel %vm748, %v1438, 0
  %v1508 = vsel %vm748, %v1439, 0
  %v1511 = vsel %vm748, %v1440, 0
  %v1514 = vsel %vm748, %v1441, 0
  %v1517 = vsel %vm748, %v1442, 0
  %1519 = vmatprep.subr.mxu0 %v1444
  %1520 = vmatpush1.msra.mxu0 %v1443
  %1521 = vmatprep.subr.mxu0 %v1446
  %1522 = vmatpush1.msra.mxu0 %v1445
  %1523 = vmatprep.subr.mxu0 %v1448
  %1524 = vmatpush1.msra.mxu0 %v1447
  %1525 = vmatprep.subr.mxu0 %v1450
  %1526 = vmatpush1.msra.mxu0 %v1449
  %1527 = vmatprep.subr.mxu0 %v1452
  %1528 = vmatpush1.msra.mxu0 %v1451
  %1529 = vmatprep.subr.mxu0 %v1454
  %1530 = vmatpush1.msra.mxu0 %v1453
  %1531 = vmatprep.subr.mxu0 %v1456
  %1532 = vmatpush1.msra.mxu0 %v1455
  %1533 = vmatprep.subr.mxu0 %v1458
  %1534 = vmatpush1.msra.mxu0 %v1457
  %1535 = vmatprep.subr.mxu0 0.0
  %1536 = vmatpush1.msra.mxu0 0.0
  %1537 = vmatprep.subr.mxu0 0.0
  %1538 = vmatpush1.msra.mxu0 0.0
  %1539 = vmatprep.subr.mxu0 0.0
  %1540 = vmatpush1.msra.mxu0 0.0
  %1541 = vmatprep.subr.mxu0 0.0
  %1542 = vmatpush1.msra.mxu0 0.0
  %1543 = vmatprep.subr.mxu0 0.0
  %1544 = vmatpush1.msra.mxu0 0.0
  %1545 = vmatprep.subr.mxu0 0.0
  %1546 = vmatpush1.msra.mxu0 0.0
  %1547 = vmatprep.subr.mxu0 0.0
  %1548 = vmatpush1.msra.mxu0 0.0
  %1549 = vmatprep.subr.mxu0 0.0
  %1550 = vmatpush1.msra.mxu0 0.0
  %1551 = vmatprep.subr.mxu0 0.0
  %1552 = vmatpush1.msra.mxu0 0.0
  %1553 = vmatprep.subr.mxu0 0.0
  %1554 = vmatpush1.msra.mxu0 0.0
  %1555 = vmatprep.subr.mxu0 0.0
  %1556 = vmatpush1.msra.mxu0 0.0
  %1557 = vmatprep.subr.mxu0 0.0
  %1558 = vmatpush1.msra.mxu0 0.0
  %1559 = vmatprep.subr.mxu0 0.0
  %1560 = vmatpush1.msra.mxu0 0.0
  %1561 = vmatprep.subr.mxu0 0.0
  %1562 = vmatpush1.msra.mxu0 0.0
  %1563 = vmatprep.subr.mxu0 0.0
  %1564 = vmatpush1.msra.mxu0 0.0
  %1565 = vmatprep.subr.mxu0 0.0
  %1566 = vmatpush1.msra.mxu0 0.0
  %1567 = vmatprep.subr.mxu0 0.0
  %1568 = vmatpush1.msra.mxu0 0.0
  %1569 = vmatprep.subr.mxu0 0.0
  %1570 = vmatpush1.msra.mxu0 0.0
  %1571 = vmatprep.subr.mxu0 0.0
  %1572 = vmatpush1.msra.mxu0 0.0
  %1573 = vmatprep.subr.mxu0 0.0
  %1574 = vmatpush1.msra.mxu0 0.0
  %1575 = vmatprep.subr.mxu0 0.0
  %1576 = vmatpush1.msra.mxu0 0.0
  %1577 = vmatprep.subr.mxu0 0.0
  %1578 = vmatpush1.msra.mxu0 0.0
  %1579 = vmatprep.subr.mxu0 0.0
  %1580 = vmatpush1.msra.mxu0 0.0
  %1581 = vmatprep.subr.mxu0 0.0
  %1582 = vmatpush1.msra.mxu0 0.0
  %1583 = vmatprep.mubr.f32.mxu0 0.0
  %1584 = vmatmul.mubr.f32.gmra.mrb[0].mxu0 %v1472
  %v1585 = vpop.f32.mrb[0].mxu0
  %v1586 = vadd.f32 %v1464, %v1585
  %v1587 = vpop.f32.mrb[0].mxu0
  %v1588 = vadd.f32 %v1468, %v1587
  %1589 = vmatprep.mubr.f32.mxu0 0.0
  %1590 = vmatmul.mubr.f32.gmra.mrb[0].mxu0 %v1475
  %v1591 = vpop.f32.mrb[0].mxu0
  %v1592 = vadd.f32 %v1464, %v1591
  %v1593 = vpop.f32.mrb[0].mxu0
  %v1594 = vadd.f32 %v1468, %v1593
  %1595 = vmatprep.mubr.f32.mxu0 0.0
  %1596 = vmatmul.mubr.f32.gmra.mrb[0].mxu0 %v1478
  %v1597 = vpop.f32.mrb[0].mxu0
  %v1598 = vadd.f32 %v1464, %v1597
  %v1599 = vpop.f32.mrb[0].mxu0
  %v1600 = vadd.f32 %v1468, %v1599
  %1601 = vmatprep.mubr.f32.mxu0 0.0
  %1602 = vmatmul.mubr.f32.gmra.mrb[0].mxu0 %v1481
  %v1603 = vpop.f32.mrb[0].mxu0
  %v1604 = vadd.f32 %v1464, %v1603
  %v1605 = vpop.f32.mrb[0].mxu0
  %v1606 = vadd.f32 %v1468, %v1605
  %1607 = vmatprep.mubr.f32.mxu0 0.0
  %1608 = vmatmul.mubr.f32.gmra.mrb[0].mxu0 %v1484
  %v1609 = vpop.f32.mrb[0].mxu0
  %v1610 = vadd.f32 %v1464, %v1609
  %v1611 = vpop.f32.mrb[0].mxu0
  %v1612 = vadd.f32 %v1468, %v1611
  %1613 = vmatprep.mubr.f32.mxu0 0.0
  %1614 = vmatmul.mubr.f32.gmra.mrb[0].mxu0 %v1487
  %v1615 = vpop.f32.mrb[0].mxu0
  %v1616 = vadd.f32 %v1464, %v1615
  %v1617 = vpop.f32.mrb[0].mxu0
  %v1618 = vadd.f32 %v1468, %v1617
  %1619 = vmatprep.mubr.f32.mxu0 0.0
  %1620 = vmatmul.mubr.f32.gmra.mrb[0].mxu0 %v1490
  %v1621 = vpop.f32.mrb[0].mxu0
  %v1622 = vadd.f32 %v1464, %v1621
  %v1623 = vpop.f32.mrb[0].mxu0
  %v1624 = vadd.f32 %v1468, %v1623
  %1625 = vmatprep.mubr.f32.mxu0 0.0
  %1626 = vmatmul.mubr.f32.gmra.mrb[0].mxu0 %v1493
  %v1627 = vpop.f32.mrb[0].mxu0
  %v1628 = vadd.f32 %v1464, %v1627
  %v1629 = vpop.f32.mrb[0].mxu0
  %v1630 = vadd.f32 %v1468, %v1629
  %1631 = vmatprep.mubr.f32.mxu0 0.0
  %1632 = vmatmul.mubr.f32.gmra.mrb[0].mxu0 %v1496
  %v1633 = vpop.f32.mrb[0].mxu0
  %v1634 = vadd.f32 %v1464, %v1633
  %v1635 = vpop.f32.mrb[0].mxu0
  %v1636 = vadd.f32 %v1468, %v1635
  %1637 = vmatprep.mubr.f32.mxu0 0.0
  %1638 = vmatmul.mubr.f32.gmra.mrb[0].mxu0 %v1499
  %v1639 = vpop.f32.mrb[0].mxu0
  %v1640 = vadd.f32 %v1464, %v1639
  %v1641 = vpop.f32.mrb[0].mxu0
  %v1642 = vadd.f32 %v1468, %v1641
  %1643 = vmatprep.mubr.f32.mxu0 0.0
  %1644 = vmatmul.mubr.f32.gmra.mrb[0].mxu0 %v1502
  %v1645 = vpop.f32.mrb[0].mxu0
  %v1646 = vadd.f32 %v1464, %v1645
  %v1647 = vpop.f32.mrb[0].mxu0
  %v1648 = vadd.f32 %v1468, %v1647
  %1649 = vmatprep.mubr.f32.mxu0 0.0
  %1650 = vmatmul.mubr.f32.gmra.mrb[0].mxu0 %v1505
  %v1651 = vpop.f32.mrb[0].mxu0
  %v1652 = vadd.f32 %v1464, %v1651
  %v1653 = vpop.f32.mrb[0].mxu0
  %v1654 = vadd.f32 %v1468, %v1653
  %1655 = vmatprep.mubr.f32.mxu0 0.0
  %1656 = vmatmul.mubr.f32.gmra.mrb[0].mxu0 %v1508
  %v1657 = vpop.f32.mrb[0].mxu0
  %v1658 = vadd.f32 %v1464, %v1657
  %v1659 = vpop.f32.mrb[0].mxu0
  %v1660 = vadd.f32 %v1468, %v1659
  %1661 = vmatprep.mubr.f32.mxu0 0.0
  %1662 = vmatmul.mubr.f32.gmra.mrb[0].mxu0 %v1511
  %v1663 = vpop.f32.mrb[0].mxu0
  %v1664 = vadd.f32 %v1464, %v1663
  %v1665 = vpop.f32.mrb[0].mxu0
  %v1666 = vadd.f32 %v1468, %v1665
  %1667 = vmatprep.mubr.f32.mxu0 0.0
  %1668 = vmatmul.mubr.f32.gmra.mrb[0].mxu0 %v1514
  %v1669 = vpop.f32.mrb[0].mxu0
  %v1670 = vadd.f32 %v1464, %v1669
  %v1671 = vpop.f32.mrb[0].mxu0
  %v1672 = vadd.f32 %v1468, %v1671
  %1673 = vmatprep.mubr.f32.mxu0 0.0
  %1674 = vmatmul.mubr.f32.gmra.mrb[0].mxu0 %v1517
  %v1675 = vpop.f32.mrb[0].mxu0
  %v1676 = vadd.f32 %v1464, %v1675
  %v1677 = vpop.f32.mrb[0].mxu0
  %v1678 = vadd.f32 %v1468, %v1677
  %1679 = vdwg.mxu0
  %v1680 = vld [vmem:[%s15] sm:$0x3]
  %v1681 = vld [vmem:[%s16] sm:$0x3]
  %v1682 = vmul.f32 %v1586, %v1586
  %v1683 = vmul.f32 %v1588, %v1588
  %v1684 = vmul.f32 %v1592, %v1592
  %v1685 = vmul.f32 %v1594, %v1594
  %v1686 = vmul.f32 %v1598, %v1598
  %v1687 = vmul.f32 %v1600, %v1600
  %v1688 = vmul.f32 %v1604, %v1604
  %v1689 = vmul.f32 %v1606, %v1606
  %v1690 = vmul.f32 %v1610, %v1610
  %v1691 = vmul.f32 %v1612, %v1612
  %v1692 = vmul.f32 %v1616, %v1616
  %v1693 = vmul.f32 %v1618, %v1618
  %v1694 = vmul.f32 %v1622, %v1622
  %v1695 = vmul.f32 %v1624, %v1624
  %v1696 = vmul.f32 %v1628, %v1628
  %v1697 = vmul.f32 %v1630, %v1630
  %v1698 = vmul.f32 %v1634, %v1634
  %v1699 = vmul.f32 %v1636, %v1636
  %v1700 = vmul.f32 %v1640, %v1640
  %v1701 = vmul.f32 %v1642, %v1642
  %v1702 = vmul.f32 %v1646, %v1646
  %v1703 = vmul.f32 %v1648, %v1648
  %v1704 = vmul.f32 %v1652, %v1652
  %v1705 = vmul.f32 %v1654, %v1654
  %v1706 = vmul.f32 %v1658, %v1658
  %v1707 = vmul.f32 %v1660, %v1660
  %v1708 = vmul.f32 %v1664, %v1664
  %v1709 = vmul.f32 %v1666, %v1666
  %v1710 = vmul.f32 %v1670, %v1670
  %v1711 = vmul.f32 %v1672, %v1672
  %v1712 = vmul.f32 %v1676, %v1676
  %v1713 = vmul.f32 %v1678, %v1678
  %1714 = vmatprep.subr.mxu0 %v1588
  %1715 = vmatpush1.msra.mxu0 %v1586
  %1716 = vmatprep.subr.mxu0 %v1594
  %1717 = vmatpush1.msra.mxu0 %v1592
  %1718 = vmatprep.subr.mxu0 %v1600
  %1719 = vmatpush1.msra.mxu0 %v1598
  %1720 = vmatprep.subr.mxu0 %v1606
  %1721 = vmatpush1.msra.mxu0 %v1604
  %1722 = vmatprep.subr.mxu0 %v1612
  %1723 = vmatpush1.msra.mxu0 %v1610
  %1724 = vmatprep.subr.mxu0 %v1618
  %1725 = vmatpush1.msra.mxu0 %v1616
  %1726 = vmatprep.subr.mxu0 %v1624
  %1727 = vmatpush1.msra.mxu0 %v1622
  %1728 = vmatprep.subr.mxu0 %v1630
  %1729 = vmatpush1.msra.mxu0 %v1628
  %1730 = vmatprep.subr.mxu0 %v1636
  %1731 = vmatpush1.msra.mxu0 %v1634
  %1732 = vmatprep.subr.mxu0 %v1642
  %1733 = vmatpush1.msra.mxu0 %v1640
  %1734 = vmatprep.subr.mxu0 %v1648
  %1735 = vmatpush1.msra.mxu0 %v1646
  %1736 = vmatprep.subr.mxu0 %v1654
  %1737 = vmatpush1.msra.mxu0 %v1652
  %1738 = vmatprep.subr.mxu0 %v1660
  %1739 = vmatpush1.msra.mxu0 %v1658
  %1740 = vmatprep.subr.mxu0 %v1666
  %1741 = vmatpush1.msra.mxu0 %v1664
  %1742 = vmatprep.subr.mxu0 %v1672
  %1743 = vmatpush1.msra.mxu0 %v1670
  %1744 = vmatprep.subr.mxu0 %v1678
  %1745 = vmatpush1.msra.mxu0 %v1676
  %1746 = vmatprep.subr.mxu0 0.0
  %1747 = vmatpush1.msra.mxu0 0.0
  %1748 = vmatprep.subr.mxu0 0.0
  %1749 = vmatpush1.msra.mxu0 0.0
  %1750 = vmatprep.subr.mxu0 0.0
  %1751 = vmatpush1.msra.mxu0 0.0
  %1752 = vmatprep.subr.mxu0 0.0
  %1753 = vmatpush1.msra.mxu0 0.0
  %1754 = vmatprep.subr.mxu0 0.0
  %1755 = vmatpush1.msra.mxu0 0.0
  %1756 = vmatprep.subr.mxu0 0.0
  %1757 = vmatpush1.msra.mxu0 0.0
  %1758 = vmatprep.subr.mxu0 0.0
  %1759 = vmatpush1.msra.mxu0 0.0
  %1760 = vmatprep.subr.mxu0 0.0
  %1761 = vmatpush1.msra.mxu0 0.0
  %1762 = vmatprep.subr.mxu0 0.0
  %1763 = vmatpush1.msra.mxu0 0.0
  %1764 = vmatprep.subr.mxu0 0.0
  %1765 = vmatpush1.msra.mxu0 0.0
  %1766 = vmatprep.subr.mxu0 0.0
  %1767 = vmatpush1.msra.mxu0 0.0
  %1768 = vmatprep.subr.mxu0 0.0
  %1769 = vmatpush1.msra.mxu0 0.0
  %1770 = vmatprep.subr.mxu0 0.0
  %1771 = vmatpush1.msra.mxu0 0.0
  %1772 = vmatprep.subr.mxu0 0.0
  %1773 = vmatpush1.msra.mxu0 0.0
  %1774 = vmatprep.subr.mxu0 0.0
  %1775 = vmatpush1.msra.mxu0 0.0
  %1776 = vmatprep.subr.mxu0 0.0
  %1777 = vmatpush1.msra.mxu0 0.0
  %1778 = vmatprep.mubr.f32.mxu0 0.0
  %1779 = vmatmul.mubr.f32.gmra.mrb[0].mxu0 1.0
  %v1780 = vpop.f32.mrb[0].mxu0
  %v1781 = vadd.f32 0.0, %v1780
  %v1782 = vpop.f32.mrb[0].mxu0
  %v1783 = vadd.f32 0.0, %v1782
  %1784 = vdwg.mxu0
  %1785 = vmatprep.subr.mxu0 %v1683
  %1786 = vmatpush1.msra.mxu0 %v1682
  %1787 = vmatprep.subr.mxu0 %v1685
  %1788 = vmatpush1.msra.mxu0 %v1684
  %1789 = vmatprep.subr.mxu0 %v1687
  %1790 = vmatpush1.msra.mxu0 %v1686
  %1791 = vmatprep.subr.mxu0 %v1689
  %1792 = vmatpush1.msra.mxu0 %v1688
  %1793 = vmatprep.subr.mxu0 %v1691
  %1794 = vmatpush1.msra.mxu0 %v1690
  %1795 = vmatprep.subr.mxu0 %v1693
  %1796 = vmatpush1.msra.mxu0 %v1692
  %1797 = vmatprep.subr.mxu0 %v1695
  %1798 = vmatpush1.msra.mxu0 %v1694
  %1799 = vmatprep.subr.mxu0 %v1697
  %1800 = vmatpush1.msra.mxu0 %v1696
  %1801 = vmatprep.subr.mxu0 %v1699
  %1802 = vmatpush1.msra.mxu0 %v1698
  %1803 = vmatprep.subr.mxu0 %v1701
  %1804 = vmatpush1.msra.mxu0 %v1700
  %1805 = vmatprep.subr.mxu0 %v1703
  %1806 = vmatpush1.msra.mxu0 %v1702
  %1807 = vmatprep.subr.mxu0 %v1705
  %1808 = vmatpush1.msra.mxu0 %v1704
  %1809 = vmatprep.subr.mxu0 %v1707
  %1810 = vmatpush1.msra.mxu0 %v1706
  %1811 = vmatprep.subr.mxu0 %v1709
  %1812 = vmatpush1.msra.mxu0 %v1708
  %1813 = vmatprep.subr.mxu0 %v1711
  %1814 = vmatpush1.msra.mxu0 %v1710
  %1815 = vmatprep.subr.mxu0 %v1713
  %1816 = vmatpush1.msra.mxu0 %v1712
  %1817 = vmatprep.subr.mxu0 0.0
  %1818 = vmatpush1.msra.mxu0 0.0
  %1819 = vmatprep.subr.mxu0 0.0
  %1820 = vmatpush1.msra.mxu0 0.0
  %1821 = vmatprep.subr.mxu0 0.0
  %1822 = vmatpush1.msra.mxu0 0.0
  %1823 = vmatprep.subr.mxu0 0.0
  %1824 = vmatpush1.msra.mxu0 0.0
  %1825 = vmatprep.subr.mxu0 0.0
  %1826 = vmatpush1.msra.mxu0 0.0
  %1827 = vmatprep.subr.mxu0 0.0
  %1828 = vmatpush1.msra.mxu0 0.0
  %1829 = vmatprep.subr.mxu0 0.0
  %1830 = vmatpush1.msra.mxu0 0.0
  %1831 = vmatprep.subr.mxu0 0.0
  %1832 = vmatpush1.msra.mxu0 0.0
  %1833 = vmatprep.subr.mxu0 0.0
  %1834 = vmatpush1.msra.mxu0 0.0
  %1835 = vmatprep.subr.mxu0 0.0
  %1836 = vmatpush1.msra.mxu0 0.0
  %1837 = vmatprep.subr.mxu0 0.0
  %1838 = vmatpush1.msra.mxu0 0.0
  %1839 = vmatprep.subr.mxu0 0.0
  %1840 = vmatpush1.msra.mxu0 0.0
  %1841 = vmatprep.subr.mxu0 0.0
  %1842 = vmatpush1.msra.mxu0 0.0
  %1843 = vmatprep.subr.mxu0 0.0
  %1844 = vmatpush1.msra.mxu0 0.0
  %1845 = vmatprep.subr.mxu0 0.0
  %1846 = vmatpush1.msra.mxu0 0.0
  %1847 = vmatprep.subr.mxu0 0.0
  %1848 = vmatpush1.msra.mxu0 0.0
  %1849 = vmatprep.mubr.f32.mxu0 0.0
  %1850 = vmatmul.mubr.f32.gmra.mrb[0].mxu0 1.0
  %v1851 = vpop.f32.mrb[0].mxu0
  %v1852 = vadd.f32 0.0, %v1851
  %v1853 = vpop.f32.mrb[0].mxu0
  %v1854 = vadd.f32 0.0, %v1853
  %1855 = vdwg.mxu0
  %v1856 = vmul.f32 %v1781, 0.0078125
  %v1857 = vmul.f32 %v1783, 0.0078125
  %v1858 = vmul.f32 %v1852, 0.0078125
  %v1859 = vmul.f32 %v1854, 0.0078125
  %v1860 = vmul.f32 %v1856, %v1856
  %v1861 = vmul.f32 %v1857, %v1857
  %v1862 = vsub.f32 %v1858, %v1860
  %v1863 = vsub.f32 %v1859, %v1861
  %v1864 = vmax.f32 %v1862, 0.0
  %v1865 = vmax.f32 %v1863, 0.0
  %v1866 = vadd.f32 %v1864, 1e-05
  %v1867 = vadd.f32 %v1865, 1e-05
  %v1868 = vrsqrt.pop %v1866
  %v1869 = vrsqrt.pop %v1867
  %v1872 = vcombine.low %v1868, %v1869
  %v1874 = vunpack.c.l.s4 1966171168
  %v1875 = vunpack.c.0.s8 %v1874
  %v1876 = vlaneseq
  %v1877 = vshrl.u32 %v1876, 7
  %v1878 = vsub.s32 %v1875, %v1877
  %v1879 = vrot.slane %v1872, %v1878
  %v1881 = vunpack.c.l.s4 1966171168
  %v1882 = vunpack.c.0.s8 %v1881
  %v1883 = vlaneseq
  %v1884 = vshrl.u32 %v1883, 7
  %v1885 = vsub.s32 %v1882, %v1884
  %v1886 = vrot.slane %v1879, %v1885
  %v1888 = vmul.f32 %v1680, %v1886
  %v1890 = vlaneseq
  %v1891 = vshrl.u32 %v1890, 7
  %v1892 = vsub.s32 0, %v1891
  %v1893 = vrot.slane %v1888, %v1892
  %v1894 = vlaneseq
  %v1895 = vshrl.u32 %v1894, 7
  %v1896 = vsub.s32 1, %v1895
  %v1897 = vrot.slane %v1888, %v1896
  %v1900 = vmul.f32 %v1856, %v1893
  %v1901 = vmul.f32 %v1857, %v1897
  %v1904 = vcombine.low %v1900, %v1901
  %v1906 = vunpack.c.l.s4 1966171168
  %v1907 = vunpack.c.0.s8 %v1906
  %v1908 = vlaneseq
  %v1909 = vshrl.u32 %v1908, 7
  %v1910 = vsub.s32 %v1907, %v1909
  %v1911 = vrot.slane %v1904, %v1910
  %v1913 = vunpack.c.l.s4 1966171168
  %v1914 = vunpack.c.0.s8 %v1913
  %v1915 = vlaneseq
  %v1916 = vshrl.u32 %v1915, 7
  %v1917 = vsub.s32 %v1914, %v1916
  %v1918 = vrot.slane %v1911, %v1917
  %v1920 = vsub.f32 %v1681, %v1918
  %v1921 = vmul.f32 %v1586, %v1893
  %v1922 = vmul.f32 %v1588, %v1897
  %v1923 = vmul.f32 %v1592, %v1893
  %v1924 = vmul.f32 %v1594, %v1897
  %v1925 = vmul.f32 %v1598, %v1893
  %v1926 = vmul.f32 %v1600, %v1897
  %v1927 = vmul.f32 %v1604, %v1893
  %v1928 = vmul.f32 %v1606, %v1897
  %v1929 = vmul.f32 %v1610, %v1893
  %v1930 = vmul.f32 %v1612, %v1897
  %v1931 = vmul.f32 %v1616, %v1893
  %v1932 = vmul.f32 %v1618, %v1897
  %v1933 = vmul.f32 %v1622, %v1893
  %v1934 = vmul.f32 %v1624, %v1897
  %v1935 = vmul.f32 %v1628, %v1893
  %v1936 = vmul.f32 %v1630, %v1897
  %v1937 = vmul.f32 %v1634, %v1893
  %v1938 = vmul.f32 %v1636, %v1897
  %v1939 = vmul.f32 %v1640, %v1893
  %v1940 = vmul.f32 %v1642, %v1897
  %v1941 = vmul.f32 %v1646, %v1893
  %v1942 = vmul.f32 %v1648, %v1897
  %v1943 = vmul.f32 %v1652, %v1893
  %v1944 = vmul.f32 %v1654, %v1897
  %v1945 = vmul.f32 %v1658, %v1893
  %v1946 = vmul.f32 %v1660, %v1897
  %v1947 = vmul.f32 %v1664, %v1893
  %v1948 = vmul.f32 %v1666, %v1897
  %v1949 = vmul.f32 %v1670, %v1893
  %v1950 = vmul.f32 %v1672, %v1897
  %v1951 = vmul.f32 %v1676, %v1893
  %v1952 = vmul.f32 %v1678, %v1897
  %v1954 = vlaneseq
  %v1955 = vshrl.u32 %v1954, 7
  %v1956 = vsub.s32 0, %v1955
  %v1957 = vrot.slane %v1920, %v1956
  %v1958 = vlaneseq
  %v1959 = vshrl.u32 %v1958, 7
  %v1960 = vsub.s32 1, %v1959
  %v1961 = vrot.slane %v1920, %v1960
  %v1964 = vadd.f32 %v1921, %v1957
  %v1965 = vadd.f32 %v1922, %v1961
  %v1966 = vadd.f32 %v1923, %v1957
  %v1967 = vadd.f32 %v1924, %v1961
  %v1968 = vadd.f32 %v1925, %v1957
  %v1969 = vadd.f32 %v1926, %v1961
  %v1970 = vadd.f32 %v1927, %v1957
  %v1971 = vadd.f32 %v1928, %v1961
  %v1972 = vadd.f32 %v1929, %v1957
  %v1973 = vadd.f32 %v1930, %v1961
  %v1974 = vadd.f32 %v1931, %v1957
  %v1975 = vadd.f32 %v1932, %v1961
  %v1976 = vadd.f32 %v1933, %v1957
  %v1977 = vadd.f32 %v1934, %v1961
  %v1978 = vadd.f32 %v1935, %v1957
  %v1979 = vadd.f32 %v1936, %v1961
  %v1980 = vadd.f32 %v1937, %v1957
  %v1981 = vadd.f32 %v1938, %v1961
  %v1982 = vadd.f32 %v1939, %v1957
  %v1983 = vadd.f32 %v1940, %v1961
  %v1984 = vadd.f32 %v1941, %v1957
  %v1985 = vadd.f32 %v1942, %v1961
  %v1986 = vadd.f32 %v1943, %v1957
  %v1987 = vadd.f32 %v1944, %v1961
  %v1988 = vadd.f32 %v1945, %v1957
  %v1989 = vadd.f32 %v1946, %v1961
  %v1990 = vadd.f32 %v1947, %v1957
  %v1991 = vadd.f32 %v1948, %v1961
  %v1992 = vadd.f32 %v1949, %v1957
  %v1993 = vadd.f32 %v1950, %v1961
  %v1994 = vadd.f32 %v1951, %v1957
  %v1995 = vadd.f32 %v1952, %v1961
  %v1996 = vmax.f32 %v1964, 0.0
  %v1997 = vmax.f32 %v1965, 0.0
  %v1998 = vmax.f32 %v1966, 0.0
  %v1999 = vmax.f32 %v1967, 0.0
  %v2000 = vmax.f32 %v1968, 0.0
  %v2001 = vmax.f32 %v1969, 0.0
  %v2002 = vmax.f32 %v1970, 0.0
  %v2003 = vmax.f32 %v1971, 0.0
  %v2004 = vmax.f32 %v1972, 0.0
  %v2005 = vmax.f32 %v1973, 0.0
  %v2006 = vmax.f32 %v1974, 0.0
  %v2007 = vmax.f32 %v1975, 0.0
  %v2008 = vmax.f32 %v1976, 0.0
  %v2009 = vmax.f32 %v1977, 0.0
  %v2010 = vmax.f32 %v1978, 0.0
  %v2011 = vmax.f32 %v1979, 0.0
  %v2012 = vmax.f32 %v1980, 0.0
  %v2013 = vmax.f32 %v1981, 0.0
  %v2014 = vmax.f32 %v1982, 0.0
  %v2015 = vmax.f32 %v1983, 0.0
  %v2016 = vmax.f32 %v1984, 0.0
  %v2017 = vmax.f32 %v1985, 0.0
  %v2018 = vmax.f32 %v1986, 0.0
  %v2019 = vmax.f32 %v1987, 0.0
  %v2020 = vmax.f32 %v1988, 0.0
  %v2021 = vmax.f32 %v1989, 0.0
  %v2022 = vmax.f32 %v1990, 0.0
  %v2023 = vmax.f32 %v1991, 0.0
  %v2024 = vmax.f32 %v1992, 0.0
  %v2025 = vmax.f32 %v1993, 0.0
  %v2026 = vmax.f32 %v1994, 0.0
  %v2027 = vmax.f32 %v1995, 0.0
  %v2028 = vpack.c.bf16 %v1998, %v1996
  %v2029 = vpack.c.bf16 %v1999, %v1997
  %v2030 = vpack.c.bf16 %v2002, %v2000
  %v2031 = vpack.c.bf16 %v2003, %v2001
  %v2032 = vpack.c.bf16 %v2006, %v2004
  %v2033 = vpack.c.bf16 %v2007, %v2005
  %v2034 = vpack.c.bf16 %v2010, %v2008
  %v2035 = vpack.c.bf16 %v2011, %v2009
  %v2036 = vpack.c.bf16 %v2014, %v2012
  %v2037 = vpack.c.bf16 %v2015, %v2013
  %v2038 = vpack.c.bf16 %v2018, %v2016
  %v2039 = vpack.c.bf16 %v2019, %v2017
  %v2040 = vpack.c.bf16 %v2022, %v2020
  %v2041 = vpack.c.bf16 %v2023, %v2021
  %v2042 = vpack.c.bf16 %v2026, %v2024
  %v2043 = vpack.c.bf16 %v2027, %v2025
  %v2060 = vunpack.c.l.b16 %v2028
  %v2061 = vunpack.c.l.b16 %v2029
  %v2062 = vunpack.c.h.b16 %v2028
  %v2063 = vunpack.c.h.b16 %v2029
  %v2064 = vunpack.c.l.b16 %v2030
  %v2065 = vunpack.c.l.b16 %v2031
  %v2066 = vunpack.c.h.b16 %v2030
  %v2067 = vunpack.c.h.b16 %v2031
  %v2068 = vunpack.c.l.b16 %v2032
  %v2069 = vunpack.c.l.b16 %v2033
  %v2070 = vunpack.c.h.b16 %v2032
  %v2071 = vunpack.c.h.b16 %v2033
  %v2072 = vunpack.c.l.b16 %v2034
  %v2073 = vunpack.c.l.b16 %v2035
  %v2074 = vunpack.c.h.b16 %v2034
  %v2075 = vunpack.c.h.b16 %v2035
  %v2076 = vunpack.c.l.b16 %v2036
  %v2077 = vunpack.c.l.b16 %v2037
  %v2078 = vunpack.c.h.b16 %v2036
  %v2079 = vunpack.c.h.b16 %v2037
  %v2080 = vunpack.c.l.b16 %v2038
  %v2081 = vunpack.c.l.b16 %v2039
  %v2082 = vunpack.c.h.b16 %v2038
  %v2083 = vunpack.c.h.b16 %v2039
  %v2084 = vunpack.c.l.b16 %v2040
  %v2085 = vunpack.c.l.b16 %v2041
  %v2086 = vunpack.c.h.b16 %v2040
  %v2087 = vunpack.c.h.b16 %v2041
  %v2088 = vunpack.c.l.b16 %v2042
  %v2089 = vunpack.c.l.b16 %v2043
  %v2090 = vunpack.c.h.b16 %v2042
  %v2091 = vunpack.c.h.b16 %v2043
  %v2092 = vpack.c.b16 %v2061, %v2060
  %v2093 = vpack.c.b16 %v2063, %v2062
  %v2094 = vpack.c.b16 %v2065, %v2064
  %v2095 = vpack.c.b16 %v2067, %v2066
  %v2096 = vpack.c.b16 %v2069, %v2068
  %v2097 = vpack.c.b16 %v2071, %v2070
  %v2098 = vpack.c.b16 %v2073, %v2072
  %v2099 = vpack.c.b16 %v2075, %v2074
  %v2100 = vpack.c.b16 %v2077, %v2076
  %v2101 = vpack.c.b16 %v2079, %v2078
  %v2102 = vpack.c.b16 %v2081, %v2080
  %v2103 = vpack.c.b16 %v2083, %v2082
  %v2104 = vpack.c.b16 %v2085, %v2084
  %v2105 = vpack.c.b16 %v2087, %v2086
  %v2106 = vpack.c.b16 %v2089, %v2088
  %v2107 = vpack.c.b16 %v2091, %v2090
  %2124 = vst [vmem:[%s17] sm:$0xff] %v2092
  %2125 = vst [vmem:[%s17 + $0x8] sm:$0xff] %v2093
  %2126 = vst [vmem:[%s17 + $0x10] sm:$0xff] %v2094
  %2127 = vst [vmem:[%s17 + $0x18] sm:$0xff] %v2095
  %2128 = vst [vmem:[%s17 + $0x20] sm:$0xff] %v2096
  %2129 = vst [vmem:[%s17 + $0x28] sm:$0xff] %v2097
  %2130 = vst [vmem:[%s17 + $0x30] sm:$0xff] %v2098
  %2131 = vst [vmem:[%s17 + $0x38] sm:$0xff] %v2099
  %2132 = vst [vmem:[%s17 + $0x40] sm:$0xff] %v2100
  %2133 = vst [vmem:[%s17 + $0x48] sm:$0xff] %v2101
  %2134 = vst [vmem:[%s17 + $0x50] sm:$0xff] %v2102
  %2135 = vst [vmem:[%s17 + $0x58] sm:$0xff] %v2103
  %2136 = vst [vmem:[%s17 + $0x60] sm:$0xff] %v2104
  %2137 = vst [vmem:[%s17 + $0x68] sm:$0xff] %v2105
  %2138 = vst [vmem:[%s17 + $0x70] sm:$0xff] %v2106
  %2139 = vst [vmem:[%s17 + $0x78] sm:$0xff] %v2107
  %2140 = vst [vmem:[%s18] sm:$0xff] %v1069
  %2141 = vst [vmem:[%s18 + $0x8] sm:$0xff] %v1071
  %2142 = vst [vmem:[%s18 + $0x18] sm:$0xff] %v1075
  %2143 = vst [vmem:[%s18 + $0x20] sm:$0xff] %v1077
  %2144 = vst [vmem:[%s18 + $0x30] sm:$0xff] %v1081
  %2145 = vst [vmem:[%s18 + $0x38] sm:$0xff] %v1083
  %2146 = vst [vmem:[%s18 + $0x48] sm:$0xff] %v1087
  %2147 = vst [vmem:[%s18 + $0x50] sm:$0xff] %v1089
  %2148 = vst [vmem:[%s18 + $0x60] sm:$0xff] %v1093
  %2149 = vst [vmem:[%s18 + $0x68] sm:$0xff] %v1095
  %2150 = vst [vmem:[%s18 + $0x78] sm:$0xff] %v1099
  %2151 = vst [vmem:[%s18 + $0x80] sm:$0xff] %v1101
  %2152 = vst [vmem:[%s18 + $0x90] sm:$0xff] %v1105
  %2153 = vst [vmem:[%s18 + $0x98] sm:$0xff] %v1107
  %2154 = vst [vmem:[%s18 + $0xa8] sm:$0xff] %v1111
  %2155 = vst [vmem:[%s18 + $0xb0] sm:$0xff] %v1113
  %2156 = vst [vmem:[%s18 + $0xc0] sm:$0xff] %v1117
  %2157 = vst [vmem:[%s18 + $0xc8] sm:$0xff] %v1119
  %2158 = vst [vmem:[%s18 + $0xd8] sm:$0xff] %v1123
  %2159 = vst [vmem:[%s18 + $0xe0] sm:$0xff] %v1125
  %2160 = vst [vmem:[%s18 + $0xf0] sm:$0xff] %v1129
  %2161 = vst [vmem:[%s18 + $0xf8] sm:$0xff] %v1131
  %2162 = vst [vmem:[%s18 + $0x108] sm:$0xff] %v1135
  %2163 = vst [vmem:[%s18 + $0x110] sm:$0xff] %v1137
  %2164 = vst [vmem:[%s18 + $0x120] sm:$0xff] %v1141
  %2165 = vst [vmem:[%s18 + $0x128] sm:$0xff] %v1143
  %2166 = vst [vmem:[%s18 + $0x138] sm:$0xff] %v1147
  %2167 = vst [vmem:[%s18 + $0x140] sm:$0xff] %v1149
  %2168 = vst [vmem:[%s18 + $0x150] sm:$0xff] %v1153
  %2169 = vst [vmem:[%s18 + $0x158] sm:$0xff] %v1155
  %2170 = vst [vmem:[%s18 + $0x168] sm:$0xff] %v1159
  %2171 = vst [vmem:[%s18 + $0x170] sm:$0xff] %v1161
  %2172 = vst [vmem:[%s18 + $0x10] sm:$0xff] %v1243
  %2173 = vst [vmem:[%s18 + $0x28] sm:$0xff] %v1244
  %2174 = vst [vmem:[%s18 + $0x40] sm:$0xff] %v1245
  %2175 = vst [vmem:[%s18 + $0x58] sm:$0xff] %v1246
  %2176 = vst [vmem:[%s18 + $0x70] sm:$0xff] %v1247
  %2177 = vst [vmem:[%s18 + $0x88] sm:$0xff] %v1248
  %2178 = vst [vmem:[%s18 + $0xa0] sm:$0xff] %v1249
  %2179 = vst [vmem:[%s18 + $0xb8] sm:$0xff] %v1250
  %2180 = vst [vmem:[%s18 + $0xd0] sm:$0xff] %v1251
  %2181 = vst [vmem:[%s18 + $0xe8] sm:$0xff] %v1252
  %2182 = vst [vmem:[%s18 + $0x100] sm:$0xff] %v1253
  %2183 = vst [vmem:[%s18 + $0x118] sm:$0xff] %v1254
  %2184 = vst [vmem:[%s18 + $0x130] sm:$0xff] %v1255
  %2185 = vst [vmem:[%s18 + $0x148] sm:$0xff] %v1256
  %2186 = vst [vmem:[%s18 + $0x160] sm:$0xff] %v1257
  %2187 = vst [vmem:[%s18 + $0x178] sm:$0xff] %v1258
  // Predicated region
  $region70: #{vae_forward.4} parent=0 // pred_check
    _
  $region71: #{vae_forward.4} parent=0 // pred_check_branch
    %2189 = sbr.rel (0) target = $region73
  $region72: #{vae_forward.4} parent=0 // pred_region
    _
  $region73: #{vae_forward.4} parent=0 // pred_fallthru
    _
  // Predicated region
  $region74: #{vae_forward.4} parent=0 // pred_check
    _
  $region75: #{vae_forward.4} parent=0 // pred_check_branch
    %2191 = sbr.rel (0) target = $region77
  $region76: #{vae_forward.4} parent=0 // pred_region
    _
  $region77: #{vae_forward.4} parent=0 // pred_fallthru
    _
  // Predicated region
  $region78: #{vae_forward.4} parent=0 // pred_check
    _
  $region79: #{vae_forward.4} parent=0 // pred_check_branch
    %2193 = sbr.rel (0) target = $region81
  $region80: #{vae_forward.4} parent=0 // pred_region
    _
  $region81: #{vae_forward.4} parent=0 // pred_fallthru
    _
  // Predicated region
  $region82: #{vae_forward.4} parent=0 // pred_check
    _
  $region83: #{vae_forward.4} parent=0 // pred_check_branch
    %2195 = sbr.rel (0) target = $region85
  $region84: #{vae_forward.4} parent=0 // pred_region
    _
  $region85: #{vae_forward.4} parent=0 // pred_fallthru
    _

</llo_original>
